<compile_context>
chip_gen: v6e
topology: v6e:2x2x1
jax: 0.10.0
libtpu: 0.0.40
codegen_flags: <defaults>
</compile_context>

<pallas_src>
import functools

import jax
import jax.numpy as jnp
from jax import lax
from jax.experimental import pallas as pl
from jax.experimental.pallas import tpu as pltpu

LN_EPS = 1e-5  # PyTorch nn.LayerNorm default eps


def _round_up(x, m):
    return ((x + m - 1) // m) * m


def _ln_true_count(x, gamma, beta, n_true):
    """LayerNorm over the first `n_true` lanes; padded lanes are exactly 0 so
    sums over all lanes equal sums over the true lanes (biased variance, like
    PyTorch)."""
    inv_n = 1.0 / float(n_true)
    mu = jnp.sum(x, axis=-1, keepdims=True) * inv_n
    ex2 = jnp.sum(x * x, axis=-1, keepdims=True) * inv_n
    var = jnp.maximum(ex2 - mu * mu, 0.0)
    return (x - mu) * lax.rsqrt(var + LN_EPS) * gamma + beta


def ddpg_critic_kernel(state_ref, action_ref,
                       w1_ref, w2_ref, wa_ref,
                       vec1_ref, vec2_ref,
                       out_ref, *, fc1_true, fc2_true, tile_b):
    bf = jnp.bfloat16

    # fc1 (bf16 MXU, f32 acc) + LayerNorm + ReLU
    x = jnp.dot(state_ref[...].astype(bf), w1_ref[...],
                preferred_element_type=jnp.float32) + vec1_ref[0:1, :]
    x = _ln_true_count(x, vec1_ref[1:2, :], vec1_ref[2:3, :], fc1_true)
    x = jnp.maximum(x, 0.0)

    # fc2 + LayerNorm (no ReLU here — matches PyTorch forward)
    x = jnp.dot(x.astype(bf), w2_ref[...],
                preferred_element_type=jnp.float32) + vec2_ref[0:1, :]
    x = _ln_true_count(x, vec2_ref[1:2, :], vec2_ref[2:3, :], fc2_true)

    # action branch + ReLU
    y = jnp.dot(action_ref[...].astype(bf), wa_ref[...],
                preferred_element_type=jnp.float32) + vec2_ref[3:4, :]
    y = jnp.maximum(y, 0.0)

    # combine + ReLU
    z = jnp.maximum(x + y, 0.0)

    # q head (N=1): keep it OFF the MXU — VPU multiply + lane reduction.
    # vec2 row 4 = wq^T (padded lanes are 0), row 5 = bq broadcast over lanes.
    q = jnp.sum(z * vec2_ref[4:5, :], axis=-1, keepdims=True)      # (tile_b, 1)
    out_ref[...] = jnp.broadcast_to(q, (tile_b, 128)) + vec2_ref[5:6, 0:128]


def ddpg_critic_forward(state, action, params, *, tile_b=128):
    B, in_dim = state.shape
    _, act_dim = action.shape
    fc1 = params["w1"].shape[1]
    fc2 = params["w2"].shape[1]
    fc1_p = _round_up(fc1, 128)
    fc2_p = _round_up(fc2, 128)
    b_pad = _round_up(max(B, 1), tile_b)

    def pad2(a, rows, cols):
        return jnp.pad(a, ((0, rows - a.shape[0]), (0, cols - a.shape[1])))

    def row(v, n):  # (1, n_true) f32 -> (1, n_pad)
        return jnp.pad(v.astype(jnp.float32), ((0, 0), (0, n - v.shape[1])))

    # weights: (in, out) layout, zero-padded, bf16 for the MXU
    w1 = pad2(params["w1"], in_dim, fc1_p).astype(jnp.bfloat16)
    w2 = pad2(params["w2"], fc1_p, fc2_p).astype(jnp.bfloat16)
    wa = pad2(params["wa"], act_dim, fc2_p).astype(jnp.bfloat16)

    # pack all tiny (1, N) params into two (8, N) f32 slabs
    z1 = jnp.zeros((1, fc1_p), jnp.float32)
    vec1 = jnp.concatenate(
        [row(params["b1"], fc1_p), row(params["g1"], fc1_p),
         row(params["be1"], fc1_p)] + [z1] * 5, axis=0)             # (8, fc1_p)

    z2 = jnp.zeros((1, fc2_p), jnp.float32)
    wq_row = row(params["wq"].T, fc2_p)                             # (1, fc2_p)
    bq_row = jnp.full((1, fc2_p), params["bq"][0, 0], jnp.float32)
    vec2 = jnp.concatenate(
        [row(params["b2"], fc2_p), row(params["g2"], fc2_p),
         row(params["be2"], fc2_p), row(params["ba"], fc2_p),
         wq_row, bq_row] + [z2] * 2, axis=0)                        # (8, fc2_p)

    state_p = jnp.pad(state.astype(jnp.float32), ((0, b_pad - B), (0, 0)))
    action_p = jnp.pad(action.astype(jnp.float32), ((0, b_pad - B), (0, 0)))

    kernel = functools.partial(ddpg_critic_kernel,
                               fc1_true=fc1, fc2_true=fc2, tile_b=tile_b)

    out = pl.pallas_call(
        kernel,
        out_shape=jax.ShapeDtypeStruct((b_pad, 128), jnp.float32),
        grid_spec=pltpu.PrefetchScalarGridSpec(
            num_scalar_prefetch=0,
            grid=(b_pad // tile_b,),
            in_specs=[
                pl.BlockSpec((tile_b, in_dim), lambda i: (i, 0)),   # state
                pl.BlockSpec((tile_b, act_dim), lambda i: (i, 0)),  # action
                pl.BlockSpec((in_dim, fc1_p), lambda i: (0, 0)),    # w1 (resident)
                pl.BlockSpec((fc1_p, fc2_p), lambda i: (0, 0)),     # w2 (resident)
                pl.BlockSpec((act_dim, fc2_p), lambda i: (0, 0)),   # wa (resident)
                pl.BlockSpec((8, fc1_p), lambda i: (0, 0)),         # vec1 (resident)
                pl.BlockSpec((8, fc2_p), lambda i: (0, 0)),         # vec2 (resident)
            ],
            out_specs=pl.BlockSpec((tile_b, 128), lambda i: (i, 0)),
        ),
        compiler_params=pltpu.CompilerParams(
            dimension_semantics=("parallel",),
            vmem_limit_bytes=64 << 20,
        ),
    )(state_p, action_p, w1, w2, wa, vec1, vec2)

    return out[:B, :1]


def init_params(key, input_size, action_size, fc1_dims, fc2_dims):
    """Deterministic synthetic init (uniform fan-in style, like DDPG)."""
    ks = jax.random.split(key, 8)

    def unif(k, shape, bound):
        return jax.random.uniform(k, shape, jnp.float32, -bound, bound)

    f1 = 1.0 / jnp.sqrt(float(input_size))
    f2 = 1.0 / jnp.sqrt(float(fc1_dims))
    fa = 1.0 / jnp.sqrt(float(action_size))
    f3 = 0.003

    return {
        # weights stored as (in, out) = transpose of PyTorch nn.Linear layout
        "w1": unif(ks[0], (input_size, fc1_dims), f1),
        "b1": unif(ks[1], (1, fc1_dims), f1),
        "g1": jnp.ones((1, fc1_dims), jnp.float32),
        "be1": jnp.zeros((1, fc1_dims), jnp.float32),
        "w2": unif(ks[2], (fc1_dims, fc2_dims), f2),
        "b2": unif(ks[3], (1, fc2_dims), f2),
        "g2": jnp.ones((1, fc2_dims), jnp.float32),
        "be2": jnp.zeros((1, fc2_dims), jnp.float32),
        "wa": unif(ks[4], (action_size, fc2_dims), fa),
        "ba": unif(ks[5], (1, fc2_dims), fa),
        "wq": unif(ks[6], (fc2_dims, 1), f3),
        "bq": unif(ks[7], (1, 1), f3),
    }


def _ln_ref(x, gamma, beta):
    mu = jnp.mean(x, axis=-1, keepdims=True)
    var = jnp.mean((x - mu) * (x - mu), axis=-1, keepdims=True)
    return (x - mu) * lax.rsqrt(var + LN_EPS) * gamma + beta


def reference_forward(state, action, p):
    """Matched-precision reference (bf16 matmul operands, f32 accumulation and
    f32 LayerNorm) — same numerics the kernel is expected to produce."""
    bf = jnp.bfloat16

    def mm(a, w):
        return jnp.dot(a.astype(bf), w.astype(bf),
                       preferred_element_type=jnp.float32)

    x = mm(state, p["w1"]) + p["b1"]
    x = _ln_ref(x, p["g1"], p["be1"])
    x = jnp.maximum(x, 0.0)
    x = mm(x, p["w2"]) + p["b2"]
    x = _ln_ref(x, p["g2"], p["be2"])
    y = jnp.maximum(mm(action, p["wa"]) + p["ba"], 0.0)
    z = jnp.maximum(x + y, 0.0)
    return z @ p["wq"] + p["bq"]


if __name__ == "__main__":
    B = 200                       # padded to 256 inside the wrapper -> 2 grid steps
    INPUT_SIZE = 32
    ACTION_SIZE = 8
    FC1, FC2 = 400, 300           # module defaults; padded to 512 / 384 internally

    key = jax.random.PRNGKey(0)
    k_s, k_a, k_p = jax.random.split(key, 3)
    state = jax.random.normal(k_s, (B, INPUT_SIZE), jnp.float32)
    action = jax.random.uniform(k_a, (B, ACTION_SIZE), jnp.float32, -1.0, 1.0)
    params = init_params(k_p, INPUT_SIZE, ACTION_SIZE, FC1, FC2)

    out = ddpg_critic_forward(state, action, params)
    out = jax.block_until_ready(out)

    ref = reference_forward(state, action, params)
    assert out.shape == (B, 1), out.shape
    assert jnp.allclose(out, ref, atol=1e-3, rtol=1e-3), (
        float(jnp.max(jnp.abs(out - ref))))

    print("KERNEL_OK")
</pallas_src>

<mosaic_0001>
module attributes {stable_mosaic.version = 11 : i64} {
  func.func @ddpg_critic_kernel(%arg0: i32, %arg1: memref<128x32xf32, #tpu.memory_space<vmem>>, %arg2: memref<128x8xf32, #tpu.memory_space<vmem>>, %arg3: memref<32x512xbf16, #tpu.memory_space<vmem>>, %arg4: memref<512x384xbf16, #tpu.memory_space<vmem>>, %arg5: memref<8x384xbf16, #tpu.memory_space<vmem>>, %arg6: memref<8x512xf32, #tpu.memory_space<vmem>>, %arg7: memref<8x384xf32, #tpu.memory_space<vmem>>, %arg8: memref<128x128xf32, #tpu.memory_space<vmem>>) attributes {dimension_semantics = [#tpu.dimension_semantics<parallel>], iteration_bounds = array<i64: 2>, scalar_prefetch = 0 : i64, scratch_operands = 0 : i64, tpu.core_type = #tpu.core_type<tc>, window_params = [{transform_indices = @transform_0, window_bounds = array<i64: 128, 32>}, {transform_indices = @transform_1, window_bounds = array<i64: 128, 8>}, {pipeline_mode = #tpu.pipeline_mode<synchronous>, transform_indices = @transform_2, window_bounds = array<i64: 32, 512>}, {pipeline_mode = #tpu.pipeline_mode<synchronous>, transform_indices = @transform_3, window_bounds = array<i64: 512, 384>}, {pipeline_mode = #tpu.pipeline_mode<synchronous>, transform_indices = @transform_4, window_bounds = array<i64: 8, 384>}, {pipeline_mode = #tpu.pipeline_mode<synchronous>, transform_indices = @transform_5, window_bounds = array<i64: 8, 512>}, {pipeline_mode = #tpu.pipeline_mode<synchronous>, transform_indices = @transform_6, window_bounds = array<i64: 8, 384>}, {transform_indices = @transform_7, window_bounds = array<i64: 128, 128>}]} {
    %c0 = arith.constant 0 : index
    %c0_0 = arith.constant 0 : index
    %0 = vector.load %arg1[%c0, %c0_0] : memref<128x32xf32, #tpu.memory_space<vmem>>, vector<128x32xf32>
    %1 = arith.truncf %0 : vector<128x32xf32> to vector<128x32xbf16>
    %c0_1 = arith.constant 0 : index
    %c0_2 = arith.constant 0 : index
    %2 = vector.load %arg3[%c0_1, %c0_2] : memref<32x512xbf16, #tpu.memory_space<vmem>>, vector<32x512xbf16>
    %cst = arith.constant dense<0.000000e+00> : vector<128x512xf32>
    %3 = tpu.matmul %1, %2, %cst {dimension_numbers = #tpu.dot_dimension_numbers<[1], [0], [0], [1], [0, 0, 1, 1], [], []>} : vector<128x32xbf16>, vector<32x512xbf16>, vector<128x512xf32> -> vector<128x512xf32>
    %c0_3 = arith.constant 0 : index
    %c0_4 = arith.constant 0 : index
    %4 = vector.load %arg6[%c0_3, %c0_4] : memref<8x512xf32, #tpu.memory_space<vmem>>, vector<1x512xf32>
    %5 = vector.broadcast %4 : vector<1x512xf32> to vector<128x512xf32>
    %6 = arith.addf %3, %5 : vector<128x512xf32>
    %c1 = arith.constant 1 : index
    %c0_5 = arith.constant 0 : index
    %7 = vector.load %arg6[%c1, %c0_5] : memref<8x512xf32, #tpu.memory_space<vmem>>, vector<1x512xf32>
    %c2 = arith.constant 2 : index
    %c0_6 = arith.constant 0 : index
    %8 = vector.load %arg6[%c2, %c0_6] : memref<8x512xf32, #tpu.memory_space<vmem>>, vector<1x512xf32>
    %cst_7 = arith.constant dense<0.000000e+00> : vector<128xf32>
    %9 = vector.multi_reduction <add>, %6, %cst_7 [1] : vector<128x512xf32> to vector<128xf32>
    %10 = vector.shape_cast %9 : vector<128xf32> to vector<128x1xf32>
    %cst_8 = arith.constant 2.500000e-03 : f32
    %11 = vector.broadcast %cst_8 : f32 to vector<128x1xf32>
    %12 = arith.mulf %10, %11 : vector<128x1xf32>
    %13 = arith.mulf %6, %6 : vector<128x512xf32>
    %cst_9 = arith.constant dense<0.000000e+00> : vector<128xf32>
    %14 = vector.multi_reduction <add>, %13, %cst_9 [1] : vector<128x512xf32> to vector<128xf32>
    %15 = vector.shape_cast %14 : vector<128xf32> to vector<128x1xf32>
    %cst_10 = arith.constant 2.500000e-03 : f32
    %16 = vector.broadcast %cst_10 : f32 to vector<128x1xf32>
    %17 = arith.mulf %15, %16 : vector<128x1xf32>
    %18 = arith.mulf %12, %12 : vector<128x1xf32>
    %19 = arith.subf %17, %18 : vector<128x1xf32>
    %cst_11 = arith.constant 0.000000e+00 : f32
    %20 = vector.broadcast %cst_11 : f32 to vector<128x1xf32>
    %21 = arith.maximumf %19, %20 : vector<128x1xf32>
    %22 = vector.broadcast %12 : vector<128x1xf32> to vector<128x512xf32>
    %23 = arith.subf %6, %22 : vector<128x512xf32>
    %cst_12 = arith.constant 9.99999974E-6 : f32
    %24 = vector.broadcast %cst_12 : f32 to vector<128x1xf32>
    %25 = arith.addf %21, %24 : vector<128x1xf32>
    %26 = math.rsqrt %25 : vector<128x1xf32>
    %27 = vector.broadcast %26 : vector<128x1xf32> to vector<128x512xf32>
    %28 = arith.mulf %23, %27 : vector<128x512xf32>
    %29 = vector.broadcast %7 : vector<1x512xf32> to vector<128x512xf32>
    %30 = arith.mulf %28, %29 : vector<128x512xf32>
    %31 = vector.broadcast %8 : vector<1x512xf32> to vector<128x512xf32>
    %32 = arith.addf %30, %31 : vector<128x512xf32>
    %cst_13 = arith.constant 0.000000e+00 : f32
    %33 = vector.broadcast %cst_13 : f32 to vector<128x512xf32>
    %34 = arith.maximumf %32, %33 : vector<128x512xf32>
    %35 = arith.truncf %34 : vector<128x512xf32> to vector<128x512xbf16>
    %c0_14 = arith.constant 0 : index
    %c0_15 = arith.constant 0 : index
    %36 = vector.load %arg4[%c0_14, %c0_15] : memref<512x384xbf16, #tpu.memory_space<vmem>>, vector<512x384xbf16>
    %cst_16 = arith.constant dense<0.000000e+00> : vector<128x384xf32>
    %37 = tpu.matmul %35, %36, %cst_16 {dimension_numbers = #tpu.dot_dimension_numbers<[1], [0], [0], [1], [0, 0, 1, 1], [], []>} : vector<128x512xbf16>, vector<512x384xbf16>, vector<128x384xf32> -> vector<128x384xf32>
    %c0_17 = arith.constant 0 : index
    %c0_18 = arith.constant 0 : index
    %38 = vector.load %arg7[%c0_17, %c0_18] : memref<8x384xf32, #tpu.memory_space<vmem>>, vector<1x384xf32>
    %39 = vector.broadcast %38 : vector<1x384xf32> to vector<128x384xf32>
    %40 = arith.addf %37, %39 : vector<128x384xf32>
    %c1_19 = arith.constant 1 : index
    %c0_20 = arith.constant 0 : index
    %41 = vector.load %arg7[%c1_19, %c0_20] : memref<8x384xf32, #tpu.memory_space<vmem>>, vector<1x384xf32>
    %c2_21 = arith.constant 2 : index
    %c0_22 = arith.constant 0 : index
    %42 = vector.load %arg7[%c2_21, %c0_22] : memref<8x384xf32, #tpu.memory_space<vmem>>, vector<1x384xf32>
    %cst_23 = arith.constant dense<0.000000e+00> : vector<128xf32>
    %43 = vector.multi_reduction <add>, %40, %cst_23 [1] : vector<128x384xf32> to vector<128xf32>
    %44 = vector.shape_cast %43 : vector<128xf32> to vector<128x1xf32>
    %cst_24 = arith.constant 0.00333333341 : f32
    %45 = vector.broadcast %cst_24 : f32 to vector<128x1xf32>
    %46 = arith.mulf %44, %45 : vector<128x1xf32>
    %47 = arith.mulf %40, %40 : vector<128x384xf32>
    %cst_25 = arith.constant dense<0.000000e+00> : vector<128xf32>
    %48 = vector.multi_reduction <add>, %47, %cst_25 [1] : vector<128x384xf32> to vector<128xf32>
    %49 = vector.shape_cast %48 : vector<128xf32> to vector<128x1xf32>
    %cst_26 = arith.constant 0.00333333341 : f32
    %50 = vector.broadcast %cst_26 : f32 to vector<128x1xf32>
    %51 = arith.mulf %49, %50 : vector<128x1xf32>
    %52 = arith.mulf %46, %46 : vector<128x1xf32>
    %53 = arith.subf %51, %52 : vector<128x1xf32>
    %cst_27 = arith.constant 0.000000e+00 : f32
    %54 = vector.broadcast %cst_27 : f32 to vector<128x1xf32>
    %55 = arith.maximumf %53, %54 : vector<128x1xf32>
    %56 = vector.broadcast %46 : vector<128x1xf32> to vector<128x384xf32>
    %57 = arith.subf %40, %56 : vector<128x384xf32>
    %cst_28 = arith.constant 9.99999974E-6 : f32
    %58 = vector.broadcast %cst_28 : f32 to vector<128x1xf32>
    %59 = arith.addf %55, %58 : vector<128x1xf32>
    %60 = math.rsqrt %59 : vector<128x1xf32>
    %61 = vector.broadcast %60 : vector<128x1xf32> to vector<128x384xf32>
    %62 = arith.mulf %57, %61 : vector<128x384xf32>
    %63 = vector.broadcast %41 : vector<1x384xf32> to vector<128x384xf32>
    %64 = arith.mulf %62, %63 : vector<128x384xf32>
    %65 = vector.broadcast %42 : vector<1x384xf32> to vector<128x384xf32>
    %66 = arith.addf %64, %65 : vector<128x384xf32>
    %c0_29 = arith.constant 0 : index
    %c0_30 = arith.constant 0 : index
    %67 = vector.load %arg2[%c0_29, %c0_30] : memref<128x8xf32, #tpu.memory_space<vmem>>, vector<128x8xf32>
    %68 = arith.truncf %67 : vector<128x8xf32> to vector<128x8xbf16>
    %c0_31 = arith.constant 0 : index
    %c0_32 = arith.constant 0 : index
    %69 = vector.load %arg5[%c0_31, %c0_32] : memref<8x384xbf16, #tpu.memory_space<vmem>>, vector<8x384xbf16>
    %cst_33 = arith.constant dense<0.000000e+00> : vector<128x384xf32>
    %70 = tpu.matmul %68, %69, %cst_33 {dimension_numbers = #tpu.dot_dimension_numbers<[1], [0], [0], [1], [0, 0, 1, 1], [], []>} : vector<128x8xbf16>, vector<8x384xbf16>, vector<128x384xf32> -> vector<128x384xf32>
    %c3 = arith.constant 3 : index
    %c0_34 = arith.constant 0 : index
    %71 = vector.load %arg7[%c3, %c0_34] : memref<8x384xf32, #tpu.memory_space<vmem>>, vector<1x384xf32>
    %72 = vector.broadcast %71 : vector<1x384xf32> to vector<128x384xf32>
    %73 = arith.addf %70, %72 : vector<128x384xf32>
    %cst_35 = arith.constant 0.000000e+00 : f32
    %74 = vector.broadcast %cst_35 : f32 to vector<128x384xf32>
    %75 = arith.maximumf %73, %74 : vector<128x384xf32>
    %76 = arith.addf %66, %75 : vector<128x384xf32>
    %cst_36 = arith.constant 0.000000e+00 : f32
    %77 = vector.broadcast %cst_36 : f32 to vector<128x384xf32>
    %78 = arith.maximumf %76, %77 : vector<128x384xf32>
    %c4 = arith.constant 4 : index
    %c0_37 = arith.constant 0 : index
    %79 = vector.load %arg7[%c4, %c0_37] : memref<8x384xf32, #tpu.memory_space<vmem>>, vector<1x384xf32>
    %80 = vector.broadcast %79 : vector<1x384xf32> to vector<128x384xf32>
    %81 = arith.mulf %78, %80 : vector<128x384xf32>
    %cst_38 = arith.constant dense<0.000000e+00> : vector<128xf32>
    %82 = vector.multi_reduction <add>, %81, %cst_38 [1] : vector<128x384xf32> to vector<128xf32>
    %83 = vector.shape_cast %82 : vector<128xf32> to vector<128x1xf32>
    %84 = vector.shape_cast %83 : vector<128x1xf32> to vector<128x1xf32>
    %85 = vector.broadcast %84 : vector<128x1xf32> to vector<128x128xf32>
    %c5 = arith.constant 5 : index
    %c0_39 = arith.constant 0 : index
    %86 = vector.load %arg7[%c5, %c0_39] : memref<8x384xf32, #tpu.memory_space<vmem>>, vector<1x128xf32>
    %87 = vector.broadcast %86 : vector<1x128xf32> to vector<128x128xf32>
    %88 = arith.addf %85, %87 : vector<128x128xf32>
    %c0_40 = arith.constant 0 : index
    %c0_41 = arith.constant 0 : index
    %89 = vector.load %arg8[%c0_40, %c0_41] : memref<128x128xf32, #tpu.memory_space<vmem>>, vector<128x128xf32>
    tpu.vector_store %arg8[%c0_40, %c0_41], %88 {strides = array<i32>} : memref<128x128xf32, #tpu.memory_space<vmem>>, vector<128x128xf32>,
    return
  }
  func.func @transform_0(%arg0: i32) -> (i32, i32) {
    %c0_i32 = arith.constant 0 : i32
    %c0_i32_0 = arith.constant 0 : i32
    return %arg0, %c0_i32 : i32, i32
  }
  func.func @transform_1(%arg0: i32) -> (i32, i32) {
    %c0_i32 = arith.constant 0 : i32
    %c0_i32_0 = arith.constant 0 : i32
    return %arg0, %c0_i32 : i32, i32
  }
  func.func @transform_2(%arg0: i32) -> (i32, i32) {
    %c0_i32 = arith.constant 0 : i32
    %c0_i32_0 = arith.constant 0 : i32
    %c0_i32_1 = arith.constant 0 : i32
    return %c0_i32, %c0_i32_0 : i32, i32
  }
  func.func @transform_3(%arg0: i32) -> (i32, i32) {
    %c0_i32 = arith.constant 0 : i32
    %c0_i32_0 = arith.constant 0 : i32
    %c0_i32_1 = arith.constant 0 : i32
    return %c0_i32, %c0_i32_0 : i32, i32
  }
  func.func @transform_4(%arg0: i32) -> (i32, i32) {
    %c0_i32 = arith.constant 0 : i32
    %c0_i32_0 = arith.constant 0 : i32
    %c0_i32_1 = arith.constant 0 : i32
    return %c0_i32, %c0_i32_0 : i32, i32
  }
  func.func @transform_5(%arg0: i32) -> (i32, i32) {
    %c0_i32 = arith.constant 0 : i32
    %c0_i32_0 = arith.constant 0 : i32
    %c0_i32_1 = arith.constant 0 : i32
    return %c0_i32, %c0_i32_0 : i32, i32
  }
  func.func @transform_6(%arg0: i32) -> (i32, i32) {
    %c0_i32 = arith.constant 0 : i32
    %c0_i32_0 = arith.constant 0 : i32
    %c0_i32_1 = arith.constant 0 : i32
    return %c0_i32, %c0_i32_0 : i32, i32
  }
  func.func @transform_7(%arg0: i32) -> (i32, i32) {
    %c0_i32 = arith.constant 0 : i32
    %c0_i32_0 = arith.constant 0 : i32
    return %arg0, %c0_i32 : i32, i32
  }
}

</mosaic_0001>

<llo_original>
// kernel: tpu_custom_call.1
$region0: #{tpu_custom_call.1}
  #allocation0 [shape = 'u32[]', space=smem, size = 0x4, offset = 0x4, fixed_abs, tag = 'smem constant byte address 0x4 - core index']
  #allocation1 [shape = 'u32[144,128]{1,0:T(1,128)}', space=vmem, size = 0x12000, scoped, tag = 'internal scratch']
  %s0 = inlined_call_operand.vmem [shape: f32[256,32], index: 0, kind: input, shape index: {}]
  %s1 = inlined_call_operand.vmem [shape: f32[256,8], index: 1, kind: input, shape index: {}]
  %s2 = inlined_call_operand.vmem [shape: bf16[32,512], index: 2, kind: input, shape index: {}]
  %s3 = inlined_call_operand.hbm [shape: bf16[512,384], index: 3, kind: input, shape index: {}]
  %s4 = inlined_call_operand.vmem [shape: bf16[8,384], index: 4, kind: input, shape index: {}]
  %s5 = inlined_call_operand.vmem [shape: f32[8,512], index: 5, kind: input, shape index: {}]
  %s6 = inlined_call_operand.vmem [shape: f32[8,384], index: 6, kind: input, shape index: {}]
  %s7 = inlined_call_operand.hbm [shape: f32[256,128], index: 7, kind: output, shape index: {}]
  %s8 = sld [smem:[#allocation0]]
  $region65: #{tpu_custom_call.1} parent=0
    _
  %s10 = ssub.s32 1, %s8
  %s11 = scalar_select 0, %s10, %s8
  $region1: #{tpu_custom_call.1} parent=0
    #allocation2 [shape = 'u8[393216]{0}', space=vmem, size = 0x60000, scoped, tag = 'input window, operand 3, single buffered']
    #allocation3 [shape = 's32[2]{0}', space=sflag, size = 0x8, scoped, tag = 'scoped memory for tpu_custom_call.1']
    #allocation4 [shape = 's32[2]{0}', space=sflag, size = 0x8, scoped, tag = 'scoped memory for tpu_custom_call.1']
    #allocation5 [shape = 'u8[131072]{0}', space=vmem, size = 0x20000, scoped, tag = 'output window, operand 0']
    %12 = vsyncpa [#allocation3], 0
    %13 = vsyncpa [#allocation4], 0
    %s14 = scalar_lea.sflag [#allocation4], 1
    %15 = vsyncpa %s14, 0
    loop: start=0, step=1, limit=4
    $region2: #{tpu_custom_call.1} parent=1 // loop_pre_header
      _
    $region3: #{tpu_custom_call.1} parent=1 // loop_header
      %s17 = sphi 0, %s21
      %p18 = scmp.ge.s32.totalorder %s17, 4
      %s27 = sphi 0, %s29
      %s30 = sphi 0, %s27
      %s31 = sphi 0, %s30
      %s47 = sphi 0, %s31
      %s53 = sphi 0, %s55
      %s56 = sphi 0, %s53
      %s57 = sphi 0, %s56
      %s73 = sphi 0, %s57
      %s77 = sphi 0, %s77
      %s79 = sphi 0, %s77
      %s80 = sphi 0, %s79
      %s94 = sphi 0, %s80
      %s98 = sphi 0, %s98
      %s100 = sphi 0, %s98
      %s101 = sphi 0, %s100
      %s115 = sphi 0, %s101
      %s119 = sphi 0, %s119
      %s121 = sphi 0, %s119
      %s122 = sphi 0, %s121
      %s136 = sphi 0, %s122
      %s140 = sphi 0, %s140
      %s142 = sphi 0, %s140
      %s143 = sphi 0, %s142
      %s157 = sphi 0, %s143
      %s161 = sphi 0, %s161
      %s163 = sphi 0, %s161
      %s164 = sphi 0, %s163
      %s178 = sphi 0, %s164
      %s184 = sphi 0, %s186
      %s187 = sphi 0, %s184
      %s188 = sphi 0, %s187
      %s204 = sphi 0, %s188
    $region4: #{tpu_custom_call.1} parent=1 // loop_header_branch
      %20 = sbr.rel (%p18) target = $region8
    $region5: #{tpu_custom_call.1} parent=1 // loop_body
      %s22 = ssub.s32 %s17, 1
      %s23 = ssub.s32 %s17, 2
      %s24 = sadd.s32 %s17, 1
      %s25 = ssub.s32 %s17, %s24
      %p26 = scmp.eq.s32.totalorder %s25, 0
      %s28 = sadd.s32 %s27, 1
      %s29 = scalar_select %p26, %s27, %s28
      %p32 = pneg %p26
      %p33 = scmp.eq.s32.totalorder %s17, 1
      %p34 = por %p32, %p33
      %p35 = scmp.ne.s32.totalorder %s27, %s30
      %p36 = scmp.eq.s32.totalorder %s17, 0
      %p37 = por %p35, %p36
      %p38 = scmp.ne.s32.totalorder %s27, %s30
      %p39 = scmp.eq.s32.totalorder %s22, 1
      %p40 = por %p38, %p39
      %p41 = scmp.ne.s32.totalorder %s30, %s31
      %p42 = scmp.eq.s32.totalorder %s22, 0
      %p43 = por %p41, %p42
      %p44 = scmp.ne.s32.totalorder %s30, %s31
      %p45 = scmp.eq.s32.totalorder %s23, 1
      %p46 = por %p44, %p45
      %p48 = scmp.ne.s32.totalorder %s31, %s47
      %p49 = scmp.eq.s32.totalorder %s23, 0
      %p50 = por %p48, %p49
      %s51 = ssub.s32 %s17, %s24
      %p52 = scmp.eq.s32.totalorder %s51, 0
      %s54 = sadd.s32 %s53, 1
      %s55 = scalar_select %p52, %s53, %s54
      %p58 = pneg %p52
      %p59 = scmp.eq.s32.totalorder %s17, 1
      %p60 = por %p58, %p59
      %p61 = scmp.ne.s32.totalorder %s53, %s56
      %p62 = scmp.eq.s32.totalorder %s17, 0
      %p63 = por %p61, %p62
      %p64 = scmp.ne.s32.totalorder %s53, %s56
      %p65 = scmp.eq.s32.totalorder %s22, 1
      %p66 = por %p64, %p65
      %p67 = scmp.ne.s32.totalorder %s56, %s57
      %p68 = scmp.eq.s32.totalorder %s22, 0
      %p69 = por %p67, %p68
      %p70 = scmp.ne.s32.totalorder %s56, %s57
      %p71 = scmp.eq.s32.totalorder %s23, 1
      %p72 = por %p70, %p71
      %p74 = scmp.ne.s32.totalorder %s57, %s73
      %p75 = scmp.eq.s32.totalorder %s23, 0
      %p76 = por %p74, %p75
      %s78 = sadd.s32 %s77, 1
      %p81 = scmp.eq.s32.totalorder %s17, 1
      %p82 = scmp.ne.s32.totalorder %s77, %s79
      %p83 = scmp.eq.s32.totalorder %s17, 0
      %p84 = por %p82, %p83
      %p85 = scmp.ne.s32.totalorder %s77, %s79
      %p86 = scmp.eq.s32.totalorder %s22, 1
      %p87 = por %p85, %p86
      %p88 = scmp.ne.s32.totalorder %s79, %s80
      %p89 = scmp.eq.s32.totalorder %s22, 0
      %p90 = por %p88, %p89
      %p91 = scmp.ne.s32.totalorder %s79, %s80
      %p92 = scmp.eq.s32.totalorder %s23, 1
      %p93 = por %p91, %p92
      %p95 = scmp.ne.s32.totalorder %s80, %s94
      %p96 = scmp.eq.s32.totalorder %s23, 0
      %p97 = por %p95, %p96
      %s99 = sadd.s32 %s98, 1
      %p102 = scmp.eq.s32.totalorder %s17, 1
      %p103 = scmp.ne.s32.totalorder %s98, %s100
      %p104 = scmp.eq.s32.totalorder %s17, 0
      %p105 = por %p103, %p104
      %p106 = scmp.ne.s32.totalorder %s98, %s100
      %p107 = scmp.eq.s32.totalorder %s22, 1
      %p108 = por %p106, %p107
      %p109 = scmp.ne.s32.totalorder %s100, %s101
      %p110 = scmp.eq.s32.totalorder %s22, 0
      %p111 = por %p109, %p110
      %p112 = scmp.ne.s32.totalorder %s100, %s101
      %p113 = scmp.eq.s32.totalorder %s23, 1
      %p114 = por %p112, %p113
      %p116 = scmp.ne.s32.totalorder %s101, %s115
      %p117 = scmp.eq.s32.totalorder %s23, 0
      %p118 = por %p116, %p117
      %s120 = sadd.s32 %s119, 1
      %p123 = scmp.eq.s32.totalorder %s17, 1
      %p124 = scmp.ne.s32.totalorder %s119, %s121
      %p125 = scmp.eq.s32.totalorder %s17, 0
      %p126 = por %p124, %p125
      %p127 = scmp.ne.s32.totalorder %s119, %s121
      %p128 = scmp.eq.s32.totalorder %s22, 1
      %p129 = por %p127, %p128
      %p130 = scmp.ne.s32.totalorder %s121, %s122
      %p131 = scmp.eq.s32.totalorder %s22, 0
      %p132 = por %p130, %p131
      %p133 = scmp.ne.s32.totalorder %s121, %s122
      %p134 = scmp.eq.s32.totalorder %s23, 1
      %p135 = por %p133, %p134
      %p137 = scmp.ne.s32.totalorder %s122, %s136
      %p138 = scmp.eq.s32.totalorder %s23, 0
      %p139 = por %p137, %p138
      %s141 = sadd.s32 %s140, 1
      %p144 = scmp.eq.s32.totalorder %s17, 1
      %p145 = scmp.ne.s32.totalorder %s140, %s142
      %p146 = scmp.eq.s32.totalorder %s17, 0
      %p147 = por %p145, %p146
      %p148 = scmp.ne.s32.totalorder %s140, %s142
      %p149 = scmp.eq.s32.totalorder %s22, 1
      %p150 = por %p148, %p149
      %p151 = scmp.ne.s32.totalorder %s142, %s143
      %p152 = scmp.eq.s32.totalorder %s22, 0
      %p153 = por %p151, %p152
      %p154 = scmp.ne.s32.totalorder %s142, %s143
      %p155 = scmp.eq.s32.totalorder %s23, 1
      %p156 = por %p154, %p155
      %p158 = scmp.ne.s32.totalorder %s143, %s157
      %p159 = scmp.eq.s32.totalorder %s23, 0
      %p160 = por %p158, %p159
      %s162 = sadd.s32 %s161, 1
      %p165 = scmp.eq.s32.totalorder %s17, 1
      %p166 = scmp.ne.s32.totalorder %s161, %s163
      %p167 = scmp.eq.s32.totalorder %s17, 0
      %p168 = por %p166, %p167
      %p169 = scmp.ne.s32.totalorder %s161, %s163
      %p170 = scmp.eq.s32.totalorder %s22, 1
      %p171 = por %p169, %p170
      %p172 = scmp.ne.s32.totalorder %s163, %s164
      %p173 = scmp.eq.s32.totalorder %s22, 0
      %p174 = por %p172, %p173
      %p175 = scmp.ne.s32.totalorder %s163, %s164
      %p176 = scmp.eq.s32.totalorder %s23, 1
      %p177 = por %p175, %p176
      %p179 = scmp.ne.s32.totalorder %s164, %s178
      %p180 = scmp.eq.s32.totalorder %s23, 0
      %p181 = por %p179, %p180
      %s182 = ssub.s32 %s17, %s24
      %p183 = scmp.eq.s32.totalorder %s182, 0
      %s185 = sadd.s32 %s184, 1
      %s186 = scalar_select %p183, %s184, %s185
      %p189 = pneg %p183
      %p190 = scmp.eq.s32.totalorder %s17, 1
      %p191 = por %p189, %p190
      %p192 = scmp.ne.s32.totalorder %s184, %s187
      %p193 = scmp.eq.s32.totalorder %s17, 0
      %p194 = por %p192, %p193
      %p195 = scmp.ne.s32.totalorder %s184, %s187
      %p196 = scmp.eq.s32.totalorder %s22, 1
      %p197 = por %p195, %p196
      %p198 = scmp.ne.s32.totalorder %s187, %s188
      %p199 = scmp.eq.s32.totalorder %s22, 0
      %p200 = por %p198, %p199
      %p201 = scmp.ne.s32.totalorder %s187, %s188
      %p202 = scmp.eq.s32.totalorder %s23, 1
      %p203 = por %p201, %p202
      %p205 = scmp.ne.s32.totalorder %s188, %s204
      %p206 = scmp.eq.s32.totalorder %s23, 0
      %p207 = por %p205, %p206
      %p208 = scmp.le.s32.totalorder 1, %s17
      %p209 = scmp.lt.s32.totalorder %s17, 3
      %p210 = pnand %p208, %p209
      %p211 = pneg %p210
      // Predicated region
      $region9: #{tpu_custom_call.1} parent=5 // pred_check
        _
      $region10: #{tpu_custom_call.1} parent=5 // pred_check_branch
        %213 = sbr.rel (%p210) target = $region12
      $region11: #{tpu_custom_call.1} parent=5 // pred_region
        %s214 = ssub.s32 %s17, 1
        // Predicated region
        $region13: #{tpu_custom_call.1} parent=11 // pred_check
          %p215 = pneg %p90
        $region14: #{tpu_custom_call.1} parent=11 // pred_check_branch
          %217 = sbr.rel (%p215) target = $region16
        $region15: #{tpu_custom_call.1} parent=11 // pred_region
          _
        $region16: #{tpu_custom_call.1} parent=11 // pred_fallthru
          _
        // Predicated region
        $region17: #{tpu_custom_call.1} parent=11 // pred_check
          %p218 = pneg %p111
        $region18: #{tpu_custom_call.1} parent=11 // pred_check_branch
          %220 = sbr.rel (%p218) target = $region20
        $region19: #{tpu_custom_call.1} parent=11 // pred_region
          %s222 = ssub.s32 12288, 12288
          %223 = vsyncadd [#allocation3], %s222
          %s224 = sshll.u32 [#allocation2], 4
          %s225 = int_to_ptr.vmem [resolvable:$true] %s224
          %230 = dma.hbm_to_vmem [thread:$0]  %s3, 12288, %s225, [#allocation3], 192, 192, 12
        $region20: #{tpu_custom_call.1} parent=11 // pred_fallthru
          _
        // Predicated region
        $region21: #{tpu_custom_call.1} parent=11 // pred_check
          %p231 = pneg %p132
        $region22: #{tpu_custom_call.1} parent=11 // pred_check_branch
          %233 = sbr.rel (%p231) target = $region24
        $region23: #{tpu_custom_call.1} parent=11 // pred_region
          _
        $region24: #{tpu_custom_call.1} parent=11 // pred_fallthru
          _
        // Predicated region
        $region25: #{tpu_custom_call.1} parent=11 // pred_check
          %p234 = pneg %p153
        $region26: #{tpu_custom_call.1} parent=11 // pred_check_branch
          %236 = sbr.rel (%p234) target = $region28
        $region27: #{tpu_custom_call.1} parent=11 // pred_region
          _
        $region28: #{tpu_custom_call.1} parent=11 // pred_fallthru
          _
        // Predicated region
        $region29: #{tpu_custom_call.1} parent=11 // pred_check
          %p237 = pneg %p174
        $region30: #{tpu_custom_call.1} parent=11 // pred_check_branch
          %239 = sbr.rel (%p237) target = $region32
        $region31: #{tpu_custom_call.1} parent=11 // pred_region
          _
        $region32: #{tpu_custom_call.1} parent=11 // pred_fallthru
          _
      $region12: #{tpu_custom_call.1} parent=5 // pred_fallthru
        _
      %p240 = scmp.lt.s32.totalorder %s17, 2
      // Predicated region
      $region33: #{tpu_custom_call.1} parent=5 // pred_check
        %p241 = pneg %p240
      $region34: #{tpu_custom_call.1} parent=5 // pred_check_branch
        %243 = sbr.rel (%p241) target = $region36
      $region35: #{tpu_custom_call.1} parent=5 // pred_region
        // Predicated region
        $region37: #{tpu_custom_call.1} parent=35 // pred_check
          %p244 = pneg %p37
        $region38: #{tpu_custom_call.1} parent=35 // pred_check_branch
          %246 = sbr.rel (%p244) target = $region40
        $region39: #{tpu_custom_call.1} parent=35 // pred_region
          %s247 = smul.u32 16, %s17
          %p248 = scmp.lt.s32.totalorder %s247, 31
          %s249 = scalar_select %p248, %s247, 31
          %s250 = smul.addr %s249, 8
          %s251 = scalar_lea.vmem %s0, %s250
          %s252 = smul.u32 16, %s17
        $region40: #{tpu_custom_call.1} parent=35 // pred_fallthru
          _
        // Predicated region
        $region41: #{tpu_custom_call.1} parent=35 // pred_check
          %p253 = pneg %p63
        $region42: #{tpu_custom_call.1} parent=35 // pred_check_branch
          %255 = sbr.rel (%p253) target = $region44
        $region43: #{tpu_custom_call.1} parent=35 // pred_region
          %s256 = smul.u32 16, %s17
          %p257 = scmp.lt.s32.totalorder %s256, 31
          %s258 = scalar_select %p257, %s256, 31
          %s259 = smul.addr %s258, 8
          %s260 = scalar_lea.vmem %s1, %s259
          %s261 = smul.u32 16, %s17
        $region44: #{tpu_custom_call.1} parent=35 // pred_fallthru
          _
      $region36: #{tpu_custom_call.1} parent=5 // pred_fallthru
        _
      %p262 = scmp.le.s32.totalorder 1, %s17
      %p263 = scmp.lt.s32.totalorder %s17, 3
      %p264 = pnand %p262, %p263
      %p265 = pneg %p264
      // Predicated region
      $region45: #{tpu_custom_call.1} parent=5 // pred_check
        _
      $region46: #{tpu_custom_call.1} parent=5 // pred_check_branch
        %267 = sbr.rel (%p264) target = $region48
      $region47: #{tpu_custom_call.1} parent=5 // pred_region
        %s268 = ssub.s32 %s17, 1
        // Predicated region
        $region49: #{tpu_custom_call.1} parent=47 // pred_check
          %p269 = pneg %p111
        $region50: #{tpu_custom_call.1} parent=47 // pred_check_branch
          %271 = sbr.rel (%p269) target = $region52
        $region51: #{tpu_custom_call.1} parent=47 // pred_region
          %272 = dma.done [#allocation3], 12288
        $region52: #{tpu_custom_call.1} parent=47 // pred_fallthru
          _
        %s273 = smul.u32 16, %s22
        %p274 = scmp.lt.s32.totalorder %s273, 31
        %s275 = scalar_select %p274, %s273, 31
        %s276 = smul.addr %s275, 8
        %s277 = scalar_lea.vmem %s0, %s276
        %p278 = pneg %p43
        %p279 = pneg %p40
        %s280 = smul.u32 16, %s22
        %p281 = scmp.lt.s32.totalorder %s280, 31
        %s282 = scalar_select %p281, %s280, 31
        %s283 = smul.addr %s282, 8
        %s284 = scalar_lea.vmem %s1, %s283
        %p285 = pneg %p69
        %p286 = pneg %p66
        %p287 = pneg %p90
        %p288 = pneg %p87
        %p289 = pneg %p111
        %p290 = pneg %p108
        %p291 = pneg %p132
        %p292 = pneg %p129
        %p293 = pneg %p153
        %p294 = pneg %p150
        %p295 = pneg %p174
        %p296 = pneg %p171
        %p297 = pneg %p200
        %p298 = pneg %p197
        %s299 = sand.u32 %s187, 1
        %s300 = scalar_lea.sflag [#allocation4], %s299
        %s301 = sand.u32 %s187, 1
        %s302 = smul.addr %s301, 128
        %s303 = scalar_lea.vmem [#allocation5], %s302
        %s304 = smul.u32 16, %s22
        %p305 = scmp.lt.s32.totalorder %s304, 31
        %s306 = scalar_select %p305, %s304, 31
        %s307 = smul.addr %s306, 8
        %s308 = scalar_lea.vmem %s0, %s307
        %s309 = smul.u32 16, %s22
        %s310 = smul.u32 16, %s22
        %p311 = scmp.lt.s32.totalorder %s310, 31
        %s312 = scalar_select %p311, %s310, 31
        %s313 = smul.addr %s312, 8
        %s314 = scalar_lea.vmem %s1, %s313
        %s315 = smul.u32 16, %s22
        %s316 = smul.u32 16, %s22
        %v318 = vld [vmem:[%s308] sm:$0xff]
        %v319 = vld [vmem:[%s308 + $0x8] sm:$0xff]
        %v320 = vld [vmem:[%s308 + $0x10] sm:$0xff]
        %v321 = vld [vmem:[%s308 + $0x18] sm:$0xff]
        %v322 = vld [vmem:[%s308 + $0x20] sm:$0xff]
        %v323 = vld [vmem:[%s308 + $0x28] sm:$0xff]
        %v324 = vld [vmem:[%s308 + $0x30] sm:$0xff]
        %v325 = vld [vmem:[%s308 + $0x38] sm:$0xff]
        %v326 = vld [vmem:[%s308 + $0x40] sm:$0xff]
        %v327 = vld [vmem:[%s308 + $0x48] sm:$0xff]
        %v328 = vld [vmem:[%s308 + $0x50] sm:$0xff]
        %v329 = vld [vmem:[%s308 + $0x58] sm:$0xff]
        %v330 = vld [vmem:[%s308 + $0x60] sm:$0xff]
        %v331 = vld [vmem:[%s308 + $0x68] sm:$0xff]
        %v332 = vld [vmem:[%s308 + $0x70] sm:$0xff]
        %v333 = vld [vmem:[%s308 + $0x78] sm:$0xff]
        %v334 = vpack.c.bf16 %v319, %v318
        %v335 = vpack.c.bf16 %v321, %v320
        %v336 = vpack.c.bf16 %v323, %v322
        %v337 = vpack.c.bf16 %v325, %v324
        %v338 = vpack.c.bf16 %v327, %v326
        %v339 = vpack.c.bf16 %v329, %v328
        %v340 = vpack.c.bf16 %v331, %v330
        %v341 = vpack.c.bf16 %v333, %v332
        %v342 = vld [vmem:[%s2] sm:$0xff]
        %v343 = vld [vmem:[%s2 + $0x8] sm:$0xff]
        %v344 = vld [vmem:[%s2 + $0x10] sm:$0xff]
        %v345 = vld [vmem:[%s2 + $0x18] sm:$0xff]
        %v346 = vld [vmem:[%s2 + $0x20] sm:$0xff]
        %v347 = vld [vmem:[%s2 + $0x28] sm:$0xff]
        %v348 = vld [vmem:[%s2 + $0x30] sm:$0xff]
        %v349 = vld [vmem:[%s2 + $0x38] sm:$0xff]
        %v350 = vld [vmem:[%s5] ss:$8 sm:$0xf]
        %v352 = vlaneseq
        %v353 = vshrl.u32 %v352, 7
        %v354 = vsub.s32 0, %v353
        %v355 = vrot.slane %v350, %v354
        %v356 = vlaneseq
        %v357 = vshrl.u32 %v356, 7
        %v358 = vsub.s32 1, %v357
        %v359 = vrot.slane %v350, %v358
        %v360 = vlaneseq
        %v361 = vshrl.u32 %v360, 7
        %v362 = vsub.s32 2, %v361
        %v363 = vrot.slane %v350, %v362
        %v364 = vlaneseq
        %v365 = vshrl.u32 %v364, 7
        %v366 = vsub.s32 3, %v365
        %v367 = vrot.slane %v350, %v366
        %v380 = vunpack.c.l.b16 %v342
        %v381 = vunpack.c.h.b16 %v342
        %v382 = vunpack.c.l.b16 %v343
        %v383 = vunpack.c.h.b16 %v343
        %v384 = vunpack.c.l.b16 %v344
        %v385 = vunpack.c.h.b16 %v344
        %v386 = vunpack.c.l.b16 %v345
        %v387 = vunpack.c.h.b16 %v345
        %v388 = vunpack.c.l.b16 %v346
        %v389 = vunpack.c.h.b16 %v346
        %v390 = vunpack.c.l.b16 %v347
        %v391 = vunpack.c.h.b16 %v347
        %v392 = vunpack.c.l.b16 %v348
        %v393 = vunpack.c.h.b16 %v348
        %v394 = vunpack.c.l.b16 %v349
        %v395 = vunpack.c.h.b16 %v349
        %v396 = vpack.c.b16 %v384, %v380
        %v397 = vpack.c.b16 %v385, %v381
        %v398 = vpack.c.b16 %v386, %v382
        %v399 = vpack.c.b16 %v387, %v383
        %v400 = vpack.c.b16 %v392, %v388
        %v401 = vpack.c.b16 %v393, %v389
        %v402 = vpack.c.b16 %v394, %v390
        %v403 = vpack.c.b16 %v395, %v391
        %vm412 = vcmask 261120
        %v414 = vsel %vm412, %v334, 0
        %v417 = vsel %vm412, %v335, 0
        %v420 = vsel %vm412, %v336, 0
        %v423 = vsel %vm412, %v337, 0
        %v426 = vsel %vm412, %v338, 0
        %v429 = vsel %vm412, %v339, 0
        %v432 = vsel %vm412, %v340, 0
        %v435 = vsel %vm412, %v341, 0
        %437 = vmatprep.subr.bf16.mxu0 0
        %438 = vmatpush1.bf16.msra.mxu0 0
        %439 = vmatprep.subr.bf16.mxu0 0
        %440 = vmatpush1.bf16.msra.mxu0 0
        %441 = vmatprep.subr.bf16.mxu0 0
        %442 = vmatpush1.bf16.msra.mxu0 0
        %443 = vmatprep.subr.bf16.mxu0 0
        %444 = vmatpush1.bf16.msra.mxu0 0
        %445 = vmatprep.subr.bf16.mxu0 0
        %446 = vmatpush1.bf16.msra.mxu0 0
        %447 = vmatprep.subr.bf16.mxu0 0
        %448 = vmatpush1.bf16.msra.mxu0 0
        %449 = vmatprep.subr.bf16.mxu0 %v401
        %450 = vmatpush1.bf16.msra.mxu0 %v400
        %451 = vmatprep.subr.bf16.mxu0 %v397
        %452 = vmatpush1.bf16.msra.mxu0 %v396
        %453 = vmatprep.subr.bf16.mxu0 0
        %454 = vmatpush2.bf16.msra.mxu0 0
        %455 = vmatprep.subr.bf16.mxu0 0
        %456 = vmatpush2.bf16.msra.mxu0 0
        %457 = vmatprep.subr.bf16.mxu0 0
        %458 = vmatpush2.bf16.msra.mxu0 0
        %459 = vmatprep.subr.bf16.mxu0 0
        %460 = vmatpush2.bf16.msra.mxu0 0
        %461 = vmatprep.subr.bf16.mxu0 0
        %462 = vmatpush2.bf16.msra.mxu0 0
        %463 = vmatprep.subr.bf16.mxu0 0
        %464 = vmatpush2.bf16.msra.mxu0 0
        %465 = vmatprep.subr.bf16.mxu0 0
        %466 = vmatpush2.bf16.msra.mxu0 0
        %467 = vmatprep.subr.bf16.mxu0 0
        %468 = vmatpush2.bf16.msra.mxu0 0
        %469 = vmatprep.mubr.bf16.mxu0 0
        %470 = vmatmul.mubr.bf16.gmra.mxu0 %v414
        %v471 = vpop.f32.mrf.mxu0
        %v472 = vadd.f32 %v355, %v471
        %v473 = vpop.f32.mrf.mxu0
        %v474 = vadd.f32 %v359, %v473
        %v475 = vpop.f32.mrf.mxu0
        %v476 = vadd.f32 %v355, %v475
        %v477 = vpop.f32.mrf.mxu0
        %v478 = vadd.f32 %v359, %v477
        %479 = vmatprep.mubr.bf16.mxu0 0
        %480 = vmatmul.mubr.bf16.gmra.mxu0 %v417
        %v481 = vpop.f32.mrf.mxu0
        %v482 = vadd.f32 %v355, %v481
        %v483 = vpop.f32.mrf.mxu0
        %v484 = vadd.f32 %v359, %v483
        %v485 = vpop.f32.mrf.mxu0
        %v486 = vadd.f32 %v355, %v485
        %v487 = vpop.f32.mrf.mxu0
        %v488 = vadd.f32 %v359, %v487
        %489 = vmatprep.mubr.bf16.mxu0 0
        %490 = vmatmul.mubr.bf16.gmra.mxu0 %v420
        %v491 = vpop.f32.mrf.mxu0
        %v492 = vadd.f32 %v355, %v491
        %v493 = vpop.f32.mrf.mxu0
        %v494 = vadd.f32 %v359, %v493
        %v495 = vpop.f32.mrf.mxu0
        %v496 = vadd.f32 %v355, %v495
        %v497 = vpop.f32.mrf.mxu0
        %v498 = vadd.f32 %v359, %v497
        %499 = vmatprep.mubr.bf16.mxu0 0
        %500 = vmatmul.mubr.bf16.gmra.mxu0 %v423
        %v501 = vpop.f32.mrf.mxu0
        %v502 = vadd.f32 %v355, %v501
        %v503 = vpop.f32.mrf.mxu0
        %v504 = vadd.f32 %v359, %v503
        %v505 = vpop.f32.mrf.mxu0
        %v506 = vadd.f32 %v355, %v505
        %v507 = vpop.f32.mrf.mxu0
        %v508 = vadd.f32 %v359, %v507
        %509 = vmatprep.mubr.bf16.mxu0 0
        %510 = vmatmul.mubr.bf16.gmra.mxu0 %v426
        %v511 = vpop.f32.mrf.mxu0
        %v512 = vadd.f32 %v355, %v511
        %v513 = vpop.f32.mrf.mxu0
        %v514 = vadd.f32 %v359, %v513
        %v515 = vpop.f32.mrf.mxu0
        %v516 = vadd.f32 %v355, %v515
        %v517 = vpop.f32.mrf.mxu0
        %v518 = vadd.f32 %v359, %v517
        %519 = vmatprep.mubr.bf16.mxu0 0
        %520 = vmatmul.mubr.bf16.gmra.mxu0 %v429
        %v521 = vpop.f32.mrf.mxu0
        %v522 = vadd.f32 %v355, %v521
        %v523 = vpop.f32.mrf.mxu0
        %v524 = vadd.f32 %v359, %v523
        %v525 = vpop.f32.mrf.mxu0
        %v526 = vadd.f32 %v355, %v525
        %v527 = vpop.f32.mrf.mxu0
        %v528 = vadd.f32 %v359, %v527
        %529 = vmatprep.mubr.bf16.mxu0 0
        %530 = vmatmul.mubr.bf16.gmra.mxu0 %v432
        %v531 = vpop.f32.mrf.mxu0
        %v532 = vadd.f32 %v355, %v531
        %v533 = vpop.f32.mrf.mxu0
        %v534 = vadd.f32 %v359, %v533
        %v535 = vpop.f32.mrf.mxu0
        %v536 = vadd.f32 %v355, %v535
        %v537 = vpop.f32.mrf.mxu0
        %v538 = vadd.f32 %v359, %v537
        %539 = vmatprep.mubr.bf16.mxu0 0
        %540 = vmatmul.mubr.bf16.gmra.mxu0 %v435
        %v541 = vpop.f32.mrf.mxu0
        %v542 = vadd.f32 %v355, %v541
        %v543 = vpop.f32.mrf.mxu0
        %v544 = vadd.f32 %v359, %v543
        %v545 = vpop.f32.mrf.mxu0
        %v546 = vadd.f32 %v355, %v545
        %v547 = vpop.f32.mrf.mxu0
        %v548 = vadd.f32 %v359, %v547
        %549 = vdwg.mxu0
        %550 = vmatprep.subr.bf16.mxu0 0
        %551 = vmatpush1.bf16.msra.mxu0 0
        %552 = vmatprep.subr.bf16.mxu0 0
        %553 = vmatpush1.bf16.msra.mxu0 0
        %554 = vmatprep.subr.bf16.mxu0 0
        %555 = vmatpush1.bf16.msra.mxu0 0
        %556 = vmatprep.subr.bf16.mxu0 0
        %557 = vmatpush1.bf16.msra.mxu0 0
        %558 = vmatprep.subr.bf16.mxu0 0
        %559 = vmatpush1.bf16.msra.mxu0 0
        %560 = vmatprep.subr.bf16.mxu0 0
        %561 = vmatpush1.bf16.msra.mxu0 0
        %562 = vmatprep.subr.bf16.mxu0 %v403
        %563 = vmatpush1.bf16.msra.mxu0 %v402
        %564 = vmatprep.subr.bf16.mxu0 %v399
        %565 = vmatpush1.bf16.msra.mxu0 %v398
        %566 = vmatprep.subr.bf16.mxu0 0
        %567 = vmatpush2.bf16.msra.mxu0 0
        %568 = vmatprep.subr.bf16.mxu0 0
        %569 = vmatpush2.bf16.msra.mxu0 0
        %570 = vmatprep.subr.bf16.mxu0 0
        %571 = vmatpush2.bf16.msra.mxu0 0
        %572 = vmatprep.subr.bf16.mxu0 0
        %573 = vmatpush2.bf16.msra.mxu0 0
        %574 = vmatprep.subr.bf16.mxu0 0
        %575 = vmatpush2.bf16.msra.mxu0 0
        %576 = vmatprep.subr.bf16.mxu0 0
        %577 = vmatpush2.bf16.msra.mxu0 0
        %578 = vmatprep.subr.bf16.mxu0 0
        %579 = vmatpush2.bf16.msra.mxu0 0
        %580 = vmatprep.subr.bf16.mxu0 0
        %581 = vmatpush2.bf16.msra.mxu0 0
        %582 = vmatprep.mubr.bf16.mxu0 0
        %583 = vmatmul.mubr.bf16.gmra.mxu0 %v414
        %v584 = vpop.f32.mrf.mxu0
        %v585 = vadd.f32 %v363, %v584
        %v586 = vpop.f32.mrf.mxu0
        %v587 = vadd.f32 %v367, %v586
        %v588 = vpop.f32.mrf.mxu0
        %v589 = vadd.f32 %v363, %v588
        %v590 = vpop.f32.mrf.mxu0
        %v591 = vadd.f32 %v367, %v590
        %592 = vmatprep.mubr.bf16.mxu0 0
        %593 = vmatmul.mubr.bf16.gmra.mxu0 %v417
        %v594 = vpop.f32.mrf.mxu0
        %v595 = vadd.f32 %v363, %v594
        %v596 = vpop.f32.mrf.mxu0
        %v597 = vadd.f32 %v367, %v596
        %v598 = vpop.f32.mrf.mxu0
        %v599 = vadd.f32 %v363, %v598
        %v600 = vpop.f32.mrf.mxu0
        %v601 = vadd.f32 %v367, %v600
        %602 = vmatprep.mubr.bf16.mxu0 0
        %603 = vmatmul.mubr.bf16.gmra.mxu0 %v420
        %v604 = vpop.f32.mrf.mxu0
        %v605 = vadd.f32 %v363, %v604
        %v606 = vpop.f32.mrf.mxu0
        %v607 = vadd.f32 %v367, %v606
        %v608 = vpop.f32.mrf.mxu0
        %v609 = vadd.f32 %v363, %v608
        %v610 = vpop.f32.mrf.mxu0
        %v611 = vadd.f32 %v367, %v610
        %612 = vmatprep.mubr.bf16.mxu0 0
        %613 = vmatmul.mubr.bf16.gmra.mxu0 %v423
        %v614 = vpop.f32.mrf.mxu0
        %v615 = vadd.f32 %v363, %v614
        %v616 = vpop.f32.mrf.mxu0
        %v617 = vadd.f32 %v367, %v616
        %v618 = vpop.f32.mrf.mxu0
        %v619 = vadd.f32 %v363, %v618
        %v620 = vpop.f32.mrf.mxu0
        %v621 = vadd.f32 %v367, %v620
        %622 = vmatprep.mubr.bf16.mxu0 0
        %623 = vmatmul.mubr.bf16.gmra.mxu0 %v426
        %v624 = vpop.f32.mrf.mxu0
        %v625 = vadd.f32 %v363, %v624
        %v626 = vpop.f32.mrf.mxu0
        %v627 = vadd.f32 %v367, %v626
        %v628 = vpop.f32.mrf.mxu0
        %v629 = vadd.f32 %v363, %v628
        %v630 = vpop.f32.mrf.mxu0
        %v631 = vadd.f32 %v367, %v630
        %632 = vmatprep.mubr.bf16.mxu0 0
        %633 = vmatmul.mubr.bf16.gmra.mxu0 %v429
        %v634 = vpop.f32.mrf.mxu0
        %v635 = vadd.f32 %v363, %v634
        %v636 = vpop.f32.mrf.mxu0
        %v637 = vadd.f32 %v367, %v636
        %v638 = vpop.f32.mrf.mxu0
        %v639 = vadd.f32 %v363, %v638
        %v640 = vpop.f32.mrf.mxu0
        %v641 = vadd.f32 %v367, %v640
        %642 = vmatprep.mubr.bf16.mxu0 0
        %643 = vmatmul.mubr.bf16.gmra.mxu0 %v432
        %v644 = vpop.f32.mrf.mxu0
        %v645 = vadd.f32 %v363, %v644
        %v646 = vpop.f32.mrf.mxu0
        %v647 = vadd.f32 %v367, %v646
        %v648 = vpop.f32.mrf.mxu0
        %v649 = vadd.f32 %v363, %v648
        %v650 = vpop.f32.mrf.mxu0
        %v651 = vadd.f32 %v367, %v650
        %652 = vmatprep.mubr.bf16.mxu0 0
        %653 = vmatmul.mubr.bf16.gmra.mxu0 %v435
        %v654 = vpop.f32.mrf.mxu0
        %v655 = vadd.f32 %v363, %v654
        %v656 = vpop.f32.mrf.mxu0
        %v657 = vadd.f32 %v367, %v656
        %v658 = vpop.f32.mrf.mxu0
        %v659 = vadd.f32 %v363, %v658
        %v660 = vpop.f32.mrf.mxu0
        %v661 = vadd.f32 %v367, %v660
        %662 = vdwg.mxu0
        %s663 = scalar_lea.vmem %s5, 1
        %v664 = vld [vmem:[%s663] ss:$8 sm:$0xf]
        %s665 = scalar_lea.vmem %s5, 2
        %v666 = vld [vmem:[%s665] ss:$8 sm:$0xf]
        %v667 = vadd.f32 %v472, %v474
        %v668 = vadd.f32 %v667, %v585
        %v669 = vadd.f32 %v668, %v587
        %670 = vadd.xlane.f32.xlu0 %v669
        %v671 = vpop.xlane.xlu0 %670
        %v672 = vadd.f32 %v476, %v478
        %v673 = vadd.f32 %v672, %v589
        %v674 = vadd.f32 %v673, %v591
        %675 = vadd.xlane.f32.xlu0 %v674
        %v676 = vpop.xlane.xlu0 %675
        %v677 = vadd.f32 %v482, %v484
        %v678 = vadd.f32 %v677, %v595
        %v679 = vadd.f32 %v678, %v597
        %680 = vadd.xlane.f32.xlu0 %v679
        %v681 = vpop.xlane.xlu0 %680
        %v682 = vadd.f32 %v486, %v488
        %v683 = vadd.f32 %v682, %v599
        %v684 = vadd.f32 %v683, %v601
        %685 = vadd.xlane.f32.xlu0 %v684
        %v686 = vpop.xlane.xlu0 %685
        %v687 = vadd.f32 %v492, %v494
        %v688 = vadd.f32 %v687, %v605
        %v689 = vadd.f32 %v688, %v607
        %690 = vadd.xlane.f32.xlu0 %v689
        %v691 = vpop.xlane.xlu0 %690
        %v692 = vadd.f32 %v496, %v498
        %v693 = vadd.f32 %v692, %v609
        %v694 = vadd.f32 %v693, %v611
        %695 = vadd.xlane.f32.xlu0 %v694
        %v696 = vpop.xlane.xlu0 %695
        %v697 = vadd.f32 %v502, %v504
        %v698 = vadd.f32 %v697, %v615
        %v699 = vadd.f32 %v698, %v617
        %700 = vadd.xlane.f32.xlu0 %v699
        %v701 = vpop.xlane.xlu0 %700
        %v702 = vadd.f32 %v506, %v508
        %v703 = vadd.f32 %v702, %v619
        %v704 = vadd.f32 %v703, %v621
        %705 = vadd.xlane.f32.xlu0 %v704
        %v706 = vpop.xlane.xlu0 %705
        %v707 = vadd.f32 %v512, %v514
        %v708 = vadd.f32 %v707, %v625
        %v709 = vadd.f32 %v708, %v627
        %710 = vadd.xlane.f32.xlu0 %v709
        %v711 = vpop.xlane.xlu0 %710
        %v712 = vadd.f32 %v516, %v518
        %v713 = vadd.f32 %v712, %v629
        %v714 = vadd.f32 %v713, %v631
        %715 = vadd.xlane.f32.xlu0 %v714
        %v716 = vpop.xlane.xlu0 %715
        %v717 = vadd.f32 %v522, %v524
        %v718 = vadd.f32 %v717, %v635
        %v719 = vadd.f32 %v718, %v637
        %720 = vadd.xlane.f32.xlu0 %v719
        %v721 = vpop.xlane.xlu0 %720
        %v722 = vadd.f32 %v526, %v528
        %v723 = vadd.f32 %v722, %v639
        %v724 = vadd.f32 %v723, %v641
        %725 = vadd.xlane.f32.xlu0 %v724
        %v726 = vpop.xlane.xlu0 %725
        %v727 = vadd.f32 %v532, %v534
        %v728 = vadd.f32 %v727, %v645
        %v729 = vadd.f32 %v728, %v647
        %730 = vadd.xlane.f32.xlu0 %v729
        %v731 = vpop.xlane.xlu0 %730
        %v732 = vadd.f32 %v536, %v538
        %v733 = vadd.f32 %v732, %v649
        %v734 = vadd.f32 %v733, %v651
        %735 = vadd.xlane.f32.xlu0 %v734
        %v736 = vpop.xlane.xlu0 %735
        %v737 = vadd.f32 %v542, %v544
        %v738 = vadd.f32 %v737, %v655
        %v739 = vadd.f32 %v738, %v657
        %740 = vadd.xlane.f32.xlu0 %v739
        %v741 = vpop.xlane.xlu0 %740
        %v742 = vadd.f32 %v546, %v548
        %v743 = vadd.f32 %v742, %v659
        %v744 = vadd.f32 %v743, %v661
        %745 = vadd.xlane.f32.xlu0 %v744
        %v746 = vpop.xlane.xlu0 %745
        %v747 = vmul.f32 %v671, 0.0025
        %v748 = vmul.f32 %v676, 0.0025
        %v749 = vmul.f32 %v681, 0.0025
        %v750 = vmul.f32 %v686, 0.0025
        %v751 = vmul.f32 %v691, 0.0025
        %v752 = vmul.f32 %v696, 0.0025
        %v753 = vmul.f32 %v701, 0.0025
        %v754 = vmul.f32 %v706, 0.0025
        %v755 = vmul.f32 %v711, 0.0025
        %v756 = vmul.f32 %v716, 0.0025
        %v757 = vmul.f32 %v721, 0.0025
        %v758 = vmul.f32 %v726, 0.0025
        %v759 = vmul.f32 %v731, 0.0025
        %v760 = vmul.f32 %v736, 0.0025
        %v761 = vmul.f32 %v741, 0.0025
        %v762 = vmul.f32 %v746, 0.0025
        %v763 = vmul.f32 %v472, %v472
        %v764 = vmul.f32 %v474, %v474
        %v765 = vmul.f32 %v585, %v585
        %v766 = vmul.f32 %v587, %v587
        %v767 = vmul.f32 %v476, %v476
        %v768 = vmul.f32 %v478, %v478
        %v769 = vmul.f32 %v589, %v589
        %v770 = vmul.f32 %v591, %v591
        %v771 = vmul.f32 %v482, %v482
        %v772 = vmul.f32 %v484, %v484
        %v773 = vmul.f32 %v595, %v595
        %v774 = vmul.f32 %v597, %v597
        %v775 = vmul.f32 %v486, %v486
        %v776 = vmul.f32 %v488, %v488
        %v777 = vmul.f32 %v599, %v599
        %v778 = vmul.f32 %v601, %v601
        %v779 = vmul.f32 %v492, %v492
        %v780 = vmul.f32 %v494, %v494
        %v781 = vmul.f32 %v605, %v605
        %v782 = vmul.f32 %v607, %v607
        %v783 = vmul.f32 %v496, %v496
        %v784 = vmul.f32 %v498, %v498
        %v785 = vmul.f32 %v609, %v609
        %v786 = vmul.f32 %v611, %v611
        %v787 = vmul.f32 %v502, %v502
        %v788 = vmul.f32 %v504, %v504
        %v789 = vmul.f32 %v615, %v615
        %v790 = vmul.f32 %v617, %v617
        %v791 = vmul.f32 %v506, %v506
        %v792 = vmul.f32 %v508, %v508
        %v793 = vmul.f32 %v619, %v619
        %v794 = vmul.f32 %v621, %v621
        %v795 = vmul.f32 %v512, %v512
        %v796 = vmul.f32 %v514, %v514
        %v797 = vmul.f32 %v625, %v625
        %v798 = vmul.f32 %v627, %v627
        %v799 = vmul.f32 %v516, %v516
        %v800 = vmul.f32 %v518, %v518
        %v801 = vmul.f32 %v629, %v629
        %v802 = vmul.f32 %v631, %v631
        %v803 = vmul.f32 %v522, %v522
        %v804 = vmul.f32 %v524, %v524
        %v805 = vmul.f32 %v635, %v635
        %v806 = vmul.f32 %v637, %v637
        %v807 = vmul.f32 %v526, %v526
        %v808 = vmul.f32 %v528, %v528
        %v809 = vmul.f32 %v639, %v639
        %v810 = vmul.f32 %v641, %v641
        %v811 = vmul.f32 %v532, %v532
        %v812 = vmul.f32 %v534, %v534
        %v813 = vmul.f32 %v645, %v645
        %v814 = vmul.f32 %v647, %v647
        %v815 = vmul.f32 %v536, %v536
        %v816 = vmul.f32 %v538, %v538
        %v817 = vmul.f32 %v649, %v649
        %v818 = vmul.f32 %v651, %v651
        %v819 = vmul.f32 %v542, %v542
        %v820 = vmul.f32 %v544, %v544
        %v821 = vmul.f32 %v655, %v655
        %v822 = vmul.f32 %v657, %v657
        %v823 = vmul.f32 %v546, %v546
        %v824 = vmul.f32 %v548, %v548
        %v825 = vmul.f32 %v659, %v659
        %v826 = vmul.f32 %v661, %v661
        %v827 = vadd.f32 %v763, %v764
        %v828 = vadd.f32 %v827, %v765
        %v829 = vadd.f32 %v828, %v766
        %830 = vadd.xlane.f32.xlu0 %v829
        %v831 = vpop.xlane.xlu0 %830
        %v832 = vadd.f32 %v767, %v768
        %v833 = vadd.f32 %v832, %v769
        %v834 = vadd.f32 %v833, %v770
        %835 = vadd.xlane.f32.xlu0 %v834
        %v836 = vpop.xlane.xlu0 %835
        %v837 = vadd.f32 %v771, %v772
        %v838 = vadd.f32 %v837, %v773
        %v839 = vadd.f32 %v838, %v774
        %840 = vadd.xlane.f32.xlu0 %v839
        %v841 = vpop.xlane.xlu0 %840
        %v842 = vadd.f32 %v775, %v776
        %v843 = vadd.f32 %v842, %v777
        %v844 = vadd.f32 %v843, %v778
        %845 = vadd.xlane.f32.xlu0 %v844
        %v846 = vpop.xlane.xlu0 %845
        %v847 = vadd.f32 %v779, %v780
        %v848 = vadd.f32 %v847, %v781
        %v849 = vadd.f32 %v848, %v782
        %850 = vadd.xlane.f32.xlu0 %v849
        %v851 = vpop.xlane.xlu0 %850
        %v852 = vadd.f32 %v783, %v784
        %v853 = vadd.f32 %v852, %v785
        %v854 = vadd.f32 %v853, %v786
        %855 = vadd.xlane.f32.xlu0 %v854
        %v856 = vpop.xlane.xlu0 %855
        %v857 = vadd.f32 %v787, %v788
        %v858 = vadd.f32 %v857, %v789
        %v859 = vadd.f32 %v858, %v790
        %860 = vadd.xlane.f32.xlu0 %v859
        %v861 = vpop.xlane.xlu0 %860
        %v862 = vadd.f32 %v791, %v792
        %v863 = vadd.f32 %v862, %v793
        %v864 = vadd.f32 %v863, %v794
        %865 = vadd.xlane.f32.xlu0 %v864
        %v866 = vpop.xlane.xlu0 %865
        %v867 = vadd.f32 %v795, %v796
        %v868 = vadd.f32 %v867, %v797
        %v869 = vadd.f32 %v868, %v798
        %870 = vadd.xlane.f32.xlu0 %v869
        %v871 = vpop.xlane.xlu0 %870
        %v872 = vadd.f32 %v799, %v800
        %v873 = vadd.f32 %v872, %v801
        %v874 = vadd.f32 %v873, %v802
        %875 = vadd.xlane.f32.xlu0 %v874
        %v876 = vpop.xlane.xlu0 %875
        %v877 = vadd.f32 %v803, %v804
        %v878 = vadd.f32 %v877, %v805
        %v879 = vadd.f32 %v878, %v806
        %880 = vadd.xlane.f32.xlu0 %v879
        %v881 = vpop.xlane.xlu0 %880
        %v882 = vadd.f32 %v807, %v808
        %v883 = vadd.f32 %v882, %v809
        %v884 = vadd.f32 %v883, %v810
        %885 = vadd.xlane.f32.xlu0 %v884
        %v886 = vpop.xlane.xlu0 %885
        %v887 = vadd.f32 %v811, %v812
        %v888 = vadd.f32 %v887, %v813
        %v889 = vadd.f32 %v888, %v814
        %890 = vadd.xlane.f32.xlu0 %v889
        %v891 = vpop.xlane.xlu0 %890
        %v892 = vadd.f32 %v815, %v816
        %v893 = vadd.f32 %v892, %v817
        %v894 = vadd.f32 %v893, %v818
        %895 = vadd.xlane.f32.xlu0 %v894
        %v896 = vpop.xlane.xlu0 %895
        %v897 = vadd.f32 %v819, %v820
        %v898 = vadd.f32 %v897, %v821
        %v899 = vadd.f32 %v898, %v822
        %900 = vadd.xlane.f32.xlu0 %v899
        %v901 = vpop.xlane.xlu0 %900
        %v902 = vadd.f32 %v823, %v824
        %v903 = vadd.f32 %v902, %v825
        %v904 = vadd.f32 %v903, %v826
        %905 = vadd.xlane.f32.xlu0 %v904
        %v906 = vpop.xlane.xlu0 %905
        %v907 = vmul.f32 %v831, 0.0025
        %v908 = vmul.f32 %v836, 0.0025
        %v909 = vmul.f32 %v841, 0.0025
        %v910 = vmul.f32 %v846, 0.0025
        %v911 = vmul.f32 %v851, 0.0025
        %v912 = vmul.f32 %v856, 0.0025
        %v913 = vmul.f32 %v861, 0.0025
        %v914 = vmul.f32 %v866, 0.0025
        %v915 = vmul.f32 %v871, 0.0025
        %v916 = vmul.f32 %v876, 0.0025
        %v917 = vmul.f32 %v881, 0.0025
        %v918 = vmul.f32 %v886, 0.0025
        %v919 = vmul.f32 %v891, 0.0025
        %v920 = vmul.f32 %v896, 0.0025
        %v921 = vmul.f32 %v901, 0.0025
        %v922 = vmul.f32 %v906, 0.0025
        %v923 = vmul.f32 %v747, %v747
        %v924 = vmul.f32 %v748, %v748
        %v925 = vmul.f32 %v749, %v749
        %v926 = vmul.f32 %v750, %v750
        %v927 = vmul.f32 %v751, %v751
        %v928 = vmul.f32 %v752, %v752
        %v929 = vmul.f32 %v753, %v753
        %v930 = vmul.f32 %v754, %v754
        %v931 = vmul.f32 %v755, %v755
        %v932 = vmul.f32 %v756, %v756
        %v933 = vmul.f32 %v757, %v757
        %v934 = vmul.f32 %v758, %v758
        %v935 = vmul.f32 %v759, %v759
        %v936 = vmul.f32 %v760, %v760
        %v937 = vmul.f32 %v761, %v761
        %v938 = vmul.f32 %v762, %v762
        %v939 = vsub.f32 %v907, %v923
        %v940 = vsub.f32 %v908, %v924
        %v941 = vsub.f32 %v909, %v925
        %v942 = vsub.f32 %v910, %v926
        %v943 = vsub.f32 %v911, %v927
        %v944 = vsub.f32 %v912, %v928
        %v945 = vsub.f32 %v913, %v929
        %v946 = vsub.f32 %v914, %v930
        %v947 = vsub.f32 %v915, %v931
        %v948 = vsub.f32 %v916, %v932
        %v949 = vsub.f32 %v917, %v933
        %v950 = vsub.f32 %v918, %v934
        %v951 = vsub.f32 %v919, %v935
        %v952 = vsub.f32 %v920, %v936
        %v953 = vsub.f32 %v921, %v937
        %v954 = vsub.f32 %v922, %v938
        %v955 = vmax.f32 %v939, 0.0
        %v956 = vmax.f32 %v940, 0.0
        %v957 = vmax.f32 %v941, 0.0
        %v958 = vmax.f32 %v942, 0.0
        %v959 = vmax.f32 %v943, 0.0
        %v960 = vmax.f32 %v944, 0.0
        %v961 = vmax.f32 %v945, 0.0
        %v962 = vmax.f32 %v946, 0.0
        %v963 = vmax.f32 %v947, 0.0
        %v964 = vmax.f32 %v948, 0.0
        %v965 = vmax.f32 %v949, 0.0
        %v966 = vmax.f32 %v950, 0.0
        %v967 = vmax.f32 %v951, 0.0
        %v968 = vmax.f32 %v952, 0.0
        %v969 = vmax.f32 %v953, 0.0
        %v970 = vmax.f32 %v954, 0.0
        %v971 = vsub.f32 %v472, %v747
        %v972 = vsub.f32 %v474, %v747
        %v973 = vsub.f32 %v585, %v747
        %v974 = vsub.f32 %v587, %v747
        %v975 = vsub.f32 %v476, %v748
        %v976 = vsub.f32 %v478, %v748
        %v977 = vsub.f32 %v589, %v748
        %v978 = vsub.f32 %v591, %v748
        %v979 = vsub.f32 %v482, %v749
        %v980 = vsub.f32 %v484, %v749
        %v981 = vsub.f32 %v595, %v749
        %v982 = vsub.f32 %v597, %v749
        %v983 = vsub.f32 %v486, %v750
        %v984 = vsub.f32 %v488, %v750
        %v985 = vsub.f32 %v599, %v750
        %v986 = vsub.f32 %v601, %v750
        %v987 = vsub.f32 %v492, %v751
        %v988 = vsub.f32 %v494, %v751
        %v989 = vsub.f32 %v605, %v751
        %v990 = vsub.f32 %v607, %v751
        %v991 = vsub.f32 %v496, %v752
        %v992 = vsub.f32 %v498, %v752
        %v993 = vsub.f32 %v609, %v752
        %v994 = vsub.f32 %v611, %v752
        %v995 = vsub.f32 %v502, %v753
        %v996 = vsub.f32 %v504, %v753
        %v997 = vsub.f32 %v615, %v753
        %v998 = vsub.f32 %v617, %v753
        %v999 = vsub.f32 %v506, %v754
        %v1000 = vsub.f32 %v508, %v754
        %v1001 = vsub.f32 %v619, %v754
        %v1002 = vsub.f32 %v621, %v754
        %v1003 = vsub.f32 %v512, %v755
        %v1004 = vsub.f32 %v514, %v755
        %v1005 = vsub.f32 %v625, %v755
        %v1006 = vsub.f32 %v627, %v755
        %v1007 = vsub.f32 %v516, %v756
        %v1008 = vsub.f32 %v518, %v756
        %v1009 = vsub.f32 %v629, %v756
        %v1010 = vsub.f32 %v631, %v756
        %v1011 = vsub.f32 %v522, %v757
        %v1012 = vsub.f32 %v524, %v757
        %v1013 = vsub.f32 %v635, %v757
        %v1014 = vsub.f32 %v637, %v757
        %v1015 = vsub.f32 %v526, %v758
        %v1016 = vsub.f32 %v528, %v758
        %v1017 = vsub.f32 %v639, %v758
        %v1018 = vsub.f32 %v641, %v758
        %v1019 = vsub.f32 %v532, %v759
        %v1020 = vsub.f32 %v534, %v759
        %v1021 = vsub.f32 %v645, %v759
        %v1022 = vsub.f32 %v647, %v759
        %v1023 = vsub.f32 %v536, %v760
        %v1024 = vsub.f32 %v538, %v760
        %v1025 = vsub.f32 %v649, %v760
        %v1026 = vsub.f32 %v651, %v760
        %v1027 = vsub.f32 %v542, %v761
        %v1028 = vsub.f32 %v544, %v761
        %v1029 = vsub.f32 %v655, %v761
        %v1030 = vsub.f32 %v657, %v761
        %v1031 = vsub.f32 %v546, %v762
        %v1032 = vsub.f32 %v548, %v762
        %v1033 = vsub.f32 %v659, %v762
        %v1034 = vsub.f32 %v661, %v762
        %v1035 = vadd.f32 %v955, 1e-05
        %v1036 = vadd.f32 %v956, 1e-05
        %v1037 = vadd.f32 %v957, 1e-05
        %v1038 = vadd.f32 %v958, 1e-05
        %v1039 = vadd.f32 %v959, 1e-05
        %v1040 = vadd.f32 %v960, 1e-05
        %v1041 = vadd.f32 %v961, 1e-05
        %v1042 = vadd.f32 %v962, 1e-05
        %v1043 = vadd.f32 %v963, 1e-05
        %v1044 = vadd.f32 %v964, 1e-05
        %v1045 = vadd.f32 %v965, 1e-05
        %v1046 = vadd.f32 %v966, 1e-05
        %v1047 = vadd.f32 %v967, 1e-05
        %v1048 = vadd.f32 %v968, 1e-05
        %v1049 = vadd.f32 %v969, 1e-05
        %v1050 = vadd.f32 %v970, 1e-05
        %v1051 = vrsqrt.pop %v1035
        %v1052 = vrsqrt.pop %v1036
        %v1053 = vrsqrt.pop %v1037
        %v1054 = vrsqrt.pop %v1038
        %v1055 = vrsqrt.pop %v1039
        %v1056 = vrsqrt.pop %v1040
        %v1057 = vrsqrt.pop %v1041
        %v1058 = vrsqrt.pop %v1042
        %v1059 = vrsqrt.pop %v1043
        %v1060 = vrsqrt.pop %v1044
        %v1061 = vrsqrt.pop %v1045
        %v1062 = vrsqrt.pop %v1046
        %v1063 = vrsqrt.pop %v1047
        %v1064 = vrsqrt.pop %v1048
        %v1065 = vrsqrt.pop %v1049
        %v1066 = vrsqrt.pop %v1050
        %v1067 = vmul.f32 %v971, %v1051
        %v1068 = vmul.f32 %v972, %v1051
        %v1069 = vmul.f32 %v973, %v1051
        %v1070 = vmul.f32 %v974, %v1051
        %v1071 = vmul.f32 %v975, %v1052
        %v1072 = vmul.f32 %v976, %v1052
        %v1073 = vmul.f32 %v977, %v1052
        %v1074 = vmul.f32 %v978, %v1052
        %v1075 = vmul.f32 %v979, %v1053
        %v1076 = vmul.f32 %v980, %v1053
        %v1077 = vmul.f32 %v981, %v1053
        %v1078 = vmul.f32 %v982, %v1053
        %v1079 = vmul.f32 %v983, %v1054
        %v1080 = vmul.f32 %v984, %v1054
        %v1081 = vmul.f32 %v985, %v1054
        %v1082 = vmul.f32 %v986, %v1054
        %v1083 = vmul.f32 %v987, %v1055
        %v1084 = vmul.f32 %v988, %v1055
        %v1085 = vmul.f32 %v989, %v1055
        %v1086 = vmul.f32 %v990, %v1055
        %v1087 = vmul.f32 %v991, %v1056
        %v1088 = vmul.f32 %v992, %v1056
        %v1089 = vmul.f32 %v993, %v1056
        %v1090 = vmul.f32 %v994, %v1056
        %v1091 = vmul.f32 %v995, %v1057
        %v1092 = vmul.f32 %v996, %v1057
        %v1093 = vmul.f32 %v997, %v1057
        %v1094 = vmul.f32 %v998, %v1057
        %v1095 = vmul.f32 %v999, %v1058
        %v1096 = vmul.f32 %v1000, %v1058
        %v1097 = vmul.f32 %v1001, %v1058
        %v1098 = vmul.f32 %v1002, %v1058
        %v1099 = vmul.f32 %v1003, %v1059
        %v1100 = vmul.f32 %v1004, %v1059
        %v1101 = vmul.f32 %v1005, %v1059
        %v1102 = vmul.f32 %v1006, %v1059
        %v1103 = vmul.f32 %v1007, %v1060
        %v1104 = vmul.f32 %v1008, %v1060
        %v1105 = vmul.f32 %v1009, %v1060
        %v1106 = vmul.f32 %v1010, %v1060
        %v1107 = vmul.f32 %v1011, %v1061
        %v1108 = vmul.f32 %v1012, %v1061
        %v1109 = vmul.f32 %v1013, %v1061
        %v1110 = vmul.f32 %v1014, %v1061
        %v1111 = vmul.f32 %v1015, %v1062
        %v1112 = vmul.f32 %v1016, %v1062
        %v1113 = vmul.f32 %v1017, %v1062
        %v1114 = vmul.f32 %v1018, %v1062
        %v1115 = vmul.f32 %v1019, %v1063
        %v1116 = vmul.f32 %v1020, %v1063
        %v1117 = vmul.f32 %v1021, %v1063
        %v1118 = vmul.f32 %v1022, %v1063
        %v1119 = vmul.f32 %v1023, %v1064
        %v1120 = vmul.f32 %v1024, %v1064
        %v1121 = vmul.f32 %v1025, %v1064
        %v1122 = vmul.f32 %v1026, %v1064
        %v1123 = vmul.f32 %v1027, %v1065
        %v1124 = vmul.f32 %v1028, %v1065
        %v1125 = vmul.f32 %v1029, %v1065
        %v1126 = vmul.f32 %v1030, %v1065
        %v1127 = vmul.f32 %v1031, %v1066
        %v1128 = vmul.f32 %v1032, %v1066
        %v1129 = vmul.f32 %v1033, %v1066
        %v1130 = vmul.f32 %v1034, %v1066
        %v1132 = vlaneseq
        %v1133 = vshrl.u32 %v1132, 7
        %v1134 = vsub.s32 0, %v1133
        %v1135 = vrot.slane %v664, %v1134
        %v1136 = vlaneseq
        %v1137 = vshrl.u32 %v1136, 7
        %v1138 = vsub.s32 1, %v1137
        %v1139 = vrot.slane %v664, %v1138
        %v1140 = vlaneseq
        %v1141 = vshrl.u32 %v1140, 7
        %v1142 = vsub.s32 2, %v1141
        %v1143 = vrot.slane %v664, %v1142
        %v1144 = vlaneseq
        %v1145 = vshrl.u32 %v1144, 7
        %v1146 = vsub.s32 3, %v1145
        %v1147 = vrot.slane %v664, %v1146
        %v1152 = vmul.f32 %v1067, %v1135
        %v1153 = vmul.f32 %v1068, %v1139
        %v1154 = vmul.f32 %v1069, %v1143
        %v1155 = vmul.f32 %v1070, %v1147
        %v1156 = vmul.f32 %v1071, %v1135
        %v1157 = vmul.f32 %v1072, %v1139
        %v1158 = vmul.f32 %v1073, %v1143
        %v1159 = vmul.f32 %v1074, %v1147
        %v1160 = vmul.f32 %v1075, %v1135
        %v1161 = vmul.f32 %v1076, %v1139
        %v1162 = vmul.f32 %v1077, %v1143
        %v1163 = vmul.f32 %v1078, %v1147
        %v1164 = vmul.f32 %v1079, %v1135
        %v1165 = vmul.f32 %v1080, %v1139
        %v1166 = vmul.f32 %v1081, %v1143
        %v1167 = vmul.f32 %v1082, %v1147
        %v1168 = vmul.f32 %v1083, %v1135
        %v1169 = vmul.f32 %v1084, %v1139
        %v1170 = vmul.f32 %v1085, %v1143
        %v1171 = vmul.f32 %v1086, %v1147
        %v1172 = vmul.f32 %v1087, %v1135
        %v1173 = vmul.f32 %v1088, %v1139
        %v1174 = vmul.f32 %v1089, %v1143
        %v1175 = vmul.f32 %v1090, %v1147
        %v1176 = vmul.f32 %v1091, %v1135
        %v1177 = vmul.f32 %v1092, %v1139
        %v1178 = vmul.f32 %v1093, %v1143
        %v1179 = vmul.f32 %v1094, %v1147
        %v1180 = vmul.f32 %v1095, %v1135
        %v1181 = vmul.f32 %v1096, %v1139
        %v1182 = vmul.f32 %v1097, %v1143
        %v1183 = vmul.f32 %v1098, %v1147
        %v1184 = vmul.f32 %v1099, %v1135
        %v1185 = vmul.f32 %v1100, %v1139
        %v1186 = vmul.f32 %v1101, %v1143
        %v1187 = vmul.f32 %v1102, %v1147
        %v1188 = vmul.f32 %v1103, %v1135
        %v1189 = vmul.f32 %v1104, %v1139
        %v1190 = vmul.f32 %v1105, %v1143
        %v1191 = vmul.f32 %v1106, %v1147
        %v1192 = vmul.f32 %v1107, %v1135
        %v1193 = vmul.f32 %v1108, %v1139
        %v1194 = vmul.f32 %v1109, %v1143
        %v1195 = vmul.f32 %v1110, %v1147
        %v1196 = vmul.f32 %v1111, %v1135
        %v1197 = vmul.f32 %v1112, %v1139
        %v1198 = vmul.f32 %v1113, %v1143
        %v1199 = vmul.f32 %v1114, %v1147
        %v1200 = vmul.f32 %v1115, %v1135
        %v1201 = vmul.f32 %v1116, %v1139
        %v1202 = vmul.f32 %v1117, %v1143
        %v1203 = vmul.f32 %v1118, %v1147
        %v1204 = vmul.f32 %v1119, %v1135
        %v1205 = vmul.f32 %v1120, %v1139
        %v1206 = vmul.f32 %v1121, %v1143
        %v1207 = vmul.f32 %v1122, %v1147
        %v1208 = vmul.f32 %v1123, %v1135
        %v1209 = vmul.f32 %v1124, %v1139
        %v1210 = vmul.f32 %v1125, %v1143
        %v1211 = vmul.f32 %v1126, %v1147
        %v1212 = vmul.f32 %v1127, %v1135
        %v1213 = vmul.f32 %v1128, %v1139
        %v1214 = vmul.f32 %v1129, %v1143
        %v1215 = vmul.f32 %v1130, %v1147
        %v1217 = vlaneseq
        %v1218 = vshrl.u32 %v1217, 7
        %v1219 = vsub.s32 0, %v1218
        %v1220 = vrot.slane %v666, %v1219
        %v1221 = vlaneseq
        %v1222 = vshrl.u32 %v1221, 7
        %v1223 = vsub.s32 1, %v1222
        %v1224 = vrot.slane %v666, %v1223
        %v1225 = vlaneseq
        %v1226 = vshrl.u32 %v1225, 7
        %v1227 = vsub.s32 2, %v1226
        %v1228 = vrot.slane %v666, %v1227
        %v1229 = vlaneseq
        %v1230 = vshrl.u32 %v1229, 7
        %v1231 = vsub.s32 3, %v1230
        %v1232 = vrot.slane %v666, %v1231
        %v1237 = vadd.f32 %v1152, %v1220
        %v1238 = vadd.f32 %v1153, %v1224
        %v1239 = vadd.f32 %v1154, %v1228
        %v1240 = vadd.f32 %v1155, %v1232
        %v1241 = vadd.f32 %v1156, %v1220
        %v1242 = vadd.f32 %v1157, %v1224
        %v1243 = vadd.f32 %v1158, %v1228
        %v1244 = vadd.f32 %v1159, %v1232
        %v1245 = vadd.f32 %v1160, %v1220
        %v1246 = vadd.f32 %v1161, %v1224
        %v1247 = vadd.f32 %v1162, %v1228
        %v1248 = vadd.f32 %v1163, %v1232
        %v1249 = vadd.f32 %v1164, %v1220
        %v1250 = vadd.f32 %v1165, %v1224
        %v1251 = vadd.f32 %v1166, %v1228
        %v1252 = vadd.f32 %v1167, %v1232
        %v1253 = vadd.f32 %v1168, %v1220
        %v1254 = vadd.f32 %v1169, %v1224
        %v1255 = vadd.f32 %v1170, %v1228
        %v1256 = vadd.f32 %v1171, %v1232
        %v1257 = vadd.f32 %v1172, %v1220
        %v1258 = vadd.f32 %v1173, %v1224
        %v1259 = vadd.f32 %v1174, %v1228
        %v1260 = vadd.f32 %v1175, %v1232
        %v1261 = vadd.f32 %v1176, %v1220
        %v1262 = vadd.f32 %v1177, %v1224
        %v1263 = vadd.f32 %v1178, %v1228
        %v1264 = vadd.f32 %v1179, %v1232
        %v1265 = vadd.f32 %v1180, %v1220
        %v1266 = vadd.f32 %v1181, %v1224
        %v1267 = vadd.f32 %v1182, %v1228
        %v1268 = vadd.f32 %v1183, %v1232
        %v1269 = vadd.f32 %v1184, %v1220
        %v1270 = vadd.f32 %v1185, %v1224
        %v1271 = vadd.f32 %v1186, %v1228
        %v1272 = vadd.f32 %v1187, %v1232
        %v1273 = vadd.f32 %v1188, %v1220
        %v1274 = vadd.f32 %v1189, %v1224
        %v1275 = vadd.f32 %v1190, %v1228
        %v1276 = vadd.f32 %v1191, %v1232
        %v1277 = vadd.f32 %v1192, %v1220
        %v1278 = vadd.f32 %v1193, %v1224
        %v1279 = vadd.f32 %v1194, %v1228
        %v1280 = vadd.f32 %v1195, %v1232
        %v1281 = vadd.f32 %v1196, %v1220
        %v1282 = vadd.f32 %v1197, %v1224
        %v1283 = vadd.f32 %v1198, %v1228
        %v1284 = vadd.f32 %v1199, %v1232
        %v1285 = vadd.f32 %v1200, %v1220
        %v1286 = vadd.f32 %v1201, %v1224
        %v1287 = vadd.f32 %v1202, %v1228
        %v1288 = vadd.f32 %v1203, %v1232
        %v1289 = vadd.f32 %v1204, %v1220
        %v1290 = vadd.f32 %v1205, %v1224
        %v1291 = vadd.f32 %v1206, %v1228
        %v1292 = vadd.f32 %v1207, %v1232
        %v1293 = vadd.f32 %v1208, %v1220
        %v1294 = vadd.f32 %v1209, %v1224
        %v1295 = vadd.f32 %v1210, %v1228
        %v1296 = vadd.f32 %v1211, %v1232
        %v1297 = vadd.f32 %v1212, %v1220
        %v1298 = vadd.f32 %v1213, %v1224
        %v1299 = vadd.f32 %v1214, %v1228
        %v1300 = vadd.f32 %v1215, %v1232
        %v1301 = vmax.f32 %v1237, 0.0
        %v1302 = vmax.f32 %v1238, 0.0
        %v1303 = vmax.f32 %v1239, 0.0
        %v1304 = vmax.f32 %v1240, 0.0
        %v1305 = vmax.f32 %v1241, 0.0
        %v1306 = vmax.f32 %v1242, 0.0
        %v1307 = vmax.f32 %v1243, 0.0
        %v1308 = vmax.f32 %v1244, 0.0
        %v1309 = vmax.f32 %v1245, 0.0
        %v1310 = vmax.f32 %v1246, 0.0
        %v1311 = vmax.f32 %v1247, 0.0
        %v1312 = vmax.f32 %v1248, 0.0
        %v1313 = vmax.f32 %v1249, 0.0
        %v1314 = vmax.f32 %v1250, 0.0
        %v1315 = vmax.f32 %v1251, 0.0
        %v1316 = vmax.f32 %v1252, 0.0
        %v1317 = vmax.f32 %v1253, 0.0
        %v1318 = vmax.f32 %v1254, 0.0
        %v1319 = vmax.f32 %v1255, 0.0
        %v1320 = vmax.f32 %v1256, 0.0
        %v1321 = vmax.f32 %v1257, 0.0
        %v1322 = vmax.f32 %v1258, 0.0
        %v1323 = vmax.f32 %v1259, 0.0
        %v1324 = vmax.f32 %v1260, 0.0
        %v1325 = vmax.f32 %v1261, 0.0
        %v1326 = vmax.f32 %v1262, 0.0
        %v1327 = vmax.f32 %v1263, 0.0
        %v1328 = vmax.f32 %v1264, 0.0
        %v1329 = vmax.f32 %v1265, 0.0
        %v1330 = vmax.f32 %v1266, 0.0
        %v1331 = vmax.f32 %v1267, 0.0
        %v1332 = vmax.f32 %v1268, 0.0
        %v1333 = vmax.f32 %v1269, 0.0
        %v1334 = vmax.f32 %v1270, 0.0
        %v1335 = vmax.f32 %v1271, 0.0
        %v1336 = vmax.f32 %v1272, 0.0
        %v1337 = vmax.f32 %v1273, 0.0
        %v1338 = vmax.f32 %v1274, 0.0
        %v1339 = vmax.f32 %v1275, 0.0
        %v1340 = vmax.f32 %v1276, 0.0
        %v1341 = vmax.f32 %v1277, 0.0
        %v1342 = vmax.f32 %v1278, 0.0
        %v1343 = vmax.f32 %v1279, 0.0
        %v1344 = vmax.f32 %v1280, 0.0
        %v1345 = vmax.f32 %v1281, 0.0
        %v1346 = vmax.f32 %v1282, 0.0
        %v1347 = vmax.f32 %v1283, 0.0
        %v1348 = vmax.f32 %v1284, 0.0
        %v1349 = vmax.f32 %v1285, 0.0
        %v1350 = vmax.f32 %v1286, 0.0
        %v1351 = vmax.f32 %v1287, 0.0
        %v1352 = vmax.f32 %v1288, 0.0
        %v1353 = vmax.f32 %v1289, 0.0
        %v1354 = vmax.f32 %v1290, 0.0
        %v1355 = vmax.f32 %v1291, 0.0
        %v1356 = vmax.f32 %v1292, 0.0
        %v1357 = vmax.f32 %v1293, 0.0
        %v1358 = vmax.f32 %v1294, 0.0
        %v1359 = vmax.f32 %v1295, 0.0
        %v1360 = vmax.f32 %v1296, 0.0
        %v1361 = vmax.f32 %v1297, 0.0
        %v1362 = vmax.f32 %v1298, 0.0
        %v1363 = vmax.f32 %v1299, 0.0
        %v1364 = vmax.f32 %v1300, 0.0
        %v1365 = vpack.c.bf16 %v1305, %v1301
        %v1366 = vpack.c.bf16 %v1306, %v1302
        %v1367 = vpack.c.bf16 %v1307, %v1303
        %v1368 = vpack.c.bf16 %v1308, %v1304
        %v1369 = vpack.c.bf16 %v1313, %v1309
        %v1370 = vpack.c.bf16 %v1314, %v1310
        %v1371 = vpack.c.bf16 %v1315, %v1311
        %v1372 = vpack.c.bf16 %v1316, %v1312
        %v1373 = vpack.c.bf16 %v1321, %v1317
        %v1374 = vpack.c.bf16 %v1322, %v1318
        %v1375 = vpack.c.bf16 %v1323, %v1319
        %v1376 = vpack.c.bf16 %v1324, %v1320
        %v1377 = vpack.c.bf16 %v1329, %v1325
        %v1378 = vpack.c.bf16 %v1330, %v1326
        %v1379 = vpack.c.bf16 %v1331, %v1327
        %v1380 = vpack.c.bf16 %v1332, %v1328
        %v1381 = vpack.c.bf16 %v1337, %v1333
        %v1382 = vpack.c.bf16 %v1338, %v1334
        %v1383 = vpack.c.bf16 %v1339, %v1335
        %v1384 = vpack.c.bf16 %v1340, %v1336
        %v1385 = vpack.c.bf16 %v1345, %v1341
        %v1386 = vpack.c.bf16 %v1346, %v1342
        %v1387 = vpack.c.bf16 %v1347, %v1343
        %v1388 = vpack.c.bf16 %v1348, %v1344
        %v1389 = vpack.c.bf16 %v1353, %v1349
        %v1390 = vpack.c.bf16 %v1354, %v1350
        %v1391 = vpack.c.bf16 %v1355, %v1351
        %v1392 = vpack.c.bf16 %v1356, %v1352
        %v1393 = vpack.c.bf16 %v1361, %v1357
        %v1394 = vpack.c.bf16 %v1362, %v1358
        %v1395 = vpack.c.bf16 %v1363, %v1359
        %v1396 = vpack.c.bf16 %v1364, %v1360
        %v1397 = vld [vmem:[#allocation2] sm:$0xff]
        %v1398 = vld [vmem:[#allocation2 + $0x8] sm:$0xf]
        %v1399 = vld [vmem:[#allocation2 + $0xc] sm:$0xff]
        %v1400 = vld [vmem:[#allocation2 + $0x14] sm:$0xf]
        %v1401 = vld [vmem:[#allocation2 + $0x18] sm:$0xff]
        %v1402 = vld [vmem:[#allocation2 + $0x20] sm:$0xf]
        %v1403 = vld [vmem:[#allocation2 + $0x24] sm:$0xff]
        %v1404 = vld [vmem:[#allocation2 + $0x2c] sm:$0xf]
        %v1405 = vld [vmem:[#allocation2 + $0x30] sm:$0xff]
        %v1406 = vld [vmem:[#allocation2 + $0x38] sm:$0xf]
        %v1407 = vld [vmem:[#allocation2 + $0x3c] sm:$0xff]
        %v1408 = vld [vmem:[#allocation2 + $0x44] sm:$0xf]
        %v1409 = vld [vmem:[#allocation2 + $0x48] sm:$0xff]
        %v1410 = vld [vmem:[#allocation2 + $0x50] sm:$0xf]
        %v1411 = vld [vmem:[#allocation2 + $0x54] sm:$0xff]
        %v1412 = vld [vmem:[#allocation2 + $0x5c] sm:$0xf]
        %v1413 = vld [vmem:[#allocation2 + $0x60] sm:$0xff]
        %v1414 = vld [vmem:[#allocation2 + $0x68] sm:$0xf]
        %v1415 = vld [vmem:[#allocation2 + $0x6c] sm:$0xff]
        %v1416 = vld [vmem:[#allocation2 + $0x74] sm:$0xf]
        %v1417 = vld [vmem:[#allocation2 + $0x78] sm:$0xff]
        %v1418 = vld [vmem:[#allocation2 + $0x80] sm:$0xf]
        %v1419 = vld [vmem:[#allocation2 + $0x84] sm:$0xff]
        %v1420 = vld [vmem:[#allocation2 + $0x8c] sm:$0xf]
        %v1421 = vld [vmem:[#allocation2 + $0x90] sm:$0xff]
        %v1422 = vld [vmem:[#allocation2 + $0x98] sm:$0xf]
        %v1423 = vld [vmem:[#allocation2 + $0x9c] sm:$0xff]
        %v1424 = vld [vmem:[#allocation2 + $0xa4] sm:$0xf]
        %v1425 = vld [vmem:[#allocation2 + $0xa8] sm:$0xff]
        %v1426 = vld [vmem:[#allocation2 + $0xb0] sm:$0xf]
        %v1427 = vld [vmem:[#allocation2 + $0xb4] sm:$0xff]
        %v1428 = vld [vmem:[#allocation2 + $0xbc] sm:$0xf]
        %v1429 = vld [vmem:[#allocation2 + $0xc0] sm:$0xff]
        %v1430 = vld [vmem:[#allocation2 + $0xc8] sm:$0xf]
        %v1431 = vld [vmem:[#allocation2 + $0xcc] sm:$0xff]
        %v1432 = vld [vmem:[#allocation2 + $0xd4] sm:$0xf]
        %v1433 = vld [vmem:[#allocation2 + $0xd8] sm:$0xff]
        %v1434 = vld [vmem:[#allocation2 + $0xe0] sm:$0xf]
        %v1435 = vld [vmem:[#allocation2 + $0xe4] sm:$0xff]
        %v1436 = vld [vmem:[#allocation2 + $0xec] sm:$0xf]
        %v1437 = vld [vmem:[#allocation2 + $0xf0] sm:$0xff]
        %v1438 = vld [vmem:[#allocation2 + $0xf8] sm:$0xf]
        %v1439 = vld [vmem:[#allocation2 + $0xfc] sm:$0xff]
        %v1440 = vld [vmem:[#allocation2 + $0x104] sm:$0xf]
        %v1441 = vld [vmem:[#allocation2 + $0x108] sm:$0xff]
        %v1442 = vld [vmem:[#allocation2 + $0x110] sm:$0xf]
        %v1443 = vld [vmem:[#allocation2 + $0x114] sm:$0xff]
        %v1444 = vld [vmem:[#allocation2 + $0x11c] sm:$0xf]
        %v1445 = vld [vmem:[#allocation2 + $0x120] sm:$0xff]
        %v1446 = vld [vmem:[#allocation2 + $0x128] sm:$0xf]
        %v1447 = vld [vmem:[#allocation2 + $0x12c] sm:$0xff]
        %v1448 = vld [vmem:[#allocation2 + $0x134] sm:$0xf]
        %v1449 = vld [vmem:[#allocation2 + $0x138] sm:$0xff]
        %v1450 = vld [vmem:[#allocation2 + $0x140] sm:$0xf]
        %v1451 = vld [vmem:[#allocation2 + $0x144] sm:$0xff]
        %v1452 = vld [vmem:[#allocation2 + $0x14c] sm:$0xf]
        %v1453 = vld [vmem:[#allocation2 + $0x150] sm:$0xff]
        %v1454 = vld [vmem:[#allocation2 + $0x158] sm:$0xf]
        %v1455 = vld [vmem:[#allocation2 + $0x15c] sm:$0xff]
        %v1456 = vld [vmem:[#allocation2 + $0x164] sm:$0xf]
        %v1457 = vld [vmem:[#allocation2 + $0x168] sm:$0xff]
        %v1458 = vld [vmem:[#allocation2 + $0x170] sm:$0xf]
        %v1459 = vld [vmem:[#allocation2 + $0x174] sm:$0xff]
        %v1460 = vld [vmem:[#allocation2 + $0x17c] sm:$0xf]
        %v1461 = vld [vmem:[#allocation2 + $0x180] sm:$0xff]
        %v1462 = vld [vmem:[#allocation2 + $0x188] sm:$0xf]
        %v1463 = vld [vmem:[#allocation2 + $0x18c] sm:$0xff]
        %v1464 = vld [vmem:[#allocation2 + $0x194] sm:$0xf]
        %v1465 = vld [vmem:[#allocation2 + $0x198] sm:$0xff]
        %v1466 = vld [vmem:[#allocation2 + $0x1a0] sm:$0xf]
        %v1467 = vld [vmem:[#allocation2 + $0x1a4] sm:$0xff]
        %v1468 = vld [vmem:[#allocation2 + $0x1ac] sm:$0xf]
        %v1469 = vld [vmem:[#allocation2 + $0x1b0] sm:$0xff]
        %v1470 = vld [vmem:[#allocation2 + $0x1b8] sm:$0xf]
        %v1471 = vld [vmem:[#allocation2 + $0x1bc] sm:$0xff]
        %v1472 = vld [vmem:[#allocation2 + $0x1c4] sm:$0xf]
        %v1473 = vld [vmem:[#allocation2 + $0x1c8] sm:$0xff]
        %v1474 = vld [vmem:[#allocation2 + $0x1d0] sm:$0xf]
        %v1475 = vld [vmem:[#allocation2 + $0x1d4] sm:$0xff]
        %v1476 = vld [vmem:[#allocation2 + $0x1dc] sm:$0xf]
        %v1477 = vld [vmem:[#allocation2 + $0x1e0] sm:$0xff]
        %v1478 = vld [vmem:[#allocation2 + $0x1e8] sm:$0xf]
        %v1479 = vld [vmem:[#allocation2 + $0x1ec] sm:$0xff]
        %v1480 = vld [vmem:[#allocation2 + $0x1f4] sm:$0xf]
        %v1481 = vld [vmem:[#allocation2 + $0x1f8] sm:$0xff]
        %v1482 = vld [vmem:[#allocation2 + $0x200] sm:$0xf]
        %v1483 = vld [vmem:[#allocation2 + $0x204] sm:$0xff]
        %v1484 = vld [vmem:[#allocation2 + $0x20c] sm:$0xf]
        %v1485 = vld [vmem:[#allocation2 + $0x210] sm:$0xff]
        %v1486 = vld [vmem:[#allocation2 + $0x218] sm:$0xf]
        %v1487 = vld [vmem:[#allocation2 + $0x21c] sm:$0xff]
        %v1488 = vld [vmem:[#allocation2 + $0x224] sm:$0xf]
        %v1489 = vld [vmem:[#allocation2 + $0x228] sm:$0xff]
        %v1490 = vld [vmem:[#allocation2 + $0x230] sm:$0xf]
        %v1491 = vld [vmem:[#allocation2 + $0x234] sm:$0xff]
        %v1492 = vld [vmem:[#allocation2 + $0x23c] sm:$0xf]
        %v1493 = vld [vmem:[#allocation2 + $0x240] sm:$0xff]
        %v1494 = vld [vmem:[#allocation2 + $0x248] sm:$0xf]
        %v1495 = vld [vmem:[#allocation2 + $0x24c] sm:$0xff]
        %v1496 = vld [vmem:[#allocation2 + $0x254] sm:$0xf]
        %v1497 = vld [vmem:[#allocation2 + $0x258] sm:$0xff]
        %v1498 = vld [vmem:[#allocation2 + $0x260] sm:$0xf]
        %v1499 = vld [vmem:[#allocation2 + $0x264] sm:$0xff]
        %v1500 = vld [vmem:[#allocation2 + $0x26c] sm:$0xf]
        %v1501 = vld [vmem:[#allocation2 + $0x270] sm:$0xff]
        %v1502 = vld [vmem:[#allocation2 + $0x278] sm:$0xf]
        %v1503 = vld [vmem:[#allocation2 + $0x27c] sm:$0xff]
        %v1504 = vld [vmem:[#allocation2 + $0x284] sm:$0xf]
        %v1505 = vld [vmem:[#allocation2 + $0x288] sm:$0xff]
        %v1506 = vld [vmem:[#allocation2 + $0x290] sm:$0xf]
        %v1507 = vld [vmem:[#allocation2 + $0x294] sm:$0xff]
        %v1508 = vld [vmem:[#allocation2 + $0x29c] sm:$0xf]
        %v1509 = vld [vmem:[#allocation2 + $0x2a0] sm:$0xff]
        %v1510 = vld [vmem:[#allocation2 + $0x2a8] sm:$0xf]
        %v1511 = vld [vmem:[#allocation2 + $0x2ac] sm:$0xff]
        %v1512 = vld [vmem:[#allocation2 + $0x2b4] sm:$0xf]
        %v1513 = vld [vmem:[#allocation2 + $0x2b8] sm:$0xff]
        %v1514 = vld [vmem:[#allocation2 + $0x2c0] sm:$0xf]
        %v1515 = vld [vmem:[#allocation2 + $0x2c4] sm:$0xff]
        %v1516 = vld [vmem:[#allocation2 + $0x2cc] sm:$0xf]
        %v1517 = vld [vmem:[#allocation2 + $0x2d0] sm:$0xff]
        %v1518 = vld [vmem:[#allocation2 + $0x2d8] sm:$0xf]
        %v1519 = vld [vmem:[#allocation2 + $0x2dc] sm:$0xff]
        %v1520 = vld [vmem:[#allocation2 + $0x2e4] sm:$0xf]
        %v1521 = vld [vmem:[#allocation2 + $0x2e8] sm:$0xff]
        %v1522 = vld [vmem:[#allocation2 + $0x2f0] sm:$0xf]
        %v1523 = vld [vmem:[#allocation2 + $0x2f4] sm:$0xff]
        %v1524 = vld [vmem:[#allocation2 + $0x2fc] sm:$0xf]
        %v1525 = vld [vmem:[%s6] ss:$8 sm:$0x7]
        %v1527 = vlaneseq
        %v1528 = vshrl.u32 %v1527, 7
        %v1529 = vsub.s32 0, %v1528
        %v1530 = vrot.slane %v1525, %v1529
        %v1531 = vlaneseq
        %v1532 = vshrl.u32 %v1531, 7
        %v1533 = vsub.s32 1, %v1532
        %v1534 = vrot.slane %v1525, %v1533
        %v1535 = vlaneseq
        %v1536 = vshrl.u32 %v1535, 7
        %v1537 = vsub.s32 2, %v1536
        %v1538 = vrot.slane %v1525, %v1537
        %v1670 = vunpack.c.l.b16 %v1397
        %v1671 = vunpack.c.h.b16 %v1397
        %v1672 = vunpack.c.l.b16 %v1398
        %v1673 = vunpack.c.l.b16 %v1399
        %v1674 = vunpack.c.h.b16 %v1399
        %v1675 = vunpack.c.l.b16 %v1400
        %v1676 = vunpack.c.l.b16 %v1401
        %v1677 = vunpack.c.h.b16 %v1401
        %v1678 = vunpack.c.l.b16 %v1402
        %v1679 = vunpack.c.l.b16 %v1403
        %v1680 = vunpack.c.h.b16 %v1403
        %v1681 = vunpack.c.l.b16 %v1404
        %v1682 = vunpack.c.l.b16 %v1405
        %v1683 = vunpack.c.h.b16 %v1405
        %v1684 = vunpack.c.l.b16 %v1406
        %v1685 = vunpack.c.l.b16 %v1407
        %v1686 = vunpack.c.h.b16 %v1407
        %v1687 = vunpack.c.l.b16 %v1408
        %v1688 = vunpack.c.l.b16 %v1409
        %v1689 = vunpack.c.h.b16 %v1409
        %v1690 = vunpack.c.l.b16 %v1410
        %v1691 = vunpack.c.l.b16 %v1411
        %v1692 = vunpack.c.h.b16 %v1411
        %v1693 = vunpack.c.l.b16 %v1412
        %v1694 = vunpack.c.l.b16 %v1413
        %v1695 = vunpack.c.h.b16 %v1413
        %v1696 = vunpack.c.l.b16 %v1414
        %v1697 = vunpack.c.l.b16 %v1415
        %v1698 = vunpack.c.h.b16 %v1415
        %v1699 = vunpack.c.l.b16 %v1416
        %v1700 = vunpack.c.l.b16 %v1417
        %v1701 = vunpack.c.h.b16 %v1417
        %v1702 = vunpack.c.l.b16 %v1418
        %v1703 = vunpack.c.l.b16 %v1419
        %v1704 = vunpack.c.h.b16 %v1419
        %v1705 = vunpack.c.l.b16 %v1420
        %v1706 = vunpack.c.l.b16 %v1421
        %v1707 = vunpack.c.h.b16 %v1421
        %v1708 = vunpack.c.l.b16 %v1422
        %v1709 = vunpack.c.l.b16 %v1423
        %v1710 = vunpack.c.h.b16 %v1423
        %v1711 = vunpack.c.l.b16 %v1424
        %v1712 = vunpack.c.l.b16 %v1425
        %v1713 = vunpack.c.h.b16 %v1425
        %v1714 = vunpack.c.l.b16 %v1426
        %v1715 = vunpack.c.l.b16 %v1427
        %v1716 = vunpack.c.h.b16 %v1427
        %v1717 = vunpack.c.l.b16 %v1428
        %v1718 = vunpack.c.l.b16 %v1429
        %v1719 = vunpack.c.h.b16 %v1429
        %v1720 = vunpack.c.l.b16 %v1430
        %v1721 = vunpack.c.l.b16 %v1431
        %v1722 = vunpack.c.h.b16 %v1431
        %v1723 = vunpack.c.l.b16 %v1432
        %v1724 = vunpack.c.l.b16 %v1433
        %v1725 = vunpack.c.h.b16 %v1433
        %v1726 = vunpack.c.l.b16 %v1434
        %v1727 = vunpack.c.l.b16 %v1435
        %v1728 = vunpack.c.h.b16 %v1435
        %v1729 = vunpack.c.l.b16 %v1436
        %v1730 = vunpack.c.l.b16 %v1437
        %v1731 = vunpack.c.h.b16 %v1437
        %v1732 = vunpack.c.l.b16 %v1438
        %v1733 = vunpack.c.l.b16 %v1439
        %v1734 = vunpack.c.h.b16 %v1439
        %v1735 = vunpack.c.l.b16 %v1440
        %v1736 = vunpack.c.l.b16 %v1441
        %v1737 = vunpack.c.h.b16 %v1441
        %v1738 = vunpack.c.l.b16 %v1442
        %v1739 = vunpack.c.l.b16 %v1443
        %v1740 = vunpack.c.h.b16 %v1443
        %v1741 = vunpack.c.l.b16 %v1444
        %v1742 = vunpack.c.l.b16 %v1445
        %v1743 = vunpack.c.h.b16 %v1445
        %v1744 = vunpack.c.l.b16 %v1446
        %v1745 = vunpack.c.l.b16 %v1447
        %v1746 = vunpack.c.h.b16 %v1447
        %v1747 = vunpack.c.l.b16 %v1448
        %v1748 = vunpack.c.l.b16 %v1449
        %v1749 = vunpack.c.h.b16 %v1449
        %v1750 = vunpack.c.l.b16 %v1450
        %v1751 = vunpack.c.l.b16 %v1451
        %v1752 = vunpack.c.h.b16 %v1451
        %v1753 = vunpack.c.l.b16 %v1452
        %v1754 = vunpack.c.l.b16 %v1453
        %v1755 = vunpack.c.h.b16 %v1453
        %v1756 = vunpack.c.l.b16 %v1454
        %v1757 = vunpack.c.l.b16 %v1455
        %v1758 = vunpack.c.h.b16 %v1455
        %v1759 = vunpack.c.l.b16 %v1456
        %v1760 = vunpack.c.l.b16 %v1457
        %v1761 = vunpack.c.h.b16 %v1457
        %v1762 = vunpack.c.l.b16 %v1458
        %v1763 = vunpack.c.l.b16 %v1459
        %v1764 = vunpack.c.h.b16 %v1459
        %v1765 = vunpack.c.l.b16 %v1460
        %v1766 = vunpack.c.l.b16 %v1461
        %v1767 = vunpack.c.h.b16 %v1461
        %v1768 = vunpack.c.l.b16 %v1462
        %v1769 = vunpack.c.l.b16 %v1463
        %v1770 = vunpack.c.h.b16 %v1463
        %v1771 = vunpack.c.l.b16 %v1464
        %v1772 = vunpack.c.l.b16 %v1465
        %v1773 = vunpack.c.h.b16 %v1465
        %v1774 = vunpack.c.l.b16 %v1466
        %v1775 = vunpack.c.l.b16 %v1467
        %v1776 = vunpack.c.h.b16 %v1467
        %v1777 = vunpack.c.l.b16 %v1468
        %v1778 = vunpack.c.l.b16 %v1469
        %v1779 = vunpack.c.h.b16 %v1469
        %v1780 = vunpack.c.l.b16 %v1470
        %v1781 = vunpack.c.l.b16 %v1471
        %v1782 = vunpack.c.h.b16 %v1471
        %v1783 = vunpack.c.l.b16 %v1472
        %v1784 = vunpack.c.l.b16 %v1473
        %v1785 = vunpack.c.h.b16 %v1473
        %v1786 = vunpack.c.l.b16 %v1474
        %v1787 = vunpack.c.l.b16 %v1475
        %v1788 = vunpack.c.h.b16 %v1475
        %v1789 = vunpack.c.l.b16 %v1476
        %v1790 = vunpack.c.l.b16 %v1477
        %v1791 = vunpack.c.h.b16 %v1477
        %v1792 = vunpack.c.l.b16 %v1478
        %v1793 = vunpack.c.l.b16 %v1479
        %v1794 = vunpack.c.h.b16 %v1479
        %v1795 = vunpack.c.l.b16 %v1480
        %v1796 = vunpack.c.l.b16 %v1481
        %v1797 = vunpack.c.h.b16 %v1481
        %v1798 = vunpack.c.l.b16 %v1482
        %v1799 = vunpack.c.l.b16 %v1483
        %v1800 = vunpack.c.h.b16 %v1483
        %v1801 = vunpack.c.l.b16 %v1484
        %v1802 = vunpack.c.l.b16 %v1485
        %v1803 = vunpack.c.h.b16 %v1485
        %v1804 = vunpack.c.l.b16 %v1486
        %v1805 = vunpack.c.l.b16 %v1487
        %v1806 = vunpack.c.h.b16 %v1487
        %v1807 = vunpack.c.l.b16 %v1488
        %v1808 = vunpack.c.l.b16 %v1489
        %v1809 = vunpack.c.h.b16 %v1489
        %v1810 = vunpack.c.l.b16 %v1490
        %v1811 = vunpack.c.l.b16 %v1491
        %v1812 = vunpack.c.h.b16 %v1491
        %v1813 = vunpack.c.l.b16 %v1492
        %v1814 = vunpack.c.l.b16 %v1493
        %v1815 = vunpack.c.h.b16 %v1493
        %v1816 = vunpack.c.l.b16 %v1494
        %v1817 = vunpack.c.l.b16 %v1495
        %v1818 = vunpack.c.h.b16 %v1495
        %v1819 = vunpack.c.l.b16 %v1496
        %v1820 = vunpack.c.l.b16 %v1497
        %v1821 = vunpack.c.h.b16 %v1497
        %v1822 = vunpack.c.l.b16 %v1498
        %v1823 = vunpack.c.l.b16 %v1499
        %v1824 = vunpack.c.h.b16 %v1499
        %v1825 = vunpack.c.l.b16 %v1500
        %v1826 = vunpack.c.l.b16 %v1501
        %v1827 = vunpack.c.h.b16 %v1501
        %v1828 = vunpack.c.l.b16 %v1502
        %v1829 = vunpack.c.l.b16 %v1503
        %v1830 = vunpack.c.h.b16 %v1503
        %v1831 = vunpack.c.l.b16 %v1504
        %v1832 = vunpack.c.l.b16 %v1505
        %v1833 = vunpack.c.h.b16 %v1505
        %v1834 = vunpack.c.l.b16 %v1506
        %v1835 = vunpack.c.l.b16 %v1507
        %v1836 = vunpack.c.h.b16 %v1507
        %v1837 = vunpack.c.l.b16 %v1508
        %v1838 = vunpack.c.l.b16 %v1509
        %v1839 = vunpack.c.h.b16 %v1509
        %v1840 = vunpack.c.l.b16 %v1510
        %v1841 = vunpack.c.l.b16 %v1511
        %v1842 = vunpack.c.h.b16 %v1511
        %v1843 = vunpack.c.l.b16 %v1512
        %v1844 = vunpack.c.l.b16 %v1513
        %v1845 = vunpack.c.h.b16 %v1513
        %v1846 = vunpack.c.l.b16 %v1514
        %v1847 = vunpack.c.l.b16 %v1515
        %v1848 = vunpack.c.h.b16 %v1515
        %v1849 = vunpack.c.l.b16 %v1516
        %v1850 = vunpack.c.l.b16 %v1517
        %v1851 = vunpack.c.h.b16 %v1517
        %v1852 = vunpack.c.l.b16 %v1518
        %v1853 = vunpack.c.l.b16 %v1519
        %v1854 = vunpack.c.h.b16 %v1519
        %v1855 = vunpack.c.l.b16 %v1520
        %v1856 = vunpack.c.l.b16 %v1521
        %v1857 = vunpack.c.h.b16 %v1521
        %v1858 = vunpack.c.l.b16 %v1522
        %v1859 = vunpack.c.l.b16 %v1523
        %v1860 = vunpack.c.h.b16 %v1523
        %v1861 = vunpack.c.l.b16 %v1524
        %v1862 = vpack.c.b16 %v1673, %v1670
        %v1863 = vpack.c.b16 %v1674, %v1671
        %v1864 = vpack.c.b16 %v1675, %v1672
        %v1865 = vpack.c.b16 %v1679, %v1676
        %v1866 = vpack.c.b16 %v1680, %v1677
        %v1867 = vpack.c.b16 %v1681, %v1678
        %v1868 = vpack.c.b16 %v1685, %v1682
        %v1869 = vpack.c.b16 %v1686, %v1683
        %v1870 = vpack.c.b16 %v1687, %v1684
        %v1871 = vpack.c.b16 %v1691, %v1688
        %v1872 = vpack.c.b16 %v1692, %v1689
        %v1873 = vpack.c.b16 %v1693, %v1690
        %v1874 = vpack.c.b16 %v1697, %v1694
        %v1875 = vpack.c.b16 %v1698, %v1695
        %v1876 = vpack.c.b16 %v1699, %v1696
        %v1877 = vpack.c.b16 %v1703, %v1700
        %v1878 = vpack.c.b16 %v1704, %v1701
        %v1879 = vpack.c.b16 %v1705, %v1702
        %v1880 = vpack.c.b16 %v1709, %v1706
        %v1881 = vpack.c.b16 %v1710, %v1707
        %v1882 = vpack.c.b16 %v1711, %v1708
        %v1883 = vpack.c.b16 %v1715, %v1712
        %v1884 = vpack.c.b16 %v1716, %v1713
        %v1885 = vpack.c.b16 %v1717, %v1714
        %v1886 = vpack.c.b16 %v1721, %v1718
        %v1887 = vpack.c.b16 %v1722, %v1719
        %v1888 = vpack.c.b16 %v1723, %v1720
        %v1889 = vpack.c.b16 %v1727, %v1724
        %v1890 = vpack.c.b16 %v1728, %v1725
        %v1891 = vpack.c.b16 %v1729, %v1726
        %v1892 = vpack.c.b16 %v1733, %v1730
        %v1893 = vpack.c.b16 %v1734, %v1731
        %v1894 = vpack.c.b16 %v1735, %v1732
        %v1895 = vpack.c.b16 %v1739, %v1736
        %v1896 = vpack.c.b16 %v1740, %v1737
        %v1897 = vpack.c.b16 %v1741, %v1738
        %v1898 = vpack.c.b16 %v1745, %v1742
        %v1899 = vpack.c.b16 %v1746, %v1743
        %v1900 = vpack.c.b16 %v1747, %v1744
        %v1901 = vpack.c.b16 %v1751, %v1748
        %v1902 = vpack.c.b16 %v1752, %v1749
        %v1903 = vpack.c.b16 %v1753, %v1750
        %v1904 = vpack.c.b16 %v1757, %v1754
        %v1905 = vpack.c.b16 %v1758, %v1755
        %v1906 = vpack.c.b16 %v1759, %v1756
        %v1907 = vpack.c.b16 %v1763, %v1760
        %v1908 = vpack.c.b16 %v1764, %v1761
        %v1909 = vpack.c.b16 %v1765, %v1762
        %v1910 = vpack.c.b16 %v1769, %v1766
        %v1911 = vpack.c.b16 %v1770, %v1767
        %v1912 = vpack.c.b16 %v1771, %v1768
        %v1913 = vpack.c.b16 %v1775, %v1772
        %v1914 = vpack.c.b16 %v1776, %v1773
        %v1915 = vpack.c.b16 %v1777, %v1774
        %v1916 = vpack.c.b16 %v1781, %v1778
        %v1917 = vpack.c.b16 %v1782, %v1779
        %v1918 = vpack.c.b16 %v1783, %v1780
        %v1919 = vpack.c.b16 %v1787, %v1784
        %v1920 = vpack.c.b16 %v1788, %v1785
        %v1921 = vpack.c.b16 %v1789, %v1786
        %v1922 = vpack.c.b16 %v1793, %v1790
        %v1923 = vpack.c.b16 %v1794, %v1791
        %v1924 = vpack.c.b16 %v1795, %v1792
        %v1925 = vpack.c.b16 %v1799, %v1796
        %v1926 = vpack.c.b16 %v1800, %v1797
        %v1927 = vpack.c.b16 %v1801, %v1798
        %v1928 = vpack.c.b16 %v1805, %v1802
        %v1929 = vpack.c.b16 %v1806, %v1803
        %v1930 = vpack.c.b16 %v1807, %v1804
        %v1931 = vpack.c.b16 %v1811, %v1808
        %v1932 = vpack.c.b16 %v1812, %v1809
        %v1933 = vpack.c.b16 %v1813, %v1810
        %v1934 = vpack.c.b16 %v1817, %v1814
        %v1935 = vpack.c.b16 %v1818, %v1815
        %v1936 = vpack.c.b16 %v1819, %v1816
        %v1937 = vpack.c.b16 %v1823, %v1820
        %v1938 = vpack.c.b16 %v1824, %v1821
        %v1939 = vpack.c.b16 %v1825, %v1822
        %v1940 = vpack.c.b16 %v1829, %v1826
        %v1941 = vpack.c.b16 %v1830, %v1827
        %v1942 = vpack.c.b16 %v1831, %v1828
        %v1943 = vpack.c.b16 %v1835, %v1832
        %v1944 = vpack.c.b16 %v1836, %v1833
        %v1945 = vpack.c.b16 %v1837, %v1834
        %v1946 = vpack.c.b16 %v1841, %v1838
        %v1947 = vpack.c.b16 %v1842, %v1839
        %v1948 = vpack.c.b16 %v1843, %v1840
        %v1949 = vpack.c.b16 %v1847, %v1844
        %v1950 = vpack.c.b16 %v1848, %v1845
        %v1951 = vpack.c.b16 %v1849, %v1846
        %v1952 = vpack.c.b16 %v1853, %v1850
        %v1953 = vpack.c.b16 %v1854, %v1851
        %v1954 = vpack.c.b16 %v1855, %v1852
        %v1955 = vpack.c.b16 %v1859, %v1856
        %v1956 = vpack.c.b16 %v1860, %v1857
        %v1957 = vpack.c.b16 %v1861, %v1858
        %2054 = vmatprep.subr.bf16.mxu0 %v1884
        %2055 = vmatpush1.bf16.msra.mxu0 %v1883
        %2056 = vmatprep.subr.bf16.mxu0 %v1881
        %2057 = vmatpush1.bf16.msra.mxu0 %v1880
        %2058 = vmatprep.subr.bf16.mxu0 %v1878
        %2059 = vmatpush1.bf16.msra.mxu0 %v1877
        %2060 = vmatprep.subr.bf16.mxu0 %v1875
        %2061 = vmatpush1.bf16.msra.mxu0 %v1874
        %2062 = vmatprep.subr.bf16.mxu0 %v1872
        %2063 = vmatpush1.bf16.msra.mxu0 %v1871
        %2064 = vmatprep.subr.bf16.mxu0 %v1869
        %2065 = vmatpush1.bf16.msra.mxu0 %v1868
        %2066 = vmatprep.subr.bf16.mxu0 %v1866
        %2067 = vmatpush1.bf16.msra.mxu0 %v1865
        %2068 = vmatprep.subr.bf16.mxu0 %v1863
        %2069 = vmatpush1.bf16.msra.mxu0 %v1862
        %2070 = vmatprep.subr.bf16.mxu0 %v1908
        %2071 = vmatpush2.bf16.msra.mxu0 %v1907
        %2072 = vmatprep.subr.bf16.mxu0 %v1905
        %2073 = vmatpush2.bf16.msra.mxu0 %v1904
        %2074 = vmatprep.subr.bf16.mxu0 %v1902
        %2075 = vmatpush2.bf16.msra.mxu0 %v1901
        %2076 = vmatprep.subr.bf16.mxu0 %v1899
        %2077 = vmatpush2.bf16.msra.mxu0 %v1898
        %2078 = vmatprep.subr.bf16.mxu0 %v1896
        %2079 = vmatpush2.bf16.msra.mxu0 %v1895
        %2080 = vmatprep.subr.bf16.mxu0 %v1893
        %2081 = vmatpush2.bf16.msra.mxu0 %v1892
        %2082 = vmatprep.subr.bf16.mxu0 %v1890
        %2083 = vmatpush2.bf16.msra.mxu0 %v1889
        %2084 = vmatprep.subr.bf16.mxu0 %v1887
        %2085 = vmatpush2.bf16.msra.mxu0 %v1886
        %2086 = vmatprep.mubr.bf16.mxu0 %v1366
        %2087 = vmatmul.mubr.bf16.gmra.mxu0 %v1365
        %v2088 = vpop.f32.mrf.mxu0
        %v2089 = vadd.f32 %v1530, %v2088
        %v2090 = vpop.f32.mrf.mxu0
        %v2091 = vadd.f32 %v1534, %v2090
        %v2092 = vpop.f32.mrf.mxu0
        %v2093 = vadd.f32 %v1530, %v2092
        %v2094 = vpop.f32.mrf.mxu0
        %v2095 = vadd.f32 %v1534, %v2094
        %2096 = vmatprep.mubr.bf16.mxu0 %v1370
        %2097 = vmatmul.mubr.bf16.gmra.mxu0 %v1369
        %v2098 = vpop.f32.mrf.mxu0
        %v2099 = vadd.f32 %v1530, %v2098
        %v2100 = vpop.f32.mrf.mxu0
        %v2101 = vadd.f32 %v1534, %v2100
        %v2102 = vpop.f32.mrf.mxu0
        %v2103 = vadd.f32 %v1530, %v2102
        %v2104 = vpop.f32.mrf.mxu0
        %v2105 = vadd.f32 %v1534, %v2104
        %2106 = vmatprep.mubr.bf16.mxu0 %v1374
        %2107 = vmatmul.mubr.bf16.gmra.mxu0 %v1373
        %v2108 = vpop.f32.mrf.mxu0
        %v2109 = vadd.f32 %v1530, %v2108
        %v2110 = vpop.f32.mrf.mxu0
        %v2111 = vadd.f32 %v1534, %v2110
        %v2112 = vpop.f32.mrf.mxu0
        %v2113 = vadd.f32 %v1530, %v2112
        %v2114 = vpop.f32.mrf.mxu0
        %v2115 = vadd.f32 %v1534, %v2114
        %2116 = vmatprep.mubr.bf16.mxu0 %v1378
        %2117 = vmatmul.mubr.bf16.gmra.mxu0 %v1377
        %v2118 = vpop.f32.mrf.mxu0
        %v2119 = vadd.f32 %v1530, %v2118
        %v2120 = vpop.f32.mrf.mxu0
        %v2121 = vadd.f32 %v1534, %v2120
        %v2122 = vpop.f32.mrf.mxu0
        %v2123 = vadd.f32 %v1530, %v2122
        %v2124 = vpop.f32.mrf.mxu0
        %v2125 = vadd.f32 %v1534, %v2124
        %2126 = vmatprep.mubr.bf16.mxu0 %v1382
        %2127 = vmatmul.mubr.bf16.gmra.mxu0 %v1381
        %v2128 = vpop.f32.mrf.mxu0
        %v2129 = vadd.f32 %v1530, %v2128
        %v2130 = vpop.f32.mrf.mxu0
        %v2131 = vadd.f32 %v1534, %v2130
        %v2132 = vpop.f32.mrf.mxu0
        %v2133 = vadd.f32 %v1530, %v2132
        %v2134 = vpop.f32.mrf.mxu0
        %v2135 = vadd.f32 %v1534, %v2134
        %2136 = vmatprep.mubr.bf16.mxu0 %v1386
        %2137 = vmatmul.mubr.bf16.gmra.mxu0 %v1385
        %v2138 = vpop.f32.mrf.mxu0
        %v2139 = vadd.f32 %v1530, %v2138
        %v2140 = vpop.f32.mrf.mxu0
        %v2141 = vadd.f32 %v1534, %v2140
        %v2142 = vpop.f32.mrf.mxu0
        %v2143 = vadd.f32 %v1530, %v2142
        %v2144 = vpop.f32.mrf.mxu0
        %v2145 = vadd.f32 %v1534, %v2144
        %2146 = vmatprep.mubr.bf16.mxu0 %v1390
        %2147 = vmatmul.mubr.bf16.gmra.mxu0 %v1389
        %v2148 = vpop.f32.mrf.mxu0
        %v2149 = vadd.f32 %v1530, %v2148
        %v2150 = vpop.f32.mrf.mxu0
        %v2151 = vadd.f32 %v1534, %v2150
        %v2152 = vpop.f32.mrf.mxu0
        %v2153 = vadd.f32 %v1530, %v2152
        %v2154 = vpop.f32.mrf.mxu0
        %v2155 = vadd.f32 %v1534, %v2154
        %2156 = vmatprep.mubr.bf16.mxu0 %v1394
        %2157 = vmatmul.mubr.bf16.gmra.mxu0 %v1393
        %v2158 = vpop.f32.mrf.mxu0
        %v2159 = vadd.f32 %v1530, %v2158
        %v2160 = vpop.f32.mrf.mxu0
        %v2161 = vadd.f32 %v1534, %v2160
        %v2162 = vpop.f32.mrf.mxu0
        %v2163 = vadd.f32 %v1530, %v2162
        %v2164 = vpop.f32.mrf.mxu0
        %v2165 = vadd.f32 %v1534, %v2164
        %2166 = vdwg.mxu0
        %2167 = vmatprep.subr.bf16.mxu0 %v1932
        %2168 = vmatpush1.bf16.msra.mxu0 %v1931
        %2169 = vmatprep.subr.bf16.mxu0 %v1929
        %2170 = vmatpush1.bf16.msra.mxu0 %v1928
        %2171 = vmatprep.subr.bf16.mxu0 %v1926
        %2172 = vmatpush1.bf16.msra.mxu0 %v1925
        %2173 = vmatprep.subr.bf16.mxu0 %v1923
        %2174 = vmatpush1.bf16.msra.mxu0 %v1922
        %2175 = vmatprep.subr.bf16.mxu0 %v1920
        %2176 = vmatpush1.bf16.msra.mxu0 %v1919
        %2177 = vmatprep.subr.bf16.mxu0 %v1917
        %2178 = vmatpush1.bf16.msra.mxu0 %v1916
        %2179 = vmatprep.subr.bf16.mxu0 %v1914
        %2180 = vmatpush1.bf16.msra.mxu0 %v1913
        %2181 = vmatprep.subr.bf16.mxu0 %v1911
        %2182 = vmatpush1.bf16.msra.mxu0 %v1910
        %2183 = vmatprep.subr.bf16.mxu0 %v1956
        %2184 = vmatpush2.bf16.msra.mxu0 %v1955
        %2185 = vmatprep.subr.bf16.mxu0 %v1953
        %2186 = vmatpush2.bf16.msra.mxu0 %v1952
        %2187 = vmatprep.subr.bf16.mxu0 %v1950
        %2188 = vmatpush2.bf16.msra.mxu0 %v1949
        %2189 = vmatprep.subr.bf16.mxu0 %v1947
        %2190 = vmatpush2.bf16.msra.mxu0 %v1946
        %2191 = vmatprep.subr.bf16.mxu0 %v1944
        %2192 = vmatpush2.bf16.msra.mxu0 %v1943
        %2193 = vmatprep.subr.bf16.mxu0 %v1941
        %2194 = vmatpush2.bf16.msra.mxu0 %v1940
        %2195 = vmatprep.subr.bf16.mxu0 %v1938
        %2196 = vmatpush2.bf16.msra.mxu0 %v1937
        %2197 = vmatprep.subr.bf16.mxu0 %v1935
        %2198 = vmatpush2.bf16.msra.mxu0 %v1934
        %2199 = vmatprep.mubr.bf16.mxu0 %v1368
        %2200 = vmatmul.mubr.bf16.gmra.mxu0 %v1367
        %v2201 = vpop.f32.mrf.mxu0
        %v2202 = vadd.f32 %v2089, %v2201
        %v2203 = vpop.f32.mrf.mxu0
        %v2204 = vadd.f32 %v2091, %v2203
        %v2205 = vpop.f32.mrf.mxu0
        %v2206 = vadd.f32 %v2093, %v2205
        %v2207 = vpop.f32.mrf.mxu0
        %v2208 = vadd.f32 %v2095, %v2207
        %2209 = vmatprep.mubr.bf16.mxu0 %v1372
        %2210 = vmatmul.mubr.bf16.gmra.mxu0 %v1371
        %v2211 = vpop.f32.mrf.mxu0
        %v2212 = vadd.f32 %v2099, %v2211
        %v2213 = vpop.f32.mrf.mxu0
        %v2214 = vadd.f32 %v2101, %v2213
        %v2215 = vpop.f32.mrf.mxu0
        %v2216 = vadd.f32 %v2103, %v2215
        %v2217 = vpop.f32.mrf.mxu0
        %v2218 = vadd.f32 %v2105, %v2217
        %2219 = vmatprep.mubr.bf16.mxu0 %v1376
        %2220 = vmatmul.mubr.bf16.gmra.mxu0 %v1375
        %v2221 = vpop.f32.mrf.mxu0
        %v2222 = vadd.f32 %v2109, %v2221
        %v2223 = vpop.f32.mrf.mxu0
        %v2224 = vadd.f32 %v2111, %v2223
        %v2225 = vpop.f32.mrf.mxu0
        %v2226 = vadd.f32 %v2113, %v2225
        %v2227 = vpop.f32.mrf.mxu0
        %v2228 = vadd.f32 %v2115, %v2227
        %2229 = vmatprep.mubr.bf16.mxu0 %v1380
        %2230 = vmatmul.mubr.bf16.gmra.mxu0 %v1379
        %v2231 = vpop.f32.mrf.mxu0
        %v2232 = vadd.f32 %v2119, %v2231
        %v2233 = vpop.f32.mrf.mxu0
        %v2234 = vadd.f32 %v2121, %v2233
        %v2235 = vpop.f32.mrf.mxu0
        %v2236 = vadd.f32 %v2123, %v2235
        %v2237 = vpop.f32.mrf.mxu0
        %v2238 = vadd.f32 %v2125, %v2237
        %2239 = vmatprep.mubr.bf16.mxu0 %v1384
        %2240 = vmatmul.mubr.bf16.gmra.mxu0 %v1383
        %v2241 = vpop.f32.mrf.mxu0
        %v2242 = vadd.f32 %v2129, %v2241
        %v2243 = vpop.f32.mrf.mxu0
        %v2244 = vadd.f32 %v2131, %v2243
        %v2245 = vpop.f32.mrf.mxu0
        %v2246 = vadd.f32 %v2133, %v2245
        %v2247 = vpop.f32.mrf.mxu0
        %v2248 = vadd.f32 %v2135, %v2247
        %2249 = vmatprep.mubr.bf16.mxu0 %v1388
        %2250 = vmatmul.mubr.bf16.gmra.mxu0 %v1387
        %v2251 = vpop.f32.mrf.mxu0
        %v2252 = vadd.f32 %v2139, %v2251
        %v2253 = vpop.f32.mrf.mxu0
        %v2254 = vadd.f32 %v2141, %v2253
        %v2255 = vpop.f32.mrf.mxu0
        %v2256 = vadd.f32 %v2143, %v2255
        %v2257 = vpop.f32.mrf.mxu0
        %v2258 = vadd.f32 %v2145, %v2257
        %2259 = vmatprep.mubr.bf16.mxu0 %v1392
        %2260 = vmatmul.mubr.bf16.gmra.mxu0 %v1391
        %v2261 = vpop.f32.mrf.mxu0
        %v2262 = vadd.f32 %v2149, %v2261
        %v2263 = vpop.f32.mrf.mxu0
        %v2264 = vadd.f32 %v2151, %v2263
        %v2265 = vpop.f32.mrf.mxu0
        %v2266 = vadd.f32 %v2153, %v2265
        %v2267 = vpop.f32.mrf.mxu0
        %v2268 = vadd.f32 %v2155, %v2267
        %2269 = vmatprep.mubr.bf16.mxu0 %v1396
        %2270 = vmatmul.mubr.bf16.gmra.mxu0 %v1395
        %v2271 = vpop.f32.mrf.mxu0
        %v2272 = vadd.f32 %v2159, %v2271
        %v2273 = vpop.f32.mrf.mxu0
        %v2274 = vadd.f32 %v2161, %v2273
        %v2275 = vpop.f32.mrf.mxu0
        %v2276 = vadd.f32 %v2163, %v2275
        %v2277 = vpop.f32.mrf.mxu0
        %v2278 = vadd.f32 %v2165, %v2277
        %2279 = vdwg.mxu0
        %2280 = vmatprep.subr.bf16.mxu0 0
        %2281 = vmatpush1.bf16.msra.mxu0 %v1885
        %2282 = vmatprep.subr.bf16.mxu0 0
        %2283 = vmatpush1.bf16.msra.mxu0 %v1882
        %2284 = vmatprep.subr.bf16.mxu0 0
        %2285 = vmatpush1.bf16.msra.mxu0 %v1879
        %2286 = vmatprep.subr.bf16.mxu0 0
        %2287 = vmatpush1.bf16.msra.mxu0 %v1876
        %2288 = vmatprep.subr.bf16.mxu0 0
        %2289 = vmatpush1.bf16.msra.mxu0 %v1873
        %2290 = vmatprep.subr.bf16.mxu0 0
        %2291 = vmatpush1.bf16.msra.mxu0 %v1870
        %2292 = vmatprep.subr.bf16.mxu0 0
        %2293 = vmatpush1.bf16.msra.mxu0 %v1867
        %2294 = vmatprep.subr.bf16.mxu0 0
        %2295 = vmatpush1.bf16.msra.mxu0 %v1864
        %2296 = vmatprep.subr.bf16.mxu0 0
        %2297 = vmatpush2.bf16.msra.mxu0 %v1909
        %2298 = vmatprep.subr.bf16.mxu0 0
        %2299 = vmatpush2.bf16.msra.mxu0 %v1906
        %2300 = vmatprep.subr.bf16.mxu0 0
        %2301 = vmatpush2.bf16.msra.mxu0 %v1903
        %2302 = vmatprep.subr.bf16.mxu0 0
        %2303 = vmatpush2.bf16.msra.mxu0 %v1900
        %2304 = vmatprep.subr.bf16.mxu0 0
        %2305 = vmatpush2.bf16.msra.mxu0 %v1897
        %2306 = vmatprep.subr.bf16.mxu0 0
        %2307 = vmatpush2.bf16.msra.mxu0 %v1894
        %2308 = vmatprep.subr.bf16.mxu0 0
        %2309 = vmatpush2.bf16.msra.mxu0 %v1891
        %2310 = vmatprep.subr.bf16.mxu0 0
        %2311 = vmatpush2.bf16.msra.mxu0 %v1888
        %2312 = vmatprep.mubr.bf16.mxu0 %v1366
        %2313 = vmatmul.mubr.bf16.gmra.mxu0 %v1365
        %v2314 = vpop.f32.mrf.mxu0
        %v2315 = vadd.f32 %v1538, %v2314
        %v2316 = vpop.f32.mrf.mxu0
        %v2317 = vpop.f32.mrf.mxu0
        %v2318 = vadd.f32 %v1538, %v2317
        %v2319 = vpop.f32.mrf.mxu0
        %2320 = vmatprep.mubr.bf16.mxu0 %v1370
        %2321 = vmatmul.mubr.bf16.gmra.mxu0 %v1369
        %v2322 = vpop.f32.mrf.mxu0
        %v2323 = vadd.f32 %v1538, %v2322
        %v2324 = vpop.f32.mrf.mxu0
        %v2325 = vpop.f32.mrf.mxu0
        %v2326 = vadd.f32 %v1538, %v2325
        %v2327 = vpop.f32.mrf.mxu0
        %2328 = vmatprep.mubr.bf16.mxu0 %v1374
        %2329 = vmatmul.mubr.bf16.gmra.mxu0 %v1373
        %v2330 = vpop.f32.mrf.mxu0
        %v2331 = vadd.f32 %v1538, %v2330
        %v2332 = vpop.f32.mrf.mxu0
        %v2333 = vpop.f32.mrf.mxu0
        %v2334 = vadd.f32 %v1538, %v2333
        %v2335 = vpop.f32.mrf.mxu0
        %2336 = vmatprep.mubr.bf16.mxu0 %v1378
        %2337 = vmatmul.mubr.bf16.gmra.mxu0 %v1377
        %v2338 = vpop.f32.mrf.mxu0
        %v2339 = vadd.f32 %v1538, %v2338
        %v2340 = vpop.f32.mrf.mxu0
        %v2341 = vpop.f32.mrf.mxu0
        %v2342 = vadd.f32 %v1538, %v2341
        %v2343 = vpop.f32.mrf.mxu0
        %2344 = vmatprep.mubr.bf16.mxu0 %v1382
        %2345 = vmatmul.mubr.bf16.gmra.mxu0 %v1381
        %v2346 = vpop.f32.mrf.mxu0
        %v2347 = vadd.f32 %v1538, %v2346
        %v2348 = vpop.f32.mrf.mxu0
        %v2349 = vpop.f32.mrf.mxu0
        %v2350 = vadd.f32 %v1538, %v2349
        %v2351 = vpop.f32.mrf.mxu0
        %2352 = vmatprep.mubr.bf16.mxu0 %v1386
        %2353 = vmatmul.mubr.bf16.gmra.mxu0 %v1385
        %v2354 = vpop.f32.mrf.mxu0
        %v2355 = vadd.f32 %v1538, %v2354
        %v2356 = vpop.f32.mrf.mxu0
        %v2357 = vpop.f32.mrf.mxu0
        %v2358 = vadd.f32 %v1538, %v2357
        %v2359 = vpop.f32.mrf.mxu0
        %2360 = vmatprep.mubr.bf16.mxu0 %v1390
        %2361 = vmatmul.mubr.bf16.gmra.mxu0 %v1389
        %v2362 = vpop.f32.mrf.mxu0
        %v2363 = vadd.f32 %v1538, %v2362
        %v2364 = vpop.f32.mrf.mxu0
        %v2365 = vpop.f32.mrf.mxu0
        %v2366 = vadd.f32 %v1538, %v2365
        %v2367 = vpop.f32.mrf.mxu0
        %2368 = vmatprep.mubr.bf16.mxu0 %v1394
        %2369 = vmatmul.mubr.bf16.gmra.mxu0 %v1393
        %v2370 = vpop.f32.mrf.mxu0
        %v2371 = vadd.f32 %v1538, %v2370
        %v2372 = vpop.f32.mrf.mxu0
        %v2373 = vpop.f32.mrf.mxu0
        %v2374 = vadd.f32 %v1538, %v2373
        %v2375 = vpop.f32.mrf.mxu0
        %2376 = vdwg.mxu0
        %2377 = vmatprep.subr.bf16.mxu0 0
        %2378 = vmatpush1.bf16.msra.mxu0 %v1933
        %2379 = vmatprep.subr.bf16.mxu0 0
        %2380 = vmatpush1.bf16.msra.mxu0 %v1930
        %2381 = vmatprep.subr.bf16.mxu0 0
        %2382 = vmatpush1.bf16.msra.mxu0 %v1927
        %2383 = vmatprep.subr.bf16.mxu0 0
        %2384 = vmatpush1.bf16.msra.mxu0 %v1924
        %2385 = vmatprep.subr.bf16.mxu0 0
        %2386 = vmatpush1.bf16.msra.mxu0 %v1921
        %2387 = vmatprep.subr.bf16.mxu0 0
        %2388 = vmatpush1.bf16.msra.mxu0 %v1918
        %2389 = vmatprep.subr.bf16.mxu0 0
        %2390 = vmatpush1.bf16.msra.mxu0 %v1915
        %2391 = vmatprep.subr.bf16.mxu0 0
        %2392 = vmatpush1.bf16.msra.mxu0 %v1912
        %2393 = vmatprep.subr.bf16.mxu0 0
        %2394 = vmatpush2.bf16.msra.mxu0 %v1957
        %2395 = vmatprep.subr.bf16.mxu0 0
        %2396 = vmatpush2.bf16.msra.mxu0 %v1954
        %2397 = vmatprep.subr.bf16.mxu0 0
        %2398 = vmatpush2.bf16.msra.mxu0 %v1951
        %2399 = vmatprep.subr.bf16.mxu0 0
        %2400 = vmatpush2.bf16.msra.mxu0 %v1948
        %2401 = vmatprep.subr.bf16.mxu0 0
        %2402 = vmatpush2.bf16.msra.mxu0 %v1945
        %2403 = vmatprep.subr.bf16.mxu0 0
        %2404 = vmatpush2.bf16.msra.mxu0 %v1942
        %2405 = vmatprep.subr.bf16.mxu0 0
        %2406 = vmatpush2.bf16.msra.mxu0 %v1939
        %2407 = vmatprep.subr.bf16.mxu0 0
        %2408 = vmatpush2.bf16.msra.mxu0 %v1936
        %2409 = vmatprep.mubr.bf16.mxu0 %v1368
        %2410 = vmatmul.mubr.bf16.gmra.mxu0 %v1367
        %v2411 = vpop.f32.mrf.mxu0
        %v2412 = vadd.f32 %v2315, %v2411
        %v2413 = vpop.f32.mrf.mxu0
        %v2414 = vpop.f32.mrf.mxu0
        %v2415 = vadd.f32 %v2318, %v2414
        %v2416 = vpop.f32.mrf.mxu0
        %2417 = vmatprep.mubr.bf16.mxu0 %v1372
        %2418 = vmatmul.mubr.bf16.gmra.mxu0 %v1371
        %v2419 = vpop.f32.mrf.mxu0
        %v2420 = vadd.f32 %v2323, %v2419
        %v2421 = vpop.f32.mrf.mxu0
        %v2422 = vpop.f32.mrf.mxu0
        %v2423 = vadd.f32 %v2326, %v2422
        %v2424 = vpop.f32.mrf.mxu0
        %2425 = vmatprep.mubr.bf16.mxu0 %v1376
        %2426 = vmatmul.mubr.bf16.gmra.mxu0 %v1375
        %v2427 = vpop.f32.mrf.mxu0
        %v2428 = vadd.f32 %v2331, %v2427
        %v2429 = vpop.f32.mrf.mxu0
        %v2430 = vpop.f32.mrf.mxu0
        %v2431 = vadd.f32 %v2334, %v2430
        %v2432 = vpop.f32.mrf.mxu0
        %2433 = vmatprep.mubr.bf16.mxu0 %v1380
        %2434 = vmatmul.mubr.bf16.gmra.mxu0 %v1379
        %v2435 = vpop.f32.mrf.mxu0
        %v2436 = vadd.f32 %v2339, %v2435
        %v2437 = vpop.f32.mrf.mxu0
        %v2438 = vpop.f32.mrf.mxu0
        %v2439 = vadd.f32 %v2342, %v2438
        %v2440 = vpop.f32.mrf.mxu0
        %2441 = vmatprep.mubr.bf16.mxu0 %v1384
        %2442 = vmatmul.mubr.bf16.gmra.mxu0 %v1383
        %v2443 = vpop.f32.mrf.mxu0
        %v2444 = vadd.f32 %v2347, %v2443
        %v2445 = vpop.f32.mrf.mxu0
        %v2446 = vpop.f32.mrf.mxu0
        %v2447 = vadd.f32 %v2350, %v2446
        %v2448 = vpop.f32.mrf.mxu0
        %2449 = vmatprep.mubr.bf16.mxu0 %v1388
        %2450 = vmatmul.mubr.bf16.gmra.mxu0 %v1387
        %v2451 = vpop.f32.mrf.mxu0
        %v2452 = vadd.f32 %v2355, %v2451
        %v2453 = vpop.f32.mrf.mxu0
        %v2454 = vpop.f32.mrf.mxu0
        %v2455 = vadd.f32 %v2358, %v2454
        %v2456 = vpop.f32.mrf.mxu0
        %2457 = vmatprep.mubr.bf16.mxu0 %v1392
        %2458 = vmatmul.mubr.bf16.gmra.mxu0 %v1391
        %v2459 = vpop.f32.mrf.mxu0
        %v2460 = vadd.f32 %v2363, %v2459
        %v2461 = vpop.f32.mrf.mxu0
        %v2462 = vpop.f32.mrf.mxu0
        %v2463 = vadd.f32 %v2366, %v2462
        %v2464 = vpop.f32.mrf.mxu0
        %2465 = vmatprep.mubr.bf16.mxu0 %v1396
        %2466 = vmatmul.mubr.bf16.gmra.mxu0 %v1395
        %v2467 = vpop.f32.mrf.mxu0
        %v2468 = vadd.f32 %v2371, %v2467
        %v2469 = vpop.f32.mrf.mxu0
        %v2470 = vpop.f32.mrf.mxu0
        %v2471 = vadd.f32 %v2374, %v2470
        %v2472 = vpop.f32.mrf.mxu0
        %2473 = vdwg.mxu0
        %s2474 = scalar_lea.vmem %s6, 1
        %v2475 = vld [vmem:[%s2474] ss:$8 sm:$0x7]
        %s2476 = scalar_lea.vmem %s6, 2
        %v2477 = vld [vmem:[%s2476] ss:$8 sm:$0x7]
        %v2478 = vadd.f32 %v2202, %v2204
        %v2479 = vadd.f32 %v2478, %v2412
        %2480 = vadd.xlane.f32.xlu0 %v2479
        %v2481 = vpop.xlane.xlu0 %2480
        %v2482 = vadd.f32 %v2206, %v2208
        %v2483 = vadd.f32 %v2482, %v2415
        %2484 = vadd.xlane.f32.xlu0 %v2483
        %v2485 = vpop.xlane.xlu0 %2484
        %v2486 = vadd.f32 %v2212, %v2214
        %v2487 = vadd.f32 %v2486, %v2420
        %2488 = vadd.xlane.f32.xlu0 %v2487
        %v2489 = vpop.xlane.xlu0 %2488
        %v2490 = vadd.f32 %v2216, %v2218
        %v2491 = vadd.f32 %v2490, %v2423
        %2492 = vadd.xlane.f32.xlu0 %v2491
        %v2493 = vpop.xlane.xlu0 %2492
        %v2494 = vadd.f32 %v2222, %v2224
        %v2495 = vadd.f32 %v2494, %v2428
        %2496 = vadd.xlane.f32.xlu0 %v2495
        %v2497 = vpop.xlane.xlu0 %2496
        %v2498 = vadd.f32 %v2226, %v2228
        %v2499 = vadd.f32 %v2498, %v2431
        %2500 = vadd.xlane.f32.xlu0 %v2499
        %v2501 = vpop.xlane.xlu0 %2500
        %v2502 = vadd.f32 %v2232, %v2234
        %v2503 = vadd.f32 %v2502, %v2436
        %2504 = vadd.xlane.f32.xlu0 %v2503
        %v2505 = vpop.xlane.xlu0 %2504
        %v2506 = vadd.f32 %v2236, %v2238
        %v2507 = vadd.f32 %v2506, %v2439
        %2508 = vadd.xlane.f32.xlu0 %v2507
        %v2509 = vpop.xlane.xlu0 %2508
        %v2510 = vadd.f32 %v2242, %v2244
        %v2511 = vadd.f32 %v2510, %v2444
        %2512 = vadd.xlane.f32.xlu0 %v2511
        %v2513 = vpop.xlane.xlu0 %2512
        %v2514 = vadd.f32 %v2246, %v2248
        %v2515 = vadd.f32 %v2514, %v2447
        %2516 = vadd.xlane.f32.xlu0 %v2515
        %v2517 = vpop.xlane.xlu0 %2516
        %v2518 = vadd.f32 %v2252, %v2254
        %v2519 = vadd.f32 %v2518, %v2452
        %2520 = vadd.xlane.f32.xlu0 %v2519
        %v2521 = vpop.xlane.xlu0 %2520
        %v2522 = vadd.f32 %v2256, %v2258
        %v2523 = vadd.f32 %v2522, %v2455
        %2524 = vadd.xlane.f32.xlu0 %v2523
        %v2525 = vpop.xlane.xlu0 %2524
        %v2526 = vadd.f32 %v2262, %v2264
        %v2527 = vadd.f32 %v2526, %v2460
        %2528 = vadd.xlane.f32.xlu0 %v2527
        %v2529 = vpop.xlane.xlu0 %2528
        %v2530 = vadd.f32 %v2266, %v2268
        %v2531 = vadd.f32 %v2530, %v2463
        %2532 = vadd.xlane.f32.xlu0 %v2531
        %v2533 = vpop.xlane.xlu0 %2532
        %v2534 = vadd.f32 %v2272, %v2274
        %v2535 = vadd.f32 %v2534, %v2468
        %2536 = vadd.xlane.f32.xlu0 %v2535
        %v2537 = vpop.xlane.xlu0 %2536
        %v2538 = vadd.f32 %v2276, %v2278
        %v2539 = vadd.f32 %v2538, %v2471
        %2540 = vadd.xlane.f32.xlu0 %v2539
        %v2541 = vpop.xlane.xlu0 %2540
        %v2542 = vmul.f32 %v2481, 0.0033333334
        %v2543 = vmul.f32 %v2485, 0.0033333334
        %v2544 = vmul.f32 %v2489, 0.0033333334
        %v2545 = vmul.f32 %v2493, 0.0033333334
        %v2546 = vmul.f32 %v2497, 0.0033333334
        %v2547 = vmul.f32 %v2501, 0.0033333334
        %v2548 = vmul.f32 %v2505, 0.0033333334
        %v2549 = vmul.f32 %v2509, 0.0033333334
        %v2550 = vmul.f32 %v2513, 0.0033333334
        %v2551 = vmul.f32 %v2517, 0.0033333334
        %v2552 = vmul.f32 %v2521, 0.0033333334
        %v2553 = vmul.f32 %v2525, 0.0033333334
        %v2554 = vmul.f32 %v2529, 0.0033333334
        %v2555 = vmul.f32 %v2533, 0.0033333334
        %v2556 = vmul.f32 %v2537, 0.0033333334
        %v2557 = vmul.f32 %v2541, 0.0033333334
        %v2558 = vmul.f32 %v2202, %v2202
        %v2559 = vmul.f32 %v2204, %v2204
        %v2560 = vmul.f32 %v2412, %v2412
        %v2561 = vmul.f32 %v2206, %v2206
        %v2562 = vmul.f32 %v2208, %v2208
        %v2563 = vmul.f32 %v2415, %v2415
        %v2564 = vmul.f32 %v2212, %v2212
        %v2565 = vmul.f32 %v2214, %v2214
        %v2566 = vmul.f32 %v2420, %v2420
        %v2567 = vmul.f32 %v2216, %v2216
        %v2568 = vmul.f32 %v2218, %v2218
        %v2569 = vmul.f32 %v2423, %v2423
        %v2570 = vmul.f32 %v2222, %v2222
        %v2571 = vmul.f32 %v2224, %v2224
        %v2572 = vmul.f32 %v2428, %v2428
        %v2573 = vmul.f32 %v2226, %v2226
        %v2574 = vmul.f32 %v2228, %v2228
        %v2575 = vmul.f32 %v2431, %v2431
        %v2576 = vmul.f32 %v2232, %v2232
        %v2577 = vmul.f32 %v2234, %v2234
        %v2578 = vmul.f32 %v2436, %v2436
        %v2579 = vmul.f32 %v2236, %v2236
        %v2580 = vmul.f32 %v2238, %v2238
        %v2581 = vmul.f32 %v2439, %v2439
        %v2582 = vmul.f32 %v2242, %v2242
        %v2583 = vmul.f32 %v2244, %v2244
        %v2584 = vmul.f32 %v2444, %v2444
        %v2585 = vmul.f32 %v2246, %v2246
        %v2586 = vmul.f32 %v2248, %v2248
        %v2587 = vmul.f32 %v2447, %v2447
        %v2588 = vmul.f32 %v2252, %v2252
        %v2589 = vmul.f32 %v2254, %v2254
        %v2590 = vmul.f32 %v2452, %v2452
        %v2591 = vmul.f32 %v2256, %v2256
        %v2592 = vmul.f32 %v2258, %v2258
        %v2593 = vmul.f32 %v2455, %v2455
        %v2594 = vmul.f32 %v2262, %v2262
        %v2595 = vmul.f32 %v2264, %v2264
        %v2596 = vmul.f32 %v2460, %v2460
        %v2597 = vmul.f32 %v2266, %v2266
        %v2598 = vmul.f32 %v2268, %v2268
        %v2599 = vmul.f32 %v2463, %v2463
        %v2600 = vmul.f32 %v2272, %v2272
        %v2601 = vmul.f32 %v2274, %v2274
        %v2602 = vmul.f32 %v2468, %v2468
        %v2603 = vmul.f32 %v2276, %v2276
        %v2604 = vmul.f32 %v2278, %v2278
        %v2605 = vmul.f32 %v2471, %v2471
        %v2606 = vadd.f32 %v2558, %v2559
        %v2607 = vadd.f32 %v2606, %v2560
        %2608 = vadd.xlane.f32.xlu0 %v2607
        %v2609 = vpop.xlane.xlu0 %2608
        %v2610 = vadd.f32 %v2561, %v2562
        %v2611 = vadd.f32 %v2610, %v2563
        %2612 = vadd.xlane.f32.xlu0 %v2611
        %v2613 = vpop.xlane.xlu0 %2612
        %v2614 = vadd.f32 %v2564, %v2565
        %v2615 = vadd.f32 %v2614, %v2566
        %2616 = vadd.xlane.f32.xlu0 %v2615
        %v2617 = vpop.xlane.xlu0 %2616
        %v2618 = vadd.f32 %v2567, %v2568
        %v2619 = vadd.f32 %v2618, %v2569
        %2620 = vadd.xlane.f32.xlu0 %v2619
        %v2621 = vpop.xlane.xlu0 %2620
        %v2622 = vadd.f32 %v2570, %v2571
        %v2623 = vadd.f32 %v2622, %v2572
        %2624 = vadd.xlane.f32.xlu0 %v2623
        %v2625 = vpop.xlane.xlu0 %2624
        %v2626 = vadd.f32 %v2573, %v2574
        %v2627 = vadd.f32 %v2626, %v2575
        %2628 = vadd.xlane.f32.xlu0 %v2627
        %v2629 = vpop.xlane.xlu0 %2628
        %v2630 = vadd.f32 %v2576, %v2577
        %v2631 = vadd.f32 %v2630, %v2578
        %2632 = vadd.xlane.f32.xlu0 %v2631
        %v2633 = vpop.xlane.xlu0 %2632
        %v2634 = vadd.f32 %v2579, %v2580
        %v2635 = vadd.f32 %v2634, %v2581
        %2636 = vadd.xlane.f32.xlu0 %v2635
        %v2637 = vpop.xlane.xlu0 %2636
        %v2638 = vadd.f32 %v2582, %v2583
        %v2639 = vadd.f32 %v2638, %v2584
        %2640 = vadd.xlane.f32.xlu0 %v2639
        %v2641 = vpop.xlane.xlu0 %2640
        %v2642 = vadd.f32 %v2585, %v2586
        %v2643 = vadd.f32 %v2642, %v2587
        %2644 = vadd.xlane.f32.xlu0 %v2643
        %v2645 = vpop.xlane.xlu0 %2644
        %v2646 = vadd.f32 %v2588, %v2589
        %v2647 = vadd.f32 %v2646, %v2590
        %2648 = vadd.xlane.f32.xlu0 %v2647
        %v2649 = vpop.xlane.xlu0 %2648
        %v2650 = vadd.f32 %v2591, %v2592
        %v2651 = vadd.f32 %v2650, %v2593
        %2652 = vadd.xlane.f32.xlu0 %v2651
        %v2653 = vpop.xlane.xlu0 %2652
        %v2654 = vadd.f32 %v2594, %v2595
        %v2655 = vadd.f32 %v2654, %v2596
        %2656 = vadd.xlane.f32.xlu0 %v2655
        %v2657 = vpop.xlane.xlu0 %2656
        %v2658 = vadd.f32 %v2597, %v2598
        %v2659 = vadd.f32 %v2658, %v2599
        %2660 = vadd.xlane.f32.xlu0 %v2659
        %v2661 = vpop.xlane.xlu0 %2660
        %v2662 = vadd.f32 %v2600, %v2601
        %v2663 = vadd.f32 %v2662, %v2602
        %2664 = vadd.xlane.f32.xlu0 %v2663
        %v2665 = vpop.xlane.xlu0 %2664
        %v2666 = vadd.f32 %v2603, %v2604
        %v2667 = vadd.f32 %v2666, %v2605
        %2668 = vadd.xlane.f32.xlu0 %v2667
        %v2669 = vpop.xlane.xlu0 %2668
        %v2670 = vmul.f32 %v2609, 0.0033333334
        %v2671 = vmul.f32 %v2613, 0.0033333334
        %v2672 = vmul.f32 %v2617, 0.0033333334
        %v2673 = vmul.f32 %v2621, 0.0033333334
        %v2674 = vmul.f32 %v2625, 0.0033333334
        %v2675 = vmul.f32 %v2629, 0.0033333334
        %v2676 = vmul.f32 %v2633, 0.0033333334
        %v2677 = vmul.f32 %v2637, 0.0033333334
        %v2678 = vmul.f32 %v2641, 0.0033333334
        %v2679 = vmul.f32 %v2645, 0.0033333334
        %v2680 = vmul.f32 %v2649, 0.0033333334
        %v2681 = vmul.f32 %v2653, 0.0033333334
        %v2682 = vmul.f32 %v2657, 0.0033333334
        %v2683 = vmul.f32 %v2661, 0.0033333334
        %v2684 = vmul.f32 %v2665, 0.0033333334
        %v2685 = vmul.f32 %v2669, 0.0033333334
        %v2686 = vmul.f32 %v2542, %v2542
        %v2687 = vmul.f32 %v2543, %v2543
        %v2688 = vmul.f32 %v2544, %v2544
        %v2689 = vmul.f32 %v2545, %v2545
        %v2690 = vmul.f32 %v2546, %v2546
        %v2691 = vmul.f32 %v2547, %v2547
        %v2692 = vmul.f32 %v2548, %v2548
        %v2693 = vmul.f32 %v2549, %v2549
        %v2694 = vmul.f32 %v2550, %v2550
        %v2695 = vmul.f32 %v2551, %v2551
        %v2696 = vmul.f32 %v2552, %v2552
        %v2697 = vmul.f32 %v2553, %v2553
        %v2698 = vmul.f32 %v2554, %v2554
        %v2699 = vmul.f32 %v2555, %v2555
        %v2700 = vmul.f32 %v2556, %v2556
        %v2701 = vmul.f32 %v2557, %v2557
        %v2702 = vsub.f32 %v2670, %v2686
        %v2703 = vsub.f32 %v2671, %v2687
        %v2704 = vsub.f32 %v2672, %v2688
        %v2705 = vsub.f32 %v2673, %v2689
        %v2706 = vsub.f32 %v2674, %v2690
        %v2707 = vsub.f32 %v2675, %v2691
        %v2708 = vsub.f32 %v2676, %v2692
        %v2709 = vsub.f32 %v2677, %v2693
        %v2710 = vsub.f32 %v2678, %v2694
        %v2711 = vsub.f32 %v2679, %v2695
        %v2712 = vsub.f32 %v2680, %v2696
        %v2713 = vsub.f32 %v2681, %v2697
        %v2714 = vsub.f32 %v2682, %v2698
        %v2715 = vsub.f32 %v2683, %v2699
        %v2716 = vsub.f32 %v2684, %v2700
        %v2717 = vsub.f32 %v2685, %v2701
        %v2718 = vmax.f32 %v2702, 0.0
        %v2719 = vmax.f32 %v2703, 0.0
        %v2720 = vmax.f32 %v2704, 0.0
        %v2721 = vmax.f32 %v2705, 0.0
        %v2722 = vmax.f32 %v2706, 0.0
        %v2723 = vmax.f32 %v2707, 0.0
        %v2724 = vmax.f32 %v2708, 0.0
        %v2725 = vmax.f32 %v2709, 0.0
        %v2726 = vmax.f32 %v2710, 0.0
        %v2727 = vmax.f32 %v2711, 0.0
        %v2728 = vmax.f32 %v2712, 0.0
        %v2729 = vmax.f32 %v2713, 0.0
        %v2730 = vmax.f32 %v2714, 0.0
        %v2731 = vmax.f32 %v2715, 0.0
        %v2732 = vmax.f32 %v2716, 0.0
        %v2733 = vmax.f32 %v2717, 0.0
        %v2734 = vsub.f32 %v2202, %v2542
        %v2735 = vsub.f32 %v2204, %v2542
        %v2736 = vsub.f32 %v2412, %v2542
        %v2737 = vsub.f32 %v2206, %v2543
        %v2738 = vsub.f32 %v2208, %v2543
        %v2739 = vsub.f32 %v2415, %v2543
        %v2740 = vsub.f32 %v2212, %v2544
        %v2741 = vsub.f32 %v2214, %v2544
        %v2742 = vsub.f32 %v2420, %v2544
        %v2743 = vsub.f32 %v2216, %v2545
        %v2744 = vsub.f32 %v2218, %v2545
        %v2745 = vsub.f32 %v2423, %v2545
        %v2746 = vsub.f32 %v2222, %v2546
        %v2747 = vsub.f32 %v2224, %v2546
        %v2748 = vsub.f32 %v2428, %v2546
        %v2749 = vsub.f32 %v2226, %v2547
        %v2750 = vsub.f32 %v2228, %v2547
        %v2751 = vsub.f32 %v2431, %v2547
        %v2752 = vsub.f32 %v2232, %v2548
        %v2753 = vsub.f32 %v2234, %v2548
        %v2754 = vsub.f32 %v2436, %v2548
        %v2755 = vsub.f32 %v2236, %v2549
        %v2756 = vsub.f32 %v2238, %v2549
        %v2757 = vsub.f32 %v2439, %v2549
        %v2758 = vsub.f32 %v2242, %v2550
        %v2759 = vsub.f32 %v2244, %v2550
        %v2760 = vsub.f32 %v2444, %v2550
        %v2761 = vsub.f32 %v2246, %v2551
        %v2762 = vsub.f32 %v2248, %v2551
        %v2763 = vsub.f32 %v2447, %v2551
        %v2764 = vsub.f32 %v2252, %v2552
        %v2765 = vsub.f32 %v2254, %v2552
        %v2766 = vsub.f32 %v2452, %v2552
        %v2767 = vsub.f32 %v2256, %v2553
        %v2768 = vsub.f32 %v2258, %v2553
        %v2769 = vsub.f32 %v2455, %v2553
        %v2770 = vsub.f32 %v2262, %v2554
        %v2771 = vsub.f32 %v2264, %v2554
        %v2772 = vsub.f32 %v2460, %v2554
        %v2773 = vsub.f32 %v2266, %v2555
        %v2774 = vsub.f32 %v2268, %v2555
        %v2775 = vsub.f32 %v2463, %v2555
        %v2776 = vsub.f32 %v2272, %v2556
        %v2777 = vsub.f32 %v2274, %v2556
        %v2778 = vsub.f32 %v2468, %v2556
        %v2779 = vsub.f32 %v2276, %v2557
        %v2780 = vsub.f32 %v2278, %v2557
        %v2781 = vsub.f32 %v2471, %v2557
        %v2782 = vadd.f32 %v2718, 1e-05
        %v2783 = vadd.f32 %v2719, 1e-05
        %v2784 = vadd.f32 %v2720, 1e-05
        %v2785 = vadd.f32 %v2721, 1e-05
        %v2786 = vadd.f32 %v2722, 1e-05
        %v2787 = vadd.f32 %v2723, 1e-05
        %v2788 = vadd.f32 %v2724, 1e-05
        %v2789 = vadd.f32 %v2725, 1e-05
        %v2790 = vadd.f32 %v2726, 1e-05
        %v2791 = vadd.f32 %v2727, 1e-05
        %v2792 = vadd.f32 %v2728, 1e-05
        %v2793 = vadd.f32 %v2729, 1e-05
        %v2794 = vadd.f32 %v2730, 1e-05
        %v2795 = vadd.f32 %v2731, 1e-05
        %v2796 = vadd.f32 %v2732, 1e-05
        %v2797 = vadd.f32 %v2733, 1e-05
        %v2798 = vrsqrt.pop %v2782
        %v2799 = vrsqrt.pop %v2783
        %v2800 = vrsqrt.pop %v2784
        %v2801 = vrsqrt.pop %v2785
        %v2802 = vrsqrt.pop %v2786
        %v2803 = vrsqrt.pop %v2787
        %v2804 = vrsqrt.pop %v2788
        %v2805 = vrsqrt.pop %v2789
        %v2806 = vrsqrt.pop %v2790
        %v2807 = vrsqrt.pop %v2791
        %v2808 = vrsqrt.pop %v2792
        %v2809 = vrsqrt.pop %v2793
        %v2810 = vrsqrt.pop %v2794
        %v2811 = vrsqrt.pop %v2795
        %v2812 = vrsqrt.pop %v2796
        %v2813 = vrsqrt.pop %v2797
        %v2814 = vmul.f32 %v2734, %v2798
        %v2815 = vmul.f32 %v2735, %v2798
        %v2816 = vmul.f32 %v2736, %v2798
        %v2817 = vmul.f32 %v2737, %v2799
        %v2818 = vmul.f32 %v2738, %v2799
        %v2819 = vmul.f32 %v2739, %v2799
        %v2820 = vmul.f32 %v2740, %v2800
        %v2821 = vmul.f32 %v2741, %v2800
        %v2822 = vmul.f32 %v2742, %v2800
        %v2823 = vmul.f32 %v2743, %v2801
        %v2824 = vmul.f32 %v2744, %v2801
        %v2825 = vmul.f32 %v2745, %v2801
        %v2826 = vmul.f32 %v2746, %v2802
        %v2827 = vmul.f32 %v2747, %v2802
        %v2828 = vmul.f32 %v2748, %v2802
        %v2829 = vmul.f32 %v2749, %v2803
        %v2830 = vmul.f32 %v2750, %v2803
        %v2831 = vmul.f32 %v2751, %v2803
        %v2832 = vmul.f32 %v2752, %v2804
        %v2833 = vmul.f32 %v2753, %v2804
        %v2834 = vmul.f32 %v2754, %v2804
        %v2835 = vmul.f32 %v2755, %v2805
        %v2836 = vmul.f32 %v2756, %v2805
        %v2837 = vmul.f32 %v2757, %v2805
        %v2838 = vmul.f32 %v2758, %v2806
        %v2839 = vmul.f32 %v2759, %v2806
        %v2840 = vmul.f32 %v2760, %v2806
        %v2841 = vmul.f32 %v2761, %v2807
        %v2842 = vmul.f32 %v2762, %v2807
        %v2843 = vmul.f32 %v2763, %v2807
        %v2844 = vmul.f32 %v2764, %v2808
        %v2845 = vmul.f32 %v2765, %v2808
        %v2846 = vmul.f32 %v2766, %v2808
        %v2847 = vmul.f32 %v2767, %v2809
        %v2848 = vmul.f32 %v2768, %v2809
        %v2849 = vmul.f32 %v2769, %v2809
        %v2850 = vmul.f32 %v2770, %v2810
        %v2851 = vmul.f32 %v2771, %v2810
        %v2852 = vmul.f32 %v2772, %v2810
        %v2853 = vmul.f32 %v2773, %v2811
        %v2854 = vmul.f32 %v2774, %v2811
        %v2855 = vmul.f32 %v2775, %v2811
        %v2856 = vmul.f32 %v2776, %v2812
        %v2857 = vmul.f32 %v2777, %v2812
        %v2858 = vmul.f32 %v2778, %v2812
        %v2859 = vmul.f32 %v2779, %v2813
        %v2860 = vmul.f32 %v2780, %v2813
        %v2861 = vmul.f32 %v2781, %v2813
        %v2863 = vlaneseq
        %v2864 = vshrl.u32 %v2863, 7
        %v2865 = vsub.s32 0, %v2864
        %v2866 = vrot.slane %v2475, %v2865
        %v2867 = vlaneseq
        %v2868 = vshrl.u32 %v2867, 7
        %v2869 = vsub.s32 1, %v2868
        %v2870 = vrot.slane %v2475, %v2869
        %v2871 = vlaneseq
        %v2872 = vshrl.u32 %v2871, 7
        %v2873 = vsub.s32 2, %v2872
        %v2874 = vrot.slane %v2475, %v2873
        %v2878 = vmul.f32 %v2814, %v2866
        %v2879 = vmul.f32 %v2815, %v2870
        %v2880 = vmul.f32 %v2816, %v2874
        %v2881 = vmul.f32 %v2817, %v2866
        %v2882 = vmul.f32 %v2818, %v2870
        %v2883 = vmul.f32 %v2819, %v2874
        %v2884 = vmul.f32 %v2820, %v2866
        %v2885 = vmul.f32 %v2821, %v2870
        %v2886 = vmul.f32 %v2822, %v2874
        %v2887 = vmul.f32 %v2823, %v2866
        %v2888 = vmul.f32 %v2824, %v2870
        %v2889 = vmul.f32 %v2825, %v2874
        %v2890 = vmul.f32 %v2826, %v2866
        %v2891 = vmul.f32 %v2827, %v2870
        %v2892 = vmul.f32 %v2828, %v2874
        %v2893 = vmul.f32 %v2829, %v2866
        %v2894 = vmul.f32 %v2830, %v2870
        %v2895 = vmul.f32 %v2831, %v2874
        %v2896 = vmul.f32 %v2832, %v2866
        %v2897 = vmul.f32 %v2833, %v2870
        %v2898 = vmul.f32 %v2834, %v2874
        %v2899 = vmul.f32 %v2835, %v2866
        %v2900 = vmul.f32 %v2836, %v2870
        %v2901 = vmul.f32 %v2837, %v2874
        %v2902 = vmul.f32 %v2838, %v2866
        %v2903 = vmul.f32 %v2839, %v2870
        %v2904 = vmul.f32 %v2840, %v2874
        %v2905 = vmul.f32 %v2841, %v2866
        %v2906 = vmul.f32 %v2842, %v2870
        %v2907 = vmul.f32 %v2843, %v2874
        %v2908 = vmul.f32 %v2844, %v2866
        %v2909 = vmul.f32 %v2845, %v2870
        %v2910 = vmul.f32 %v2846, %v2874
        %v2911 = vmul.f32 %v2847, %v2866
        %v2912 = vmul.f32 %v2848, %v2870
        %v2913 = vmul.f32 %v2849, %v2874
        %v2914 = vmul.f32 %v2850, %v2866
        %v2915 = vmul.f32 %v2851, %v2870
        %v2916 = vmul.f32 %v2852, %v2874
        %v2917 = vmul.f32 %v2853, %v2866
        %v2918 = vmul.f32 %v2854, %v2870
        %v2919 = vmul.f32 %v2855, %v2874
        %v2920 = vmul.f32 %v2856, %v2866
        %v2921 = vmul.f32 %v2857, %v2870
        %v2922 = vmul.f32 %v2858, %v2874
        %v2923 = vmul.f32 %v2859, %v2866
        %v2924 = vmul.f32 %v2860, %v2870
        %v2925 = vmul.f32 %v2861, %v2874
        %v2927 = vlaneseq
        %v2928 = vshrl.u32 %v2927, 7
        %v2929 = vsub.s32 0, %v2928
        %v2930 = vrot.slane %v2477, %v2929
        %v2931 = vlaneseq
        %v2932 = vshrl.u32 %v2931, 7
        %v2933 = vsub.s32 1, %v2932
        %v2934 = vrot.slane %v2477, %v2933
        %v2935 = vlaneseq
        %v2936 = vshrl.u32 %v2935, 7
        %v2937 = vsub.s32 2, %v2936
        %v2938 = vrot.slane %v2477, %v2937
        %v2942 = vadd.f32 %v2878, %v2930
        %v2943 = vadd.f32 %v2879, %v2934
        %v2944 = vadd.f32 %v2880, %v2938
        %v2945 = vadd.f32 %v2881, %v2930
        %v2946 = vadd.f32 %v2882, %v2934
        %v2947 = vadd.f32 %v2883, %v2938
        %v2948 = vadd.f32 %v2884, %v2930
        %v2949 = vadd.f32 %v2885, %v2934
        %v2950 = vadd.f32 %v2886, %v2938
        %v2951 = vadd.f32 %v2887, %v2930
        %v2952 = vadd.f32 %v2888, %v2934
        %v2953 = vadd.f32 %v2889, %v2938
        %v2954 = vadd.f32 %v2890, %v2930
        %v2955 = vadd.f32 %v2891, %v2934
        %v2956 = vadd.f32 %v2892, %v2938
        %v2957 = vadd.f32 %v2893, %v2930
        %v2958 = vadd.f32 %v2894, %v2934
        %v2959 = vadd.f32 %v2895, %v2938
        %v2960 = vadd.f32 %v2896, %v2930
        %v2961 = vadd.f32 %v2897, %v2934
        %v2962 = vadd.f32 %v2898, %v2938
        %v2963 = vadd.f32 %v2899, %v2930
        %v2964 = vadd.f32 %v2900, %v2934
        %v2965 = vadd.f32 %v2901, %v2938
        %v2966 = vadd.f32 %v2902, %v2930
        %v2967 = vadd.f32 %v2903, %v2934
        %v2968 = vadd.f32 %v2904, %v2938
        %v2969 = vadd.f32 %v2905, %v2930
        %v2970 = vadd.f32 %v2906, %v2934
        %v2971 = vadd.f32 %v2907, %v2938
        %v2972 = vadd.f32 %v2908, %v2930
        %v2973 = vadd.f32 %v2909, %v2934
        %v2974 = vadd.f32 %v2910, %v2938
        %v2975 = vadd.f32 %v2911, %v2930
        %v2976 = vadd.f32 %v2912, %v2934
        %v2977 = vadd.f32 %v2913, %v2938
        %v2978 = vadd.f32 %v2914, %v2930
        %v2979 = vadd.f32 %v2915, %v2934
        %v2980 = vadd.f32 %v2916, %v2938
        %v2981 = vadd.f32 %v2917, %v2930
        %v2982 = vadd.f32 %v2918, %v2934
        %v2983 = vadd.f32 %v2919, %v2938
        %v2984 = vadd.f32 %v2920, %v2930
        %v2985 = vadd.f32 %v2921, %v2934
        %v2986 = vadd.f32 %v2922, %v2938
        %v2987 = vadd.f32 %v2923, %v2930
        %v2988 = vadd.f32 %v2924, %v2934
        %v2989 = vadd.f32 %v2925, %v2938
        %v2990 = vld [vmem:[%s314] sm:$0xff]
        %v2991 = vld [vmem:[%s314 + $0x8] sm:$0xff]
        %v2992 = vld [vmem:[%s314 + $0x10] sm:$0xff]
        %v2993 = vld [vmem:[%s314 + $0x18] sm:$0xff]
        %v2994 = vld [vmem:[%s314 + $0x20] sm:$0xff]
        %v2995 = vld [vmem:[%s314 + $0x28] sm:$0xff]
        %v2996 = vld [vmem:[%s314 + $0x30] sm:$0xff]
        %v2997 = vld [vmem:[%s314 + $0x38] sm:$0xff]
        %v2998 = vld [vmem:[%s314 + $0x40] sm:$0xff]
        %v2999 = vld [vmem:[%s314 + $0x48] sm:$0xff]
        %v3000 = vld [vmem:[%s314 + $0x50] sm:$0xff]
        %v3001 = vld [vmem:[%s314 + $0x58] sm:$0xff]
        %v3002 = vld [vmem:[%s314 + $0x60] sm:$0xff]
        %v3003 = vld [vmem:[%s314 + $0x68] sm:$0xff]
        %v3004 = vld [vmem:[%s314 + $0x70] sm:$0xff]
        %v3005 = vld [vmem:[%s314 + $0x78] sm:$0xff]
        %v3006 = vpack.c.bf16 %v2991, %v2990
        %v3007 = vpack.c.bf16 %v2993, %v2992
        %v3008 = vpack.c.bf16 %v2995, %v2994
        %v3009 = vpack.c.bf16 %v2997, %v2996
        %v3010 = vpack.c.bf16 %v2999, %v2998
        %v3011 = vpack.c.bf16 %v3001, %v3000
        %v3012 = vpack.c.bf16 %v3003, %v3002
        %v3013 = vpack.c.bf16 %v3005, %v3004
        %v3014 = vld [vmem:[%s4] sm:$0xff]
        %v3015 = vld [vmem:[%s4 + $0x8] sm:$0xf]
        %s3016 = scalar_lea.vmem %s6, 3
        %v3017 = vld [vmem:[%s3016] ss:$8 sm:$0x7]
        %v3019 = vlaneseq
        %v3020 = vshrl.u32 %v3019, 7
        %v3021 = vsub.s32 0, %v3020
        %v3022 = vrot.slane %v3017, %v3021
        %v3023 = vlaneseq
        %v3024 = vshrl.u32 %v3023, 7
        %v3025 = vsub.s32 1, %v3024
        %v3026 = vrot.slane %v3017, %v3025
        %v3027 = vlaneseq
        %v3028 = vshrl.u32 %v3027, 7
        %v3029 = vsub.s32 2, %v3028
        %v3030 = vrot.slane %v3017, %v3029
        %v3036 = vunpack.c.l.b16 %v3014
        %v3037 = vunpack.c.h.b16 %v3014
        %v3038 = vunpack.c.l.b16 %v3015
        %v3039 = vpack.c.b16 %v3036, %v3036
        %v3040 = vpack.c.b16 %v3037, %v3037
        %v3041 = vpack.c.b16 %v3038, %v3038
        %vm3042 = vcmask 64512
        %v3044 = vsel %vm3042, %v3006, 0
        %v3047 = vsel %vm3042, %v3007, 0
        %v3050 = vsel %vm3042, %v3008, 0
        %v3053 = vsel %vm3042, %v3009, 0
        %v3056 = vsel %vm3042, %v3010, 0
        %v3059 = vsel %vm3042, %v3011, 0
        %v3062 = vsel %vm3042, %v3012, 0
        %v3065 = vsel %vm3042, %v3013, 0
        %vm3067 = vcmask 1043456
        %v3069 = vsel %vm3067, %v3039, 0
        %v3072 = vsel %vm3067, %v3040, 0
        %v3075 = vsel %vm3067, %v3041, 0
        %3077 = vmatprep.subr.bf16.mxu0 0
        %3078 = vmatpush1.bf16.msra.mxu0 0
        %3079 = vmatprep.subr.bf16.mxu0 0
        %3080 = vmatpush1.bf16.msra.mxu0 0
        %3081 = vmatprep.subr.bf16.mxu0 0
        %3082 = vmatpush1.bf16.msra.mxu0 0
        %3083 = vmatprep.subr.bf16.mxu0 0
        %3084 = vmatpush1.bf16.msra.mxu0 0
        %3085 = vmatprep.subr.bf16.mxu0 0
        %3086 = vmatpush1.bf16.msra.mxu0 0
        %3087 = vmatprep.subr.bf16.mxu0 0
        %3088 = vmatpush1.bf16.msra.mxu0 0
        %3089 = vmatprep.subr.bf16.mxu0 0
        %3090 = vmatpush1.bf16.msra.mxu0 0
        %3091 = vmatprep.subr.bf16.mxu0 %v3072
        %3092 = vmatpush1.bf16.msra.mxu0 %v3069
        %3093 = vmatprep.subr.bf16.mxu0 0
        %3094 = vmatpush2.bf16.msra.mxu0 0
        %3095 = vmatprep.subr.bf16.mxu0 0
        %3096 = vmatpush2.bf16.msra.mxu0 0
        %3097 = vmatprep.subr.bf16.mxu0 0
        %3098 = vmatpush2.bf16.msra.mxu0 0
        %3099 = vmatprep.subr.bf16.mxu0 0
        %3100 = vmatpush2.bf16.msra.mxu0 0
        %3101 = vmatprep.subr.bf16.mxu0 0
        %3102 = vmatpush2.bf16.msra.mxu0 0
        %3103 = vmatprep.subr.bf16.mxu0 0
        %3104 = vmatpush2.bf16.msra.mxu0 0
        %3105 = vmatprep.subr.bf16.mxu0 0
        %3106 = vmatpush2.bf16.msra.mxu0 0
        %3107 = vmatprep.subr.bf16.mxu0 0
        %3108 = vmatpush2.bf16.msra.mxu0 0
        %3109 = vmatprep.mubr.bf16.mxu0 0
        %3110 = vmatmul.mubr.bf16.gmra.mxu0 %v3044
        %v3111 = vpop.f32.mrf.mxu0
        %v3112 = vadd.f32 %v3022, %v3111
        %v3113 = vpop.f32.mrf.mxu0
        %v3114 = vadd.f32 %v3026, %v3113
        %v3115 = vpop.f32.mrf.mxu0
        %v3116 = vadd.f32 %v3022, %v3115
        %v3117 = vpop.f32.mrf.mxu0
        %v3118 = vadd.f32 %v3026, %v3117
        %3119 = vmatprep.mubr.bf16.mxu0 0
        %3120 = vmatmul.mubr.bf16.gmra.mxu0 %v3047
        %v3121 = vpop.f32.mrf.mxu0
        %v3122 = vadd.f32 %v3022, %v3121
        %v3123 = vpop.f32.mrf.mxu0
        %v3124 = vadd.f32 %v3026, %v3123
        %v3125 = vpop.f32.mrf.mxu0
        %v3126 = vadd.f32 %v3022, %v3125
        %v3127 = vpop.f32.mrf.mxu0
        %v3128 = vadd.f32 %v3026, %v3127
        %3129 = vmatprep.mubr.bf16.mxu0 0
        %3130 = vmatmul.mubr.bf16.gmra.mxu0 %v3050
        %v3131 = vpop.f32.mrf.mxu0
        %v3132 = vadd.f32 %v3022, %v3131
        %v3133 = vpop.f32.mrf.mxu0
        %v3134 = vadd.f32 %v3026, %v3133
        %v3135 = vpop.f32.mrf.mxu0
        %v3136 = vadd.f32 %v3022, %v3135
        %v3137 = vpop.f32.mrf.mxu0
        %v3138 = vadd.f32 %v3026, %v3137
        %3139 = vmatprep.mubr.bf16.mxu0 0
        %3140 = vmatmul.mubr.bf16.gmra.mxu0 %v3053
        %v3141 = vpop.f32.mrf.mxu0
        %v3142 = vadd.f32 %v3022, %v3141
        %v3143 = vpop.f32.mrf.mxu0
        %v3144 = vadd.f32 %v3026, %v3143
        %v3145 = vpop.f32.mrf.mxu0
        %v3146 = vadd.f32 %v3022, %v3145
        %v3147 = vpop.f32.mrf.mxu0
        %v3148 = vadd.f32 %v3026, %v3147
        %3149 = vmatprep.mubr.bf16.mxu0 0
        %3150 = vmatmul.mubr.bf16.gmra.mxu0 %v3056
        %v3151 = vpop.f32.mrf.mxu0
        %v3152 = vadd.f32 %v3022, %v3151
        %v3153 = vpop.f32.mrf.mxu0
        %v3154 = vadd.f32 %v3026, %v3153
        %v3155 = vpop.f32.mrf.mxu0
        %v3156 = vadd.f32 %v3022, %v3155
        %v3157 = vpop.f32.mrf.mxu0
        %v3158 = vadd.f32 %v3026, %v3157
        %3159 = vmatprep.mubr.bf16.mxu0 0
        %3160 = vmatmul.mubr.bf16.gmra.mxu0 %v3059
        %v3161 = vpop.f32.mrf.mxu0
        %v3162 = vadd.f32 %v3022, %v3161
        %v3163 = vpop.f32.mrf.mxu0
        %v3164 = vadd.f32 %v3026, %v3163
        %v3165 = vpop.f32.mrf.mxu0
        %v3166 = vadd.f32 %v3022, %v3165
        %v3167 = vpop.f32.mrf.mxu0
        %v3168 = vadd.f32 %v3026, %v3167
        %3169 = vmatprep.mubr.bf16.mxu0 0
        %3170 = vmatmul.mubr.bf16.gmra.mxu0 %v3062
        %v3171 = vpop.f32.mrf.mxu0
        %v3172 = vadd.f32 %v3022, %v3171
        %v3173 = vpop.f32.mrf.mxu0
        %v3174 = vadd.f32 %v3026, %v3173
        %v3175 = vpop.f32.mrf.mxu0
        %v3176 = vadd.f32 %v3022, %v3175
        %v3177 = vpop.f32.mrf.mxu0
        %v3178 = vadd.f32 %v3026, %v3177
        %3179 = vmatprep.mubr.bf16.mxu0 0
        %3180 = vmatmul.mubr.bf16.gmra.mxu0 %v3065
        %v3181 = vpop.f32.mrf.mxu0
        %v3182 = vadd.f32 %v3022, %v3181
        %v3183 = vpop.f32.mrf.mxu0
        %v3184 = vadd.f32 %v3026, %v3183
        %v3185 = vpop.f32.mrf.mxu0
        %v3186 = vadd.f32 %v3022, %v3185
        %v3187 = vpop.f32.mrf.mxu0
        %v3188 = vadd.f32 %v3026, %v3187
        %3189 = vdwg.mxu0
        %3190 = vmatprep.subr.bf16.mxu0 0
        %3191 = vmatpush1.bf16.msra.mxu0 0
        %3192 = vmatprep.subr.bf16.mxu0 0
        %3193 = vmatpush1.bf16.msra.mxu0 0
        %3194 = vmatprep.subr.bf16.mxu0 0
        %3195 = vmatpush1.bf16.msra.mxu0 0
        %3196 = vmatprep.subr.bf16.mxu0 0
        %3197 = vmatpush1.bf16.msra.mxu0 0
        %3198 = vmatprep.subr.bf16.mxu0 0
        %3199 = vmatpush1.bf16.msra.mxu0 0
        %3200 = vmatprep.subr.bf16.mxu0 0
        %3201 = vmatpush1.bf16.msra.mxu0 0
        %3202 = vmatprep.subr.bf16.mxu0 0
        %3203 = vmatpush1.bf16.msra.mxu0 0
        %3204 = vmatprep.subr.bf16.mxu0 0
        %3205 = vmatpush1.bf16.msra.mxu0 %v3075
        %3206 = vmatprep.subr.bf16.mxu0 0
        %3207 = vmatpush2.bf16.msra.mxu0 0
        %3208 = vmatprep.subr.bf16.mxu0 0
        %3209 = vmatpush2.bf16.msra.mxu0 0
        %3210 = vmatprep.subr.bf16.mxu0 0
        %3211 = vmatpush2.bf16.msra.mxu0 0
        %3212 = vmatprep.subr.bf16.mxu0 0
        %3213 = vmatpush2.bf16.msra.mxu0 0
        %3214 = vmatprep.subr.bf16.mxu0 0
        %3215 = vmatpush2.bf16.msra.mxu0 0
        %3216 = vmatprep.subr.bf16.mxu0 0
        %3217 = vmatpush2.bf16.msra.mxu0 0
        %3218 = vmatprep.subr.bf16.mxu0 0
        %3219 = vmatpush2.bf16.msra.mxu0 0
        %3220 = vmatprep.subr.bf16.mxu0 0
        %3221 = vmatpush2.bf16.msra.mxu0 0
        %3222 = vmatprep.mubr.bf16.mxu0 0
        %3223 = vmatmul.mubr.bf16.gmra.mxu0 %v3044
        %v3224 = vpop.f32.mrf.mxu0
        %v3225 = vadd.f32 %v3030, %v3224
        %v3226 = vpop.f32.mrf.mxu0
        %v3227 = vpop.f32.mrf.mxu0
        %v3228 = vadd.f32 %v3030, %v3227
        %v3229 = vpop.f32.mrf.mxu0
        %3230 = vmatprep.mubr.bf16.mxu0 0
        %3231 = vmatmul.mubr.bf16.gmra.mxu0 %v3047
        %v3232 = vpop.f32.mrf.mxu0
        %v3233 = vadd.f32 %v3030, %v3232
        %v3234 = vpop.f32.mrf.mxu0
        %v3235 = vpop.f32.mrf.mxu0
        %v3236 = vadd.f32 %v3030, %v3235
        %v3237 = vpop.f32.mrf.mxu0
        %3238 = vmatprep.mubr.bf16.mxu0 0
        %3239 = vmatmul.mubr.bf16.gmra.mxu0 %v3050
        %v3240 = vpop.f32.mrf.mxu0
        %v3241 = vadd.f32 %v3030, %v3240
        %v3242 = vpop.f32.mrf.mxu0
        %v3243 = vpop.f32.mrf.mxu0
        %v3244 = vadd.f32 %v3030, %v3243
        %v3245 = vpop.f32.mrf.mxu0
        %3246 = vmatprep.mubr.bf16.mxu0 0
        %3247 = vmatmul.mubr.bf16.gmra.mxu0 %v3053
        %v3248 = vpop.f32.mrf.mxu0
        %v3249 = vadd.f32 %v3030, %v3248
        %v3250 = vpop.f32.mrf.mxu0
        %v3251 = vpop.f32.mrf.mxu0
        %v3252 = vadd.f32 %v3030, %v3251
        %v3253 = vpop.f32.mrf.mxu0
        %3254 = vmatprep.mubr.bf16.mxu0 0
        %3255 = vmatmul.mubr.bf16.gmra.mxu0 %v3056
        %v3256 = vpop.f32.mrf.mxu0
        %v3257 = vadd.f32 %v3030, %v3256
        %v3258 = vpop.f32.mrf.mxu0
        %v3259 = vpop.f32.mrf.mxu0
        %v3260 = vadd.f32 %v3030, %v3259
        %v3261 = vpop.f32.mrf.mxu0
        %3262 = vmatprep.mubr.bf16.mxu0 0
        %3263 = vmatmul.mubr.bf16.gmra.mxu0 %v3059
        %v3264 = vpop.f32.mrf.mxu0
        %v3265 = vadd.f32 %v3030, %v3264
        %v3266 = vpop.f32.mrf.mxu0
        %v3267 = vpop.f32.mrf.mxu0
        %v3268 = vadd.f32 %v3030, %v3267
        %v3269 = vpop.f32.mrf.mxu0
        %3270 = vmatprep.mubr.bf16.mxu0 0
        %3271 = vmatmul.mubr.bf16.gmra.mxu0 %v3062
        %v3272 = vpop.f32.mrf.mxu0
        %v3273 = vadd.f32 %v3030, %v3272
        %v3274 = vpop.f32.mrf.mxu0
        %v3275 = vpop.f32.mrf.mxu0
        %v3276 = vadd.f32 %v3030, %v3275
        %v3277 = vpop.f32.mrf.mxu0
        %3278 = vmatprep.mubr.bf16.mxu0 0
        %3279 = vmatmul.mubr.bf16.gmra.mxu0 %v3065
        %v3280 = vpop.f32.mrf.mxu0
        %v3281 = vadd.f32 %v3030, %v3280
        %v3282 = vpop.f32.mrf.mxu0
        %v3283 = vpop.f32.mrf.mxu0
        %v3284 = vadd.f32 %v3030, %v3283
        %v3285 = vpop.f32.mrf.mxu0
        %3286 = vdwg.mxu0
        %v3287 = vmax.f32 %v3112, 0.0
        %v3288 = vmax.f32 %v3114, 0.0
        %v3289 = vmax.f32 %v3225, 0.0
        %v3290 = vmax.f32 %v3116, 0.0
        %v3291 = vmax.f32 %v3118, 0.0
        %v3292 = vmax.f32 %v3228, 0.0
        %v3293 = vmax.f32 %v3122, 0.0
        %v3294 = vmax.f32 %v3124, 0.0
        %v3295 = vmax.f32 %v3233, 0.0
        %v3296 = vmax.f32 %v3126, 0.0
        %v3297 = vmax.f32 %v3128, 0.0
        %v3298 = vmax.f32 %v3236, 0.0
        %v3299 = vmax.f32 %v3132, 0.0
        %v3300 = vmax.f32 %v3134, 0.0
        %v3301 = vmax.f32 %v3241, 0.0
        %v3302 = vmax.f32 %v3136, 0.0
        %v3303 = vmax.f32 %v3138, 0.0
        %v3304 = vmax.f32 %v3244, 0.0
        %v3305 = vmax.f32 %v3142, 0.0
        %v3306 = vmax.f32 %v3144, 0.0
        %v3307 = vmax.f32 %v3249, 0.0
        %v3308 = vmax.f32 %v3146, 0.0
        %v3309 = vmax.f32 %v3148, 0.0
        %v3310 = vmax.f32 %v3252, 0.0
        %v3311 = vmax.f32 %v3152, 0.0
        %v3312 = vmax.f32 %v3154, 0.0
        %v3313 = vmax.f32 %v3257, 0.0
        %v3314 = vmax.f32 %v3156, 0.0
        %v3315 = vmax.f32 %v3158, 0.0
        %v3316 = vmax.f32 %v3260, 0.0
        %v3317 = vmax.f32 %v3162, 0.0
        %v3318 = vmax.f32 %v3164, 0.0
        %v3319 = vmax.f32 %v3265, 0.0
        %v3320 = vmax.f32 %v3166, 0.0
        %v3321 = vmax.f32 %v3168, 0.0
        %v3322 = vmax.f32 %v3268, 0.0
        %v3323 = vmax.f32 %v3172, 0.0
        %v3324 = vmax.f32 %v3174, 0.0
        %v3325 = vmax.f32 %v3273, 0.0
        %v3326 = vmax.f32 %v3176, 0.0
        %v3327 = vmax.f32 %v3178, 0.0
        %v3328 = vmax.f32 %v3276, 0.0
        %v3329 = vmax.f32 %v3182, 0.0
        %v3330 = vmax.f32 %v3184, 0.0
        %v3331 = vmax.f32 %v3281, 0.0
        %v3332 = vmax.f32 %v3186, 0.0
        %v3333 = vmax.f32 %v3188, 0.0
        %v3334 = vmax.f32 %v3284, 0.0
        %v3335 = vadd.f32 %v2942, %v3287
        %v3336 = vadd.f32 %v2943, %v3288
        %v3337 = vadd.f32 %v2944, %v3289
        %v3338 = vadd.f32 %v2945, %v3290
        %v3339 = vadd.f32 %v2946, %v3291
        %v3340 = vadd.f32 %v2947, %v3292
        %v3341 = vadd.f32 %v2948, %v3293
        %v3342 = vadd.f32 %v2949, %v3294
        %v3343 = vadd.f32 %v2950, %v3295
        %v3344 = vadd.f32 %v2951, %v3296
        %v3345 = vadd.f32 %v2952, %v3297
        %v3346 = vadd.f32 %v2953, %v3298
        %v3347 = vadd.f32 %v2954, %v3299
        %v3348 = vadd.f32 %v2955, %v3300
        %v3349 = vadd.f32 %v2956, %v3301
        %v3350 = vadd.f32 %v2957, %v3302
        %v3351 = vadd.f32 %v2958, %v3303
        %v3352 = vadd.f32 %v2959, %v3304
        %v3353 = vadd.f32 %v2960, %v3305
        %v3354 = vadd.f32 %v2961, %v3306
        %v3355 = vadd.f32 %v2962, %v3307
        %v3356 = vadd.f32 %v2963, %v3308
        %v3357 = vadd.f32 %v2964, %v3309
        %v3358 = vadd.f32 %v2965, %v3310
        %v3359 = vadd.f32 %v2966, %v3311
        %v3360 = vadd.f32 %v2967, %v3312
        %v3361 = vadd.f32 %v2968, %v3313
        %v3362 = vadd.f32 %v2969, %v3314
        %v3363 = vadd.f32 %v2970, %v3315
        %v3364 = vadd.f32 %v2971, %v3316
        %v3365 = vadd.f32 %v2972, %v3317
        %v3366 = vadd.f32 %v2973, %v3318
        %v3367 = vadd.f32 %v2974, %v3319
        %v3368 = vadd.f32 %v2975, %v3320
        %v3369 = vadd.f32 %v2976, %v3321
        %v3370 = vadd.f32 %v2977, %v3322
        %v3371 = vadd.f32 %v2978, %v3323
        %v3372 = vadd.f32 %v2979, %v3324
        %v3373 = vadd.f32 %v2980, %v3325
        %v3374 = vadd.f32 %v2981, %v3326
        %v3375 = vadd.f32 %v2982, %v3327
        %v3376 = vadd.f32 %v2983, %v3328
        %v3377 = vadd.f32 %v2984, %v3329
        %v3378 = vadd.f32 %v2985, %v3330
        %v3379 = vadd.f32 %v2986, %v3331
        %v3380 = vadd.f32 %v2987, %v3332
        %v3381 = vadd.f32 %v2988, %v3333
        %v3382 = vadd.f32 %v2989, %v3334
        %v3383 = vmax.f32 %v3335, 0.0
        %v3384 = vmax.f32 %v3336, 0.0
        %v3385 = vmax.f32 %v3337, 0.0
        %v3386 = vmax.f32 %v3338, 0.0
        %v3387 = vmax.f32 %v3339, 0.0
        %v3388 = vmax.f32 %v3340, 0.0
        %v3389 = vmax.f32 %v3341, 0.0
        %v3390 = vmax.f32 %v3342, 0.0
        %v3391 = vmax.f32 %v3343, 0.0
        %v3392 = vmax.f32 %v3344, 0.0
        %v3393 = vmax.f32 %v3345, 0.0
        %v3394 = vmax.f32 %v3346, 0.0
        %v3395 = vmax.f32 %v3347, 0.0
        %v3396 = vmax.f32 %v3348, 0.0
        %v3397 = vmax.f32 %v3349, 0.0
        %v3398 = vmax.f32 %v3350, 0.0
        %v3399 = vmax.f32 %v3351, 0.0
        %v3400 = vmax.f32 %v3352, 0.0
        %v3401 = vmax.f32 %v3353, 0.0
        %v3402 = vmax.f32 %v3354, 0.0
        %v3403 = vmax.f32 %v3355, 0.0
        %v3404 = vmax.f32 %v3356, 0.0
        %v3405 = vmax.f32 %v3357, 0.0
        %v3406 = vmax.f32 %v3358, 0.0
        %v3407 = vmax.f32 %v3359, 0.0
        %v3408 = vmax.f32 %v3360, 0.0
        %v3409 = vmax.f32 %v3361, 0.0
        %v3410 = vmax.f32 %v3362, 0.0
        %v3411 = vmax.f32 %v3363, 0.0
        %v3412 = vmax.f32 %v3364, 0.0
        %v3413 = vmax.f32 %v3365, 0.0
        %v3414 = vmax.f32 %v3366, 0.0
        %v3415 = vmax.f32 %v3367, 0.0
        %v3416 = vmax.f32 %v3368, 0.0
        %v3417 = vmax.f32 %v3369, 0.0
        %v3418 = vmax.f32 %v3370, 0.0
        %v3419 = vmax.f32 %v3371, 0.0
        %v3420 = vmax.f32 %v3372, 0.0
        %v3421 = vmax.f32 %v3373, 0.0
        %v3422 = vmax.f32 %v3374, 0.0
        %v3423 = vmax.f32 %v3375, 0.0
        %v3424 = vmax.f32 %v3376, 0.0
        %v3425 = vmax.f32 %v3377, 0.0
        %v3426 = vmax.f32 %v3378, 0.0
        %v3427 = vmax.f32 %v3379, 0.0
        %v3428 = vmax.f32 %v3380, 0.0
        %v3429 = vmax.f32 %v3381, 0.0
        %v3430 = vmax.f32 %v3382, 0.0
        %s3431 = scalar_lea.vmem %s6, 4
        %v3432 = vld [vmem:[%s3431] ss:$8 sm:$0x7]
        %v3434 = vlaneseq
        %v3435 = vshrl.u32 %v3434, 7
        %v3436 = vsub.s32 0, %v3435
        %v3437 = vrot.slane %v3432, %v3436
        %v3438 = vlaneseq
        %v3439 = vshrl.u32 %v3438, 7
        %v3440 = vsub.s32 1, %v3439
        %v3441 = vrot.slane %v3432, %v3440
        %v3442 = vlaneseq
        %v3443 = vshrl.u32 %v3442, 7
        %v3444 = vsub.s32 2, %v3443
        %v3445 = vrot.slane %v3432, %v3444
        %v3449 = vmul.f32 %v3383, %v3437
        %v3450 = vmul.f32 %v3384, %v3441
        %v3451 = vmul.f32 %v3385, %v3445
        %v3452 = vmul.f32 %v3386, %v3437
        %v3453 = vmul.f32 %v3387, %v3441
        %v3454 = vmul.f32 %v3388, %v3445
        %v3455 = vmul.f32 %v3389, %v3437
        %v3456 = vmul.f32 %v3390, %v3441
        %v3457 = vmul.f32 %v3391, %v3445
        %v3458 = vmul.f32 %v3392, %v3437
        %v3459 = vmul.f32 %v3393, %v3441
        %v3460 = vmul.f32 %v3394, %v3445
        %v3461 = vmul.f32 %v3395, %v3437
        %v3462 = vmul.f32 %v3396, %v3441
        %v3463 = vmul.f32 %v3397, %v3445
        %v3464 = vmul.f32 %v3398, %v3437
        %v3465 = vmul.f32 %v3399, %v3441
        %v3466 = vmul.f32 %v3400, %v3445
        %v3467 = vmul.f32 %v3401, %v3437
        %v3468 = vmul.f32 %v3402, %v3441
        %v3469 = vmul.f32 %v3403, %v3445
        %v3470 = vmul.f32 %v3404, %v3437
        %v3471 = vmul.f32 %v3405, %v3441
        %v3472 = vmul.f32 %v3406, %v3445
        %v3473 = vmul.f32 %v3407, %v3437
        %v3474 = vmul.f32 %v3408, %v3441
        %v3475 = vmul.f32 %v3409, %v3445
        %v3476 = vmul.f32 %v3410, %v3437
        %v3477 = vmul.f32 %v3411, %v3441
        %v3478 = vmul.f32 %v3412, %v3445
        %v3479 = vmul.f32 %v3413, %v3437
        %v3480 = vmul.f32 %v3414, %v3441
        %v3481 = vmul.f32 %v3415, %v3445
        %v3482 = vmul.f32 %v3416, %v3437
        %v3483 = vmul.f32 %v3417, %v3441
        %v3484 = vmul.f32 %v3418, %v3445
        %v3485 = vmul.f32 %v3419, %v3437
        %v3486 = vmul.f32 %v3420, %v3441
        %v3487 = vmul.f32 %v3421, %v3445
        %v3488 = vmul.f32 %v3422, %v3437
        %v3489 = vmul.f32 %v3423, %v3441
        %v3490 = vmul.f32 %v3424, %v3445
        %v3491 = vmul.f32 %v3425, %v3437
        %v3492 = vmul.f32 %v3426, %v3441
        %v3493 = vmul.f32 %v3427, %v3445
        %v3494 = vmul.f32 %v3428, %v3437
        %v3495 = vmul.f32 %v3429, %v3441
        %v3496 = vmul.f32 %v3430, %v3445
        %v3497 = vadd.f32 %v3449, %v3450
        %v3498 = vadd.f32 %v3497, %v3451
        %3499 = vadd.xlane.f32.xlu0 %v3498
        %v3500 = vpop.xlane.xlu0 %3499
        %v3501 = vadd.f32 %v3452, %v3453
        %v3502 = vadd.f32 %v3501, %v3454
        %3503 = vadd.xlane.f32.xlu0 %v3502
        %v3504 = vpop.xlane.xlu0 %3503
        %v3505 = vadd.f32 %v3455, %v3456
        %v3506 = vadd.f32 %v3505, %v3457
        %3507 = vadd.xlane.f32.xlu0 %v3506
        %v3508 = vpop.xlane.xlu0 %3507
        %v3509 = vadd.f32 %v3458, %v3459
        %v3510 = vadd.f32 %v3509, %v3460
        %3511 = vadd.xlane.f32.xlu0 %v3510
        %v3512 = vpop.xlane.xlu0 %3511
        %v3513 = vadd.f32 %v3461, %v3462
        %v3514 = vadd.f32 %v3513, %v3463
        %3515 = vadd.xlane.f32.xlu0 %v3514
        %v3516 = vpop.xlane.xlu0 %3515
        %v3517 = vadd.f32 %v3464, %v3465
        %v3518 = vadd.f32 %v3517, %v3466
        %3519 = vadd.xlane.f32.xlu0 %v3518
        %v3520 = vpop.xlane.xlu0 %3519
        %v3521 = vadd.f32 %v3467, %v3468
        %v3522 = vadd.f32 %v3521, %v3469
        %3523 = vadd.xlane.f32.xlu0 %v3522
        %v3524 = vpop.xlane.xlu0 %3523
        %v3525 = vadd.f32 %v3470, %v3471
        %v3526 = vadd.f32 %v3525, %v3472
        %3527 = vadd.xlane.f32.xlu0 %v3526
        %v3528 = vpop.xlane.xlu0 %3527
        %v3529 = vadd.f32 %v3473, %v3474
        %v3530 = vadd.f32 %v3529, %v3475
        %3531 = vadd.xlane.f32.xlu0 %v3530
        %v3532 = vpop.xlane.xlu0 %3531
        %v3533 = vadd.f32 %v3476, %v3477
        %v3534 = vadd.f32 %v3533, %v3478
        %3535 = vadd.xlane.f32.xlu0 %v3534
        %v3536 = vpop.xlane.xlu0 %3535
        %v3537 = vadd.f32 %v3479, %v3480
        %v3538 = vadd.f32 %v3537, %v3481
        %3539 = vadd.xlane.f32.xlu0 %v3538
        %v3540 = vpop.xlane.xlu0 %3539
        %v3541 = vadd.f32 %v3482, %v3483
        %v3542 = vadd.f32 %v3541, %v3484
        %3543 = vadd.xlane.f32.xlu0 %v3542
        %v3544 = vpop.xlane.xlu0 %3543
        %v3545 = vadd.f32 %v3485, %v3486
        %v3546 = vadd.f32 %v3545, %v3487
        %3547 = vadd.xlane.f32.xlu0 %v3546
        %v3548 = vpop.xlane.xlu0 %3547
        %v3549 = vadd.f32 %v3488, %v3489
        %v3550 = vadd.f32 %v3549, %v3490
        %3551 = vadd.xlane.f32.xlu0 %v3550
        %v3552 = vpop.xlane.xlu0 %3551
        %v3553 = vadd.f32 %v3491, %v3492
        %v3554 = vadd.f32 %v3553, %v3493
        %3555 = vadd.xlane.f32.xlu0 %v3554
        %v3556 = vpop.xlane.xlu0 %3555
        %v3557 = vadd.f32 %v3494, %v3495
        %v3558 = vadd.f32 %v3557, %v3496
        %3559 = vadd.xlane.f32.xlu0 %v3558
        %v3560 = vpop.xlane.xlu0 %3559
        %v3561 = vld [vmem:[%s6 + $0x5] ss:$0 sm:$0xff]
        %v3562 = vadd.f32 %v3500, %v3561
        %v3563 = vadd.f32 %v3504, %v3561
        %v3564 = vadd.f32 %v3508, %v3561
        %v3565 = vadd.f32 %v3512, %v3561
        %v3566 = vadd.f32 %v3516, %v3561
        %v3567 = vadd.f32 %v3520, %v3561
        %v3568 = vadd.f32 %v3524, %v3561
        %v3569 = vadd.f32 %v3528, %v3561
        %v3570 = vadd.f32 %v3532, %v3561
        %v3571 = vadd.f32 %v3536, %v3561
        %v3572 = vadd.f32 %v3540, %v3561
        %v3573 = vadd.f32 %v3544, %v3561
        %v3574 = vadd.f32 %v3548, %v3561
        %v3575 = vadd.f32 %v3552, %v3561
        %v3576 = vadd.f32 %v3556, %v3561
        %v3577 = vadd.f32 %v3560, %v3561
        %3578 = vst [vmem:[%s303] sm:$0xff] %v3562
        %3579 = vst [vmem:[%s303 + $0x8] sm:$0xff] %v3563
        %3580 = vst [vmem:[%s303 + $0x10] sm:$0xff] %v3564
        %3581 = vst [vmem:[%s303 + $0x18] sm:$0xff] %v3565
        %3582 = vst [vmem:[%s303 + $0x20] sm:$0xff] %v3566
        %3583 = vst [vmem:[%s303 + $0x28] sm:$0xff] %v3567
        %3584 = vst [vmem:[%s303 + $0x30] sm:$0xff] %v3568
        %3585 = vst [vmem:[%s303 + $0x38] sm:$0xff] %v3569
        %3586 = vst [vmem:[%s303 + $0x40] sm:$0xff] %v3570
        %3587 = vst [vmem:[%s303 + $0x48] sm:$0xff] %v3571
        %3588 = vst [vmem:[%s303 + $0x50] sm:$0xff] %v3572
        %3589 = vst [vmem:[%s303 + $0x58] sm:$0xff] %v3573
        %3590 = vst [vmem:[%s303 + $0x60] sm:$0xff] %v3574
        %3591 = vst [vmem:[%s303 + $0x68] sm:$0xff] %v3575
        %3592 = vst [vmem:[%s303 + $0x70] sm:$0xff] %v3576
        %3593 = vst [vmem:[%s303 + $0x78] sm:$0xff] %v3577
        %s3594 = sand.u32 %s187, 1
        %s3595 = scalar_lea.sflag [#allocation4], %s3594
        %s3596 = sand.u32 %s187, 1
        %s3597 = smul.addr %s3596, 128
        %s3598 = scalar_lea.vmem [#allocation5], %s3597
        // Predicated region
        $region53: #{tpu_custom_call.1} parent=47 // pred_check
          %p3599 = pneg %p197
        $region54: #{tpu_custom_call.1} parent=47 // pred_check_branch
          %3601 = sbr.rel (%p3599) target = $region56
        $region55: #{tpu_custom_call.1} parent=47 // pred_region
          %s3602 = smul.u32 16, %s22
          %s3604 = ssub.s32 2048, 2048
          %3605 = vsyncadd %s3595, %s3604
          %s3606 = smul.addr %s3602, 128
          %s3607 = scalar_lea.hbm %s7, %s3606
          %s3608 = sshll.u32 %s3598, 4
          %s3609 = int_to_ptr.vmem [resolvable:$true] %s3608
          %3614 = dma.vmem_to_hbm [thread:$0]  %s3609, 2048, %s3607, %s3595, 128, 128, 8
        $region56: #{tpu_custom_call.1} parent=47 // pred_fallthru
          _
      $region48: #{tpu_custom_call.1} parent=5 // pred_fallthru
        _
      %p3615 = scmp.le.s32.totalorder 2, %s17
      // Predicated region
      $region57: #{tpu_custom_call.1} parent=5 // pred_check
        %p3616 = pneg %p3615
      $region58: #{tpu_custom_call.1} parent=5 // pred_check_branch
        %3618 = sbr.rel (%p3616) target = $region60
      $region59: #{tpu_custom_call.1} parent=5 // pred_region
        %s3619 = ssub.s32 %s17, 2
        // Predicated region
        $region61: #{tpu_custom_call.1} parent=59 // pred_check
          %p3620 = pneg %p203
        $region62: #{tpu_custom_call.1} parent=59 // pred_check_branch
          %3622 = sbr.rel (%p3620) target = $region64
        $region63: #{tpu_custom_call.1} parent=59 // pred_region
          %s3623 = sand.u32 %s188, 1
          %s3624 = scalar_lea.sflag [#allocation4], %s3623
          %s3625 = sand.u32 %s188, 1
          %s3626 = smul.addr %s3625, 128
          %s3627 = scalar_lea.vmem [#allocation5], %s3626
          %3628 = dma.done %s3624, 2048
        $region64: #{tpu_custom_call.1} parent=59 // pred_fallthru
          _
      $region60: #{tpu_custom_call.1} parent=5 // pred_fallthru
        _
    $region6: #{tpu_custom_call.1} parent=1 // loop_footer
      %s21 = sadd.s32 1, %s17
    $region7: #{tpu_custom_call.1} parent=1 // loop_footer_branch
      %16 = sbr.rel target = $region3
    $region8: #{tpu_custom_call.1} parent=1 // loop_exit
      _
    %3629 = vsyncpa [#allocation3], 1
    %s3630 = scalar_lea.sflag [#allocation3], 1
    %3631 = vsyncpa %s3630, 1
    %3632 = vsyncpa [#allocation4], 1
    %s3633 = scalar_lea.sflag [#allocation4], 1
    %3634 = vsyncpa %s3633, 1

</llo_original>
